<compile_context>
chip_gen: v6e
topology: v6e:2x2x1
jax: 0.10.0
libtpu: 0.0.40
codegen_flags: <defaults>
</compile_context>

<pallas_src>
import functools

import jax
import jax.numpy as jnp
from jax import lax
from jax.experimental import pallas as pl
from jax.experimental.pallas import tpu as pltpu


# --------------------------------------------------------------------------- #
# Pallas kernel
# --------------------------------------------------------------------------- #
def _silu(v):
    return v * jax.nn.sigmoid(v)


def _csp_layer_kernel(x_ref, w1_ref, b1_ref, w2_ref, b2_ref,
                      wb1_ref, bb1_ref, wb2_ref, bb2_ref,
                      w3a_ref, w3b_ref, b3_ref, o_ref, pad_ref,
                      *, n_bottleneck, shortcut, H, W):
    """Fully fused CSPLayer forward for one batch element.

    Activations are channel-first slabs (C, M) with M = H*W on the lane axis.

    x_ref  : (1, Cin, M)
    w1_ref : (hid, Cin)        b1_ref : (hid, 1)        conv1 (BN folded)
    w2_ref : (hid, Cin)        b2_ref : (hid, 1)        conv2 (BN folded)
    wb1_ref: (n, hid, hid)     bb1_ref: (n, 1, hid)     bottleneck 1x1 convs
    wb2_ref: (n, 9, hid, hid)  bb2_ref: (n, 1, hid)     bottleneck 3x3 taps
    w3a_ref: (Cout, hid)       w3b_ref: (Cout, hid)     conv3 split (BN folded)
    b3_ref : (Cout, 1)
    o_ref  : (1, Cout, M)
    pad_ref: VMEM (H+2, W+2, hid) f32 scratch (zero-padded bottleneck input)
    """
    hid = w1_ref.shape[0]
    M = H * W

    xm = x_ref[0].astype(jnp.float32)                       # (Cin, M) lane-dense

    # conv1 / conv2 (1x1 + folded BN + SiLU), channel-first MXU matmuls.
    z1 = _silu(jnp.dot(w1_ref[...], xm, preferred_element_type=jnp.float32)
               + b1_ref[...])                               # (hid, M)
    x2 = _silu(jnp.dot(w2_ref[...], xm, preferred_element_type=jnp.float32)
               + b2_ref[...])                               # (hid, M), stays CF

    # Bottleneck chain runs channels-last (spatial on the sublane axis) so the
    # 3x3 taps come straight out of the padded VMEM scratch.  One small on-chip
    # transpose in and one out — replaces two full HBM transpose passes.
    x1 = z1.T                                               # (M, hid)

    # Zero the halo scratch once; only the interior is rewritten per bottleneck.
    pad_ref[...] = jnp.zeros((H + 2, W + 2, hid), jnp.float32)

    for i in range(n_bottleneck):        # static unroll, n known at trace time
        y = _silu(jnp.dot(x1, wb1_ref[i], preferred_element_type=jnp.float32)
                  + bb1_ref[i])
        pad_ref[1:H + 1, 1:W + 1, :] = y.reshape(H, W, hid)

        # 3x3 conv as 9 tap matmuls, taps read straight from the VMEM scratch.
        acc = jnp.zeros((M, hid), jnp.float32)
        for kh in range(3):
            for kw in range(3):
                tap = pad_ref[kh:kh + H, kw:kw + W, :].reshape(M, hid)
                acc = acc + jnp.dot(tap, wb2_ref[i, kh * 3 + kw],
                                    preferred_element_type=jnp.float32)
        y = _silu(acc + bb2_ref[i])
        x1 = y + x1 if shortcut else y

    x1_cf = x1.T                                            # (hid, M)

    # conv3 on concat(x_1, x_2): split matmul == concat @ W3 (no lane concat),
    # computed channel-first so the (Cout, M) output store is lane-dense.
    out = _silu(jnp.dot(w3a_ref[...], x1_cf, preferred_element_type=jnp.float32)
                + jnp.dot(w3b_ref[...], x2, preferred_element_type=jnp.float32)
                + b3_ref[...])                              # (Cout, M)
    o_ref[0] = out.astype(o_ref.dtype)


# --------------------------------------------------------------------------- #
# Host-side BN folding helpers
# --------------------------------------------------------------------------- #
def _fold_bn(gamma, beta, mean, var, eps=1e-5):
    scale = gamma / jnp.sqrt(var + eps)
    bias = beta - mean * scale
    return scale, bias


def _fold_pw_cf(w, bn):
    """1x1 conv (Co,Ci,1,1) + BN -> channel-first weight (Co,Ci), bias (Co,1)."""
    s, b = _fold_bn(*bn)
    wf = w[:, :, 0, 0] * s[:, None]
    return wf.astype(jnp.float32), b.reshape(-1, 1).astype(jnp.float32)


def _fold_pw_cl(w, bn):
    """1x1 conv (Co,Ci,1,1) + BN -> channels-last weight (Ci,Co), bias (1,Co)."""
    s, b = _fold_bn(*bn)
    wf = (w[:, :, 0, 0] * s[:, None]).T
    return wf.astype(jnp.float32), b.reshape(1, -1).astype(jnp.float32)


def _fold_k3(w, bn):
    """3x3 conv (Co,Ci,3,3) + BN -> taps (9,Ci,Co), bias (1,Co)."""
    s, b = _fold_bn(*bn)
    co, ci = w.shape[0], w.shape[1]
    wf = jnp.transpose(w * s[:, None, None, None], (2, 3, 1, 0)).reshape(9, ci, co)
    return wf.astype(jnp.float32), b.reshape(1, -1).astype(jnp.float32)


# --------------------------------------------------------------------------- #
# Wrapper
# --------------------------------------------------------------------------- #
def csp_layer_forward(x_nchw, params, *, n=1, shortcut=True):
    """Forward matching CSPLayer(in, out, n, shortcut, expansion, depthwise=False, act='silu')."""
    N, Cin, H, W = x_nchw.shape
    hid = params["w1"].shape[0]
    Cout = params["w3"].shape[0]
    M = H * W

    # Flatten spatial dims: free metadata reshape on row-major NCHW (no HBM pass).
    x = x_nchw.reshape(N, Cin, M)

    w1, b1 = _fold_pw_cf(params["w1"], params["bn1"])
    w2, b2 = _fold_pw_cf(params["w2"], params["bn2"])
    w3f, b3 = _fold_pw_cf(params["w3"], params["bn3"])
    w3a, w3b = w3f[:, :hid], w3f[:, hid:]

    wb1 = jnp.stack([_fold_pw_cl(m["w1"], m["bn1"])[0] for m in params["m"]])
    bb1 = jnp.stack([_fold_pw_cl(m["w1"], m["bn1"])[1] for m in params["m"]])
    wb2 = jnp.stack([_fold_k3(m["w2"], m["bn2"])[0] for m in params["m"]])
    bb2 = jnp.stack([_fold_k3(m["w2"], m["bn2"])[1] for m in params["m"]])

    kernel = functools.partial(_csp_layer_kernel, n_bottleneck=n,
                               shortcut=shortcut, H=H, W=W)
    out = pl.pallas_call(
        kernel,
        out_shape=jax.ShapeDtypeStruct((N, Cout, M), x.dtype),
        grid=(N,),
        in_specs=[
            pl.BlockSpec((1, Cin, M), lambda b: (b, 0, 0)),
            pl.BlockSpec((hid, Cin), lambda b: (0, 0)),
            pl.BlockSpec((hid, 1), lambda b: (0, 0)),
            pl.BlockSpec((hid, Cin), lambda b: (0, 0)),
            pl.BlockSpec((hid, 1), lambda b: (0, 0)),
            pl.BlockSpec((n, hid, hid), lambda b: (0, 0, 0)),
            pl.BlockSpec((n, 1, hid), lambda b: (0, 0, 0)),
            pl.BlockSpec((n, 9, hid, hid), lambda b: (0, 0, 0, 0)),
            pl.BlockSpec((n, 1, hid), lambda b: (0, 0, 0)),
            pl.BlockSpec((Cout, hid), lambda b: (0, 0)),
            pl.BlockSpec((Cout, hid), lambda b: (0, 0)),
            pl.BlockSpec((Cout, 1), lambda b: (0, 0)),
        ],
        out_specs=pl.BlockSpec((1, Cout, M), lambda b: (b, 0, 0)),
        scratch_shapes=[pltpu.VMEM((H + 2, W + 2, hid), jnp.float32)],
        compiler_params=pltpu.CompilerParams(dimension_semantics=("parallel",)),
    )(x, w1, b1, w2, b2, wb1, bb1, wb2, bb2, w3a, w3b, b3)

    # Free metadata reshape back to NCHW.
    return out.reshape(N, Cout, H, W)


# --------------------------------------------------------------------------- #
# Pure-JAX reference (same semantics) for correctness checking
# --------------------------------------------------------------------------- #
def csp_layer_reference(x, params, *, n=1, shortcut=True):
    def base_conv(x, w, bn):
        k = w.shape[-1]
        pad = (k - 1) // 2
        y = lax.conv_general_dilated(
            x, w, (1, 1), [(pad, pad), (pad, pad)],
            dimension_numbers=("NCHW", "OIHW", "NCHW"))
        s, b = _fold_bn(*bn)
        y = y * s[None, :, None, None] + b[None, :, None, None]
        return y * jax.nn.sigmoid(y)

    x1 = base_conv(x, params["w1"], params["bn1"])
    x2 = base_conv(x, params["w2"], params["bn2"])
    for i in range(n):
        m = params["m"][i]
        y = base_conv(x1, m["w1"], m["bn1"])
        y = base_conv(y, m["w2"], m["bn2"])
        x1 = y + x1 if shortcut else y
    xc = jnp.concatenate([x1, x2], axis=1)
    return base_conv(xc, params["w3"], params["bn3"])


# --------------------------------------------------------------------------- #
# Main
# --------------------------------------------------------------------------- #
if __name__ == "__main__":
    N, Cin, Cout, H, W = 2, 16, 16, 16, 16
    n_bottleneck, expansion = 1, 0.5
    hid = int(Cout * expansion)        # 8

    key = jax.random.PRNGKey(0)
    kit = iter(jax.random.split(key, 32))

    def bn_params(c):
        return (1.0 + 0.1 * jax.random.normal(next(kit), (c,), jnp.float32),
                0.1 * jax.random.normal(next(kit), (c,), jnp.float32),
                0.1 * jax.random.normal(next(kit), (c,), jnp.float32),
                1.0 + 0.1 * jax.random.uniform(next(kit), (c,), jnp.float32))

    x = jax.random.normal(next(kit), (N, Cin, H, W), jnp.float32)      # NCHW input

    params = {
        "w1": 0.2 * jax.random.normal(next(kit), (hid, Cin, 1, 1), jnp.float32),
        "bn1": bn_params(hid),
        "w2": 0.2 * jax.random.normal(next(kit), (hid, Cin, 1, 1), jnp.float32),
        "bn2": bn_params(hid),
        "w3": 0.2 * jax.random.normal(next(kit), (Cout, 2 * hid, 1, 1), jnp.float32),
        "bn3": bn_params(Cout),
        "m": [{
            "w1": 0.2 * jax.random.normal(next(kit), (hid, hid, 1, 1), jnp.float32),
            "bn1": bn_params(hid),
            "w2": 0.2 * jax.random.normal(next(kit), (hid, hid, 3, 3), jnp.float32),
            "bn2": bn_params(hid),
        } for _ in range(n_bottleneck)],
    }

    out = csp_layer_forward(x, params, n=n_bottleneck, shortcut=True)
    out = jax.block_until_ready(out)

    ref = csp_layer_reference(x, params, n=n_bottleneck, shortcut=True)
    assert out.shape == (N, Cout, H, W), out.shape
    max_err = float(jnp.max(jnp.abs(out - ref)))
    assert jnp.allclose(out, ref, rtol=1e-4, atol=1e-4), max_err

    print("KERNEL_OK")
</pallas_src>

<mosaic_0001>
module attributes {stable_mosaic.version = 11 : i64} {
  func.func @_csp_layer_kernel(%arg0: i32, %arg1: memref<1x16x256xf32, #tpu.memory_space<vmem>>, %arg2: memref<8x16xf32, #tpu.memory_space<vmem>>, %arg3: memref<8x1xf32, #tpu.memory_space<vmem>>, %arg4: memref<8x16xf32, #tpu.memory_space<vmem>>, %arg5: memref<8x1xf32, #tpu.memory_space<vmem>>, %arg6: memref<1x8x8xf32, #tpu.memory_space<vmem>>, %arg7: memref<1x1x8xf32, #tpu.memory_space<vmem>>, %arg8: memref<1x9x8x8xf32, #tpu.memory_space<vmem>>, %arg9: memref<1x1x8xf32, #tpu.memory_space<vmem>>, %arg10: memref<16x8xf32, #tpu.memory_space<vmem>>, %arg11: memref<16x8xf32, #tpu.memory_space<vmem>>, %arg12: memref<16x1xf32, #tpu.memory_space<vmem>>, %arg13: memref<1x16x256xf32, #tpu.memory_space<vmem>>, %arg14: memref<18x18x8xf32, #tpu.memory_space<vmem>>) attributes {dimension_semantics = [#tpu.dimension_semantics<parallel>], iteration_bounds = array<i64: 2>, scalar_prefetch = 0 : i64, scratch_operands = 1 : i64, tpu.core_type = #tpu.core_type<tc>, window_params = [{transform_indices = @transform_0, window_bounds = array<i64: 1, 16, 256>}, {pipeline_mode = #tpu.pipeline_mode<synchronous>, transform_indices = @transform_1, window_bounds = array<i64: 8, 16>}, {pipeline_mode = #tpu.pipeline_mode<synchronous>, transform_indices = @transform_2, window_bounds = array<i64: 8, 1>}, {pipeline_mode = #tpu.pipeline_mode<synchronous>, transform_indices = @transform_3, window_bounds = array<i64: 8, 16>}, {pipeline_mode = #tpu.pipeline_mode<synchronous>, transform_indices = @transform_4, window_bounds = array<i64: 8, 1>}, {pipeline_mode = #tpu.pipeline_mode<synchronous>, transform_indices = @transform_5, window_bounds = array<i64: 1, 8, 8>}, {pipeline_mode = #tpu.pipeline_mode<synchronous>, transform_indices = @transform_6, window_bounds = array<i64: 1, 1, 8>}, {pipeline_mode = #tpu.pipeline_mode<synchronous>, transform_indices = @transform_7, window_bounds = array<i64: 1, 9, 8, 8>}, {pipeline_mode = #tpu.pipeline_mode<synchronous>, transform_indices = @transform_8, window_bounds = array<i64: 1, 1, 8>}, {pipeline_mode = #tpu.pipeline_mode<synchronous>, transform_indices = @transform_9, window_bounds = array<i64: 16, 8>}, {pipeline_mode = #tpu.pipeline_mode<synchronous>, transform_indices = @transform_10, window_bounds = array<i64: 16, 8>}, {pipeline_mode = #tpu.pipeline_mode<synchronous>, transform_indices = @transform_11, window_bounds = array<i64: 16, 1>}, {transform_indices = @transform_12, window_bounds = array<i64: 1, 16, 256>}]} {
    %c0 = arith.constant 0 : index
    %c0_0 = arith.constant 0 : index
    %c0_1 = arith.constant 0 : index
    %0 = vector.load %arg1[%c0, %c0_0, %c0_1] : memref<1x16x256xf32, #tpu.memory_space<vmem>>, vector<1x16x256xf32>
    %1 = vector.shape_cast %0 : vector<1x16x256xf32> to vector<16x256xf32>
    %c0_2 = arith.constant 0 : index
    %c0_3 = arith.constant 0 : index
    %2 = vector.load %arg2[%c0_2, %c0_3] : memref<8x16xf32, #tpu.memory_space<vmem>>, vector<8x16xf32>
    %cst = arith.constant dense<0.000000e+00> : vector<8x256xf32>
    %3 = tpu.matmul %2, %1, %cst {dimension_numbers = #tpu.dot_dimension_numbers<[1], [0], [0], [1], [0, 0, 1, 1], [], []>} : vector<8x16xf32>, vector<16x256xf32>, vector<8x256xf32> -> vector<8x256xf32>
    %c0_4 = arith.constant 0 : index
    %c0_5 = arith.constant 0 : index
    %4 = vector.load %arg3[%c0_4, %c0_5] : memref<8x1xf32, #tpu.memory_space<vmem>>, vector<8x1xf32>
    %5 = vector.broadcast %4 : vector<8x1xf32> to vector<8x256xf32>
    %6 = arith.addf %3, %5 : vector<8x256xf32>
    %7 = arith.negf %6 : vector<8x256xf32>
    %8 = math.exp %7 : vector<8x256xf32>
    %cst_6 = arith.constant 1.000000e+00 : f32
    %9 = vector.broadcast %cst_6 : f32 to vector<8x256xf32>
    %10 = arith.addf %9, %8 : vector<8x256xf32>
    %11 = arith.divf %9, %10 : vector<8x256xf32>
    %12 = arith.mulf %6, %11 : vector<8x256xf32>
    %c0_7 = arith.constant 0 : index
    %c0_8 = arith.constant 0 : index
    %13 = vector.load %arg4[%c0_7, %c0_8] : memref<8x16xf32, #tpu.memory_space<vmem>>, vector<8x16xf32>
    %cst_9 = arith.constant dense<0.000000e+00> : vector<8x256xf32>
    %14 = tpu.matmul %13, %1, %cst_9 {dimension_numbers = #tpu.dot_dimension_numbers<[1], [0], [0], [1], [0, 0, 1, 1], [], []>} : vector<8x16xf32>, vector<16x256xf32>, vector<8x256xf32> -> vector<8x256xf32>
    %c0_10 = arith.constant 0 : index
    %c0_11 = arith.constant 0 : index
    %15 = vector.load %arg5[%c0_10, %c0_11] : memref<8x1xf32, #tpu.memory_space<vmem>>, vector<8x1xf32>
    %16 = vector.broadcast %15 : vector<8x1xf32> to vector<8x256xf32>
    %17 = arith.addf %14, %16 : vector<8x256xf32>
    %18 = arith.negf %17 : vector<8x256xf32>
    %19 = math.exp %18 : vector<8x256xf32>
    %cst_12 = arith.constant 1.000000e+00 : f32
    %20 = vector.broadcast %cst_12 : f32 to vector<8x256xf32>
    %21 = arith.addf %20, %19 : vector<8x256xf32>
    %22 = arith.divf %20, %21 : vector<8x256xf32>
    %23 = arith.mulf %17, %22 : vector<8x256xf32>
    %24 = tpu.transpose %12, [1, 0] : vector<8x256xf32> -> vector<256x8xf32>
    %cst_13 = arith.constant 0.000000e+00 : f32
    %25 = vector.broadcast %cst_13 : f32 to vector<18x18x8xf32>
    %c0_14 = arith.constant 0 : index
    %c0_15 = arith.constant 0 : index
    %c0_16 = arith.constant 0 : index
    %26 = vector.load %arg14[%c0_14, %c0_15, %c0_16] : memref<18x18x8xf32, #tpu.memory_space<vmem>>, vector<18x18x8xf32>
    tpu.vector_store %arg14[%c0_14, %c0_15, %c0_16], %25 {strides = array<i32>} : memref<18x18x8xf32, #tpu.memory_space<vmem>>, vector<18x18x8xf32>,
    %c0_17 = arith.constant 0 : index
    %c0_18 = arith.constant 0 : index
    %c0_19 = arith.constant 0 : index
    %27 = vector.load %arg6[%c0_17, %c0_18, %c0_19] : memref<1x8x8xf32, #tpu.memory_space<vmem>>, vector<1x8x8xf32>
    %28 = vector.shape_cast %27 : vector<1x8x8xf32> to vector<8x8xf32>
    %cst_20 = arith.constant dense<0.000000e+00> : vector<256x8xf32>
    %29 = tpu.matmul %24, %28, %cst_20 {dimension_numbers = #tpu.dot_dimension_numbers<[1], [0], [0], [1], [0, 0, 1, 1], [], []>} : vector<256x8xf32>, vector<8x8xf32>, vector<256x8xf32> -> vector<256x8xf32>
    %c0_21 = arith.constant 0 : index
    %c0_22 = arith.constant 0 : index
    %c0_23 = arith.constant 0 : index
    %30 = vector.load %arg7[%c0_21, %c0_22, %c0_23] : memref<1x1x8xf32, #tpu.memory_space<vmem>>, vector<1x1x8xf32>
    %31 = vector.shape_cast %30 : vector<1x1x8xf32> to vector<1x8xf32>
    %32 = vector.broadcast %31 : vector<1x8xf32> to vector<256x8xf32>
    %33 = arith.addf %29, %32 : vector<256x8xf32>
    %34 = arith.negf %33 : vector<256x8xf32>
    %35 = math.exp %34 : vector<256x8xf32>
    %cst_24 = arith.constant 1.000000e+00 : f32
    %36 = vector.broadcast %cst_24 : f32 to vector<256x8xf32>
    %37 = arith.addf %36, %35 : vector<256x8xf32>
    %38 = arith.divf %36, %37 : vector<256x8xf32>
    %39 = arith.mulf %33, %38 : vector<256x8xf32>
    %40 = vector.shape_cast %39 : vector<256x8xf32> to vector<16x16x8xf32>
    %c1 = arith.constant 1 : index
    %c1_25 = arith.constant 1 : index
    %c0_26 = arith.constant 0 : index
    %41 = vector.load %arg14[%c1, %c1_25, %c0_26] : memref<18x18x8xf32, #tpu.memory_space<vmem>>, vector<16x16x8xf32>
    tpu.vector_store %arg14[%c1, %c1_25, %c0_26], %40 {strides = array<i32>} : memref<18x18x8xf32, #tpu.memory_space<vmem>>, vector<16x16x8xf32>,
    %cst_27 = arith.constant 0.000000e+00 : f32
    %42 = vector.broadcast %cst_27 : f32 to vector<256x8xf32>
    %c0_28 = arith.constant 0 : index
    %c0_29 = arith.constant 0 : index
    %c0_30 = arith.constant 0 : index
    %43 = vector.load %arg14[%c0_28, %c0_29, %c0_30] : memref<18x18x8xf32, #tpu.memory_space<vmem>>, vector<16x16x8xf32>
    %44 = vector.shape_cast %43 : vector<16x16x8xf32> to vector<256x8xf32>
    %c0_31 = arith.constant 0 : index
    %c0_32 = arith.constant 0 : index
    %c0_33 = arith.constant 0 : index
    %c0_34 = arith.constant 0 : index
    %45 = vector.load %arg8[%c0_31, %c0_32, %c0_33, %c0_34] : memref<1x9x8x8xf32, #tpu.memory_space<vmem>>, vector<1x1x8x8xf32>
    %46 = vector.shape_cast %45 : vector<1x1x8x8xf32> to vector<8x8xf32>
    %cst_35 = arith.constant dense<0.000000e+00> : vector<256x8xf32>
    %47 = tpu.matmul %44, %46, %cst_35 {dimension_numbers = #tpu.dot_dimension_numbers<[1], [0], [0], [1], [0, 0, 1, 1], [], []>} : vector<256x8xf32>, vector<8x8xf32>, vector<256x8xf32> -> vector<256x8xf32>
    %48 = arith.addf %42, %47 : vector<256x8xf32>
    %c0_36 = arith.constant 0 : index
    %c1_37 = arith.constant 1 : index
    %c0_38 = arith.constant 0 : index
    %49 = vector.load %arg14[%c0_36, %c1_37, %c0_38] : memref<18x18x8xf32, #tpu.memory_space<vmem>>, vector<16x16x8xf32>
    %50 = vector.shape_cast %49 : vector<16x16x8xf32> to vector<256x8xf32>
    %c0_39 = arith.constant 0 : index
    %c1_40 = arith.constant 1 : index
    %c0_41 = arith.constant 0 : index
    %c0_42 = arith.constant 0 : index
    %51 = vector.load %arg8[%c0_39, %c1_40, %c0_41, %c0_42] : memref<1x9x8x8xf32, #tpu.memory_space<vmem>>, vector<1x1x8x8xf32>
    %52 = vector.shape_cast %51 : vector<1x1x8x8xf32> to vector<8x8xf32>
    %cst_43 = arith.constant dense<0.000000e+00> : vector<256x8xf32>
    %53 = tpu.matmul %50, %52, %cst_43 {dimension_numbers = #tpu.dot_dimension_numbers<[1], [0], [0], [1], [0, 0, 1, 1], [], []>} : vector<256x8xf32>, vector<8x8xf32>, vector<256x8xf32> -> vector<256x8xf32>
    %54 = arith.addf %48, %53 : vector<256x8xf32>
    %c0_44 = arith.constant 0 : index
    %c2 = arith.constant 2 : index
    %c0_45 = arith.constant 0 : index
    %55 = vector.load %arg14[%c0_44, %c2, %c0_45] : memref<18x18x8xf32, #tpu.memory_space<vmem>>, vector<16x16x8xf32>
    %56 = vector.shape_cast %55 : vector<16x16x8xf32> to vector<256x8xf32>
    %c0_46 = arith.constant 0 : index
    %c2_47 = arith.constant 2 : index
    %c0_48 = arith.constant 0 : index
    %c0_49 = arith.constant 0 : index
    %57 = vector.load %arg8[%c0_46, %c2_47, %c0_48, %c0_49] : memref<1x9x8x8xf32, #tpu.memory_space<vmem>>, vector<1x1x8x8xf32>
    %58 = vector.shape_cast %57 : vector<1x1x8x8xf32> to vector<8x8xf32>
    %cst_50 = arith.constant dense<0.000000e+00> : vector<256x8xf32>
    %59 = tpu.matmul %56, %58, %cst_50 {dimension_numbers = #tpu.dot_dimension_numbers<[1], [0], [0], [1], [0, 0, 1, 1], [], []>} : vector<256x8xf32>, vector<8x8xf32>, vector<256x8xf32> -> vector<256x8xf32>
    %60 = arith.addf %54, %59 : vector<256x8xf32>
    %c1_51 = arith.constant 1 : index
    %c0_52 = arith.constant 0 : index
    %c0_53 = arith.constant 0 : index
    %61 = vector.load %arg14[%c1_51, %c0_52, %c0_53] : memref<18x18x8xf32, #tpu.memory_space<vmem>>, vector<16x16x8xf32>
    %62 = vector.shape_cast %61 : vector<16x16x8xf32> to vector<256x8xf32>
    %c0_54 = arith.constant 0 : index
    %c3 = arith.constant 3 : index
    %c0_55 = arith.constant 0 : index
    %c0_56 = arith.constant 0 : index
    %63 = vector.load %arg8[%c0_54, %c3, %c0_55, %c0_56] : memref<1x9x8x8xf32, #tpu.memory_space<vmem>>, vector<1x1x8x8xf32>
    %64 = vector.shape_cast %63 : vector<1x1x8x8xf32> to vector<8x8xf32>
    %cst_57 = arith.constant dense<0.000000e+00> : vector<256x8xf32>
    %65 = tpu.matmul %62, %64, %cst_57 {dimension_numbers = #tpu.dot_dimension_numbers<[1], [0], [0], [1], [0, 0, 1, 1], [], []>} : vector<256x8xf32>, vector<8x8xf32>, vector<256x8xf32> -> vector<256x8xf32>
    %66 = arith.addf %60, %65 : vector<256x8xf32>
    %c1_58 = arith.constant 1 : index
    %c1_59 = arith.constant 1 : index
    %c0_60 = arith.constant 0 : index
    %67 = vector.load %arg14[%c1_58, %c1_59, %c0_60] : memref<18x18x8xf32, #tpu.memory_space<vmem>>, vector<16x16x8xf32>
    %68 = vector.shape_cast %67 : vector<16x16x8xf32> to vector<256x8xf32>
    %c0_61 = arith.constant 0 : index
    %c4 = arith.constant 4 : index
    %c0_62 = arith.constant 0 : index
    %c0_63 = arith.constant 0 : index
    %69 = vector.load %arg8[%c0_61, %c4, %c0_62, %c0_63] : memref<1x9x8x8xf32, #tpu.memory_space<vmem>>, vector<1x1x8x8xf32>
    %70 = vector.shape_cast %69 : vector<1x1x8x8xf32> to vector<8x8xf32>
    %cst_64 = arith.constant dense<0.000000e+00> : vector<256x8xf32>
    %71 = tpu.matmul %68, %70, %cst_64 {dimension_numbers = #tpu.dot_dimension_numbers<[1], [0], [0], [1], [0, 0, 1, 1], [], []>} : vector<256x8xf32>, vector<8x8xf32>, vector<256x8xf32> -> vector<256x8xf32>
    %72 = arith.addf %66, %71 : vector<256x8xf32>
    %c1_65 = arith.constant 1 : index
    %c2_66 = arith.constant 2 : index
    %c0_67 = arith.constant 0 : index
    %73 = vector.load %arg14[%c1_65, %c2_66, %c0_67] : memref<18x18x8xf32, #tpu.memory_space<vmem>>, vector<16x16x8xf32>
    %74 = vector.shape_cast %73 : vector<16x16x8xf32> to vector<256x8xf32>
    %c0_68 = arith.constant 0 : index
    %c5 = arith.constant 5 : index
    %c0_69 = arith.constant 0 : index
    %c0_70 = arith.constant 0 : index
    %75 = vector.load %arg8[%c0_68, %c5, %c0_69, %c0_70] : memref<1x9x8x8xf32, #tpu.memory_space<vmem>>, vector<1x1x8x8xf32>
    %76 = vector.shape_cast %75 : vector<1x1x8x8xf32> to vector<8x8xf32>
    %cst_71 = arith.constant dense<0.000000e+00> : vector<256x8xf32>
    %77 = tpu.matmul %74, %76, %cst_71 {dimension_numbers = #tpu.dot_dimension_numbers<[1], [0], [0], [1], [0, 0, 1, 1], [], []>} : vector<256x8xf32>, vector<8x8xf32>, vector<256x8xf32> -> vector<256x8xf32>
    %78 = arith.addf %72, %77 : vector<256x8xf32>
    %c2_72 = arith.constant 2 : index
    %c0_73 = arith.constant 0 : index
    %c0_74 = arith.constant 0 : index
    %79 = vector.load %arg14[%c2_72, %c0_73, %c0_74] : memref<18x18x8xf32, #tpu.memory_space<vmem>>, vector<16x16x8xf32>
    %80 = vector.shape_cast %79 : vector<16x16x8xf32> to vector<256x8xf32>
    %c0_75 = arith.constant 0 : index
    %c6 = arith.constant 6 : index
    %c0_76 = arith.constant 0 : index
    %c0_77 = arith.constant 0 : index
    %81 = vector.load %arg8[%c0_75, %c6, %c0_76, %c0_77] : memref<1x9x8x8xf32, #tpu.memory_space<vmem>>, vector<1x1x8x8xf32>
    %82 = vector.shape_cast %81 : vector<1x1x8x8xf32> to vector<8x8xf32>
    %cst_78 = arith.constant dense<0.000000e+00> : vector<256x8xf32>
    %83 = tpu.matmul %80, %82, %cst_78 {dimension_numbers = #tpu.dot_dimension_numbers<[1], [0], [0], [1], [0, 0, 1, 1], [], []>} : vector<256x8xf32>, vector<8x8xf32>, vector<256x8xf32> -> vector<256x8xf32>
    %84 = arith.addf %78, %83 : vector<256x8xf32>
    %c2_79 = arith.constant 2 : index
    %c1_80 = arith.constant 1 : index
    %c0_81 = arith.constant 0 : index
    %85 = vector.load %arg14[%c2_79, %c1_80, %c0_81] : memref<18x18x8xf32, #tpu.memory_space<vmem>>, vector<16x16x8xf32>
    %86 = vector.shape_cast %85 : vector<16x16x8xf32> to vector<256x8xf32>
    %c0_82 = arith.constant 0 : index
    %c7 = arith.constant 7 : index
    %c0_83 = arith.constant 0 : index
    %c0_84 = arith.constant 0 : index
    %87 = vector.load %arg8[%c0_82, %c7, %c0_83, %c0_84] : memref<1x9x8x8xf32, #tpu.memory_space<vmem>>, vector<1x1x8x8xf32>
    %88 = vector.shape_cast %87 : vector<1x1x8x8xf32> to vector<8x8xf32>
    %cst_85 = arith.constant dense<0.000000e+00> : vector<256x8xf32>
    %89 = tpu.matmul %86, %88, %cst_85 {dimension_numbers = #tpu.dot_dimension_numbers<[1], [0], [0], [1], [0, 0, 1, 1], [], []>} : vector<256x8xf32>, vector<8x8xf32>, vector<256x8xf32> -> vector<256x8xf32>
    %90 = arith.addf %84, %89 : vector<256x8xf32>
    %c2_86 = arith.constant 2 : index
    %c2_87 = arith.constant 2 : index
    %c0_88 = arith.constant 0 : index
    %91 = vector.load %arg14[%c2_86, %c2_87, %c0_88] : memref<18x18x8xf32, #tpu.memory_space<vmem>>, vector<16x16x8xf32>
    %92 = vector.shape_cast %91 : vector<16x16x8xf32> to vector<256x8xf32>
    %c0_89 = arith.constant 0 : index
    %c8 = arith.constant 8 : index
    %c0_90 = arith.constant 0 : index
    %c0_91 = arith.constant 0 : index
    %93 = vector.load %arg8[%c0_89, %c8, %c0_90, %c0_91] : memref<1x9x8x8xf32, #tpu.memory_space<vmem>>, vector<1x1x8x8xf32>
    %94 = vector.shape_cast %93 : vector<1x1x8x8xf32> to vector<8x8xf32>
    %cst_92 = arith.constant dense<0.000000e+00> : vector<256x8xf32>
    %95 = tpu.matmul %92, %94, %cst_92 {dimension_numbers = #tpu.dot_dimension_numbers<[1], [0], [0], [1], [0, 0, 1, 1], [], []>} : vector<256x8xf32>, vector<8x8xf32>, vector<256x8xf32> -> vector<256x8xf32>
    %96 = arith.addf %90, %95 : vector<256x8xf32>
    %c0_93 = arith.constant 0 : index
    %c0_94 = arith.constant 0 : index
    %c0_95 = arith.constant 0 : index
    %97 = vector.load %arg9[%c0_93, %c0_94, %c0_95] : memref<1x1x8xf32, #tpu.memory_space<vmem>>, vector<1x1x8xf32>
    %98 = vector.shape_cast %97 : vector<1x1x8xf32> to vector<1x8xf32>
    %99 = vector.broadcast %98 : vector<1x8xf32> to vector<256x8xf32>
    %100 = arith.addf %96, %99 : vector<256x8xf32>
    %101 = arith.negf %100 : vector<256x8xf32>
    %102 = math.exp %101 : vector<256x8xf32>
    %cst_96 = arith.constant 1.000000e+00 : f32
    %103 = vector.broadcast %cst_96 : f32 to vector<256x8xf32>
    %104 = arith.addf %103, %102 : vector<256x8xf32>
    %105 = arith.divf %103, %104 : vector<256x8xf32>
    %106 = arith.mulf %100, %105 : vector<256x8xf32>
    %107 = arith.addf %106, %24 : vector<256x8xf32>
    %108 = tpu.transpose %107, [1, 0] : vector<256x8xf32> -> vector<8x256xf32>
    %c0_97 = arith.constant 0 : index
    %c0_98 = arith.constant 0 : index
    %109 = vector.load %arg10[%c0_97, %c0_98] : memref<16x8xf32, #tpu.memory_space<vmem>>, vector<16x8xf32>
    %cst_99 = arith.constant dense<0.000000e+00> : vector<16x256xf32>
    %110 = tpu.matmul %109, %108, %cst_99 {dimension_numbers = #tpu.dot_dimension_numbers<[1], [0], [0], [1], [0, 0, 1, 1], [], []>} : vector<16x8xf32>, vector<8x256xf32>, vector<16x256xf32> -> vector<16x256xf32>
    %c0_100 = arith.constant 0 : index
    %c0_101 = arith.constant 0 : index
    %111 = vector.load %arg11[%c0_100, %c0_101] : memref<16x8xf32, #tpu.memory_space<vmem>>, vector<16x8xf32>
    %cst_102 = arith.constant dense<0.000000e+00> : vector<16x256xf32>
    %112 = tpu.matmul %111, %23, %cst_102 {dimension_numbers = #tpu.dot_dimension_numbers<[1], [0], [0], [1], [0, 0, 1, 1], [], []>} : vector<16x8xf32>, vector<8x256xf32>, vector<16x256xf32> -> vector<16x256xf32>
    %113 = arith.addf %110, %112 : vector<16x256xf32>
    %c0_103 = arith.constant 0 : index
    %c0_104 = arith.constant 0 : index
    %114 = vector.load %arg12[%c0_103, %c0_104] : memref<16x1xf32, #tpu.memory_space<vmem>>, vector<16x1xf32>
    %115 = vector.broadcast %114 : vector<16x1xf32> to vector<16x256xf32>
    %116 = arith.addf %113, %115 : vector<16x256xf32>
    %117 = arith.negf %116 : vector<16x256xf32>
    %118 = math.exp %117 : vector<16x256xf32>
    %cst_105 = arith.constant 1.000000e+00 : f32
    %119 = vector.broadcast %cst_105 : f32 to vector<16x256xf32>
    %120 = arith.addf %119, %118 : vector<16x256xf32>
    %121 = arith.divf %119, %120 : vector<16x256xf32>
    %122 = arith.mulf %116, %121 : vector<16x256xf32>
    %c0_106 = arith.constant 0 : index
    %c0_107 = arith.constant 0 : index
    %c0_108 = arith.constant 0 : index
    %123 = vector.load %arg13[%c0_106, %c0_107, %c0_108] : memref<1x16x256xf32, #tpu.memory_space<vmem>>, vector<1x16x256xf32>
    %124 = vector.shape_cast %123 : vector<1x16x256xf32> to vector<16x256xf32>
    %125 = vector.shape_cast %122 : vector<16x256xf32> to vector<1x16x256xf32>
    tpu.vector_store %arg13[%c0_106, %c0_107, %c0_108], %125 {strides = array<i32>} : memref<1x16x256xf32, #tpu.memory_space<vmem>>, vector<1x16x256xf32>,
    return
  }
  func.func @transform_0(%arg0: i32) -> (i32, i32, i32) {
    %c0_i32 = arith.constant 0 : i32
    %c0_i32_0 = arith.constant 0 : i32
    %c0_i32_1 = arith.constant 0 : i32
    return %arg0, %c0_i32, %c0_i32_0 : i32, i32, i32
  }
  func.func @transform_1(%arg0: i32) -> (i32, i32) {
    %c0_i32 = arith.constant 0 : i32
    %c0_i32_0 = arith.constant 0 : i32
    %c0_i32_1 = arith.constant 0 : i32
    return %c0_i32, %c0_i32_0 : i32, i32
  }
  func.func @transform_2(%arg0: i32) -> (i32, i32) {
    %c0_i32 = arith.constant 0 : i32
    %c0_i32_0 = arith.constant 0 : i32
    %c0_i32_1 = arith.constant 0 : i32
    return %c0_i32, %c0_i32_0 : i32, i32
  }
  func.func @transform_3(%arg0: i32) -> (i32, i32) {
    %c0_i32 = arith.constant 0 : i32
    %c0_i32_0 = arith.constant 0 : i32
    %c0_i32_1 = arith.constant 0 : i32
    return %c0_i32, %c0_i32_0 : i32, i32
  }
  func.func @transform_4(%arg0: i32) -> (i32, i32) {
    %c0_i32 = arith.constant 0 : i32
    %c0_i32_0 = arith.constant 0 : i32
    %c0_i32_1 = arith.constant 0 : i32
    return %c0_i32, %c0_i32_0 : i32, i32
  }
  func.func @transform_5(%arg0: i32) -> (i32, i32, i32) {
    %c0_i32 = arith.constant 0 : i32
    %c0_i32_0 = arith.constant 0 : i32
    %c0_i32_1 = arith.constant 0 : i32
    %c0_i32_2 = arith.constant 0 : i32
    return %c0_i32, %c0_i32_0, %c0_i32_1 : i32, i32, i32
  }
  func.func @transform_6(%arg0: i32) -> (i32, i32, i32) {
    %c0_i32 = arith.constant 0 : i32
    %c0_i32_0 = arith.constant 0 : i32
    %c0_i32_1 = arith.constant 0 : i32
    %c0_i32_2 = arith.constant 0 : i32
    return %c0_i32, %c0_i32_0, %c0_i32_1 : i32, i32, i32
  }
  func.func @transform_7(%arg0: i32) -> (i32, i32, i32, i32) {
    %c0_i32 = arith.constant 0 : i32
    %c0_i32_0 = arith.constant 0 : i32
    %c0_i32_1 = arith.constant 0 : i32
    %c0_i32_2 = arith.constant 0 : i32
    %c0_i32_3 = arith.constant 0 : i32
    return %c0_i32, %c0_i32_0, %c0_i32_1, %c0_i32_2 : i32, i32, i32, i32
  }
  func.func @transform_8(%arg0: i32) -> (i32, i32, i32) {
    %c0_i32 = arith.constant 0 : i32
    %c0_i32_0 = arith.constant 0 : i32
    %c0_i32_1 = arith.constant 0 : i32
    %c0_i32_2 = arith.constant 0 : i32
    return %c0_i32, %c0_i32_0, %c0_i32_1 : i32, i32, i32
  }
  func.func @transform_9(%arg0: i32) -> (i32, i32) {
    %c0_i32 = arith.constant 0 : i32
    %c0_i32_0 = arith.constant 0 : i32
    %c0_i32_1 = arith.constant 0 : i32
    return %c0_i32, %c0_i32_0 : i32, i32
  }
  func.func @transform_10(%arg0: i32) -> (i32, i32) {
    %c0_i32 = arith.constant 0 : i32
    %c0_i32_0 = arith.constant 0 : i32
    %c0_i32_1 = arith.constant 0 : i32
    return %c0_i32, %c0_i32_0 : i32, i32
  }
  func.func @transform_11(%arg0: i32) -> (i32, i32) {
    %c0_i32 = arith.constant 0 : i32
    %c0_i32_0 = arith.constant 0 : i32
    %c0_i32_1 = arith.constant 0 : i32
    return %c0_i32, %c0_i32_0 : i32, i32
  }
  func.func @transform_12(%arg0: i32) -> (i32, i32, i32) {
    %c0_i32 = arith.constant 0 : i32
    %c0_i32_0 = arith.constant 0 : i32
    %c0_i32_1 = arith.constant 0 : i32
    return %arg0, %c0_i32, %c0_i32_0 : i32, i32, i32
  }
}

</mosaic_0001>

<llo_original>
// kernel: tpu_custom_call.1
$region0: #{tpu_custom_call.1}
  #allocation0 [shape = 'u32[]', space=smem, size = 0x4, offset = 0x4, fixed_abs, tag = 'smem constant byte address 0x4 - core index']
  #allocation1 [shape = 'u32[144,128]{1,0:T(1,128)}', space=vmem, size = 0x12000, scoped, tag = 'internal scratch']
  #allocation2 [shape = 'f32[18,18,8]{2,1,0:T(8,128)}', space=vmem, size = 0x36000, scoped, tag = 'scratch operand']
  %s0 = inlined_call_operand.vmem [shape: f32[2,16,256], index: 0, kind: input, shape index: {}]
  %s1 = inlined_call_operand.vmem [shape: f32[8,16], index: 1, kind: input, shape index: {}]
  %s2 = inlined_call_operand.vmem [shape: f32[8,1], index: 2, kind: input, shape index: {}]
  %s3 = inlined_call_operand.vmem [shape: f32[8,16], index: 3, kind: input, shape index: {}]
  %s4 = inlined_call_operand.vmem [shape: f32[8,1], index: 4, kind: input, shape index: {}]
  %s5 = inlined_call_operand.vmem [shape: f32[1,8,8], index: 5, kind: input, shape index: {}]
  %s6 = inlined_call_operand.vmem [shape: f32[1,1,8], index: 6, kind: input, shape index: {}]
  %s7 = inlined_call_operand.vmem [shape: f32[1,9,8,8], index: 7, kind: input, shape index: {}]
  %s8 = inlined_call_operand.vmem [shape: f32[1,1,8], index: 8, kind: input, shape index: {}]
  %s9 = inlined_call_operand.vmem [shape: f32[16,8], index: 9, kind: input, shape index: {}]
  %s10 = inlined_call_operand.vmem [shape: f32[16,8], index: 10, kind: input, shape index: {}]
  %s11 = inlined_call_operand.vmem [shape: f32[16,1], index: 11, kind: input, shape index: {}]
  %s12 = inlined_call_operand.hbm [shape: f32[2,16,256], index: 12, kind: output, shape index: {}]
  %s13 = sld [smem:[#allocation0]]
  $region81: #{tpu_custom_call.1} parent=0
    _
  %s15 = ssub.s32 1, %s13
  %s16 = scalar_select 0, %s15, %s13
  $region1: #{tpu_custom_call.1} parent=0
    #allocation3 [shape = 'u8[32768]{0}', space=vmem, size = 0x8000, scoped, tag = 'output window, operand 0']
    #allocation4 [shape = 's32[2]{0}', space=sflag, size = 0x8, scoped, tag = 'scoped memory for tpu_custom_call.1']
    %17 = vsyncpa [#allocation4], 0
    %s18 = scalar_lea.sflag [#allocation4], 1
    %19 = vsyncpa %s18, 0
    loop: start=0, step=1, limit=4
    $region2: #{tpu_custom_call.1} parent=1 // loop_pre_header
      _
    $region3: #{tpu_custom_call.1} parent=1 // loop_header
      %s21 = sphi 0, %s25
      %p22 = scmp.ge.s32.totalorder %s21, 4
      %s31 = sphi 0, %s33
      %s34 = sphi 0, %s31
      %s35 = sphi 0, %s34
      %s51 = sphi 0, %s35
      %s55 = sphi 0, %s55
      %s57 = sphi 0, %s55
      %s58 = sphi 0, %s57
      %s72 = sphi 0, %s58
      %s76 = sphi 0, %s76
      %s78 = sphi 0, %s76
      %s79 = sphi 0, %s78
      %s93 = sphi 0, %s79
      %s97 = sphi 0, %s97
      %s99 = sphi 0, %s97
      %s100 = sphi 0, %s99
      %s114 = sphi 0, %s100
      %s118 = sphi 0, %s118
      %s120 = sphi 0, %s118
      %s121 = sphi 0, %s120
      %s135 = sphi 0, %s121
      %s139 = sphi 0, %s139
      %s141 = sphi 0, %s139
      %s142 = sphi 0, %s141
      %s156 = sphi 0, %s142
      %s160 = sphi 0, %s160
      %s162 = sphi 0, %s160
      %s163 = sphi 0, %s162
      %s177 = sphi 0, %s163
      %s181 = sphi 0, %s181
      %s183 = sphi 0, %s181
      %s184 = sphi 0, %s183
      %s198 = sphi 0, %s184
      %s202 = sphi 0, %s202
      %s204 = sphi 0, %s202
      %s205 = sphi 0, %s204
      %s219 = sphi 0, %s205
      %s223 = sphi 0, %s223
      %s225 = sphi 0, %s223
      %s226 = sphi 0, %s225
      %s240 = sphi 0, %s226
      %s244 = sphi 0, %s244
      %s246 = sphi 0, %s244
      %s247 = sphi 0, %s246
      %s261 = sphi 0, %s247
      %s265 = sphi 0, %s265
      %s267 = sphi 0, %s265
      %s268 = sphi 0, %s267
      %s282 = sphi 0, %s268
      %s288 = sphi 0, %s290
      %s291 = sphi 0, %s288
      %s292 = sphi 0, %s291
      %s308 = sphi 0, %s292
    $region4: #{tpu_custom_call.1} parent=1 // loop_header_branch
      %24 = sbr.rel (%p22) target = $region8
    $region5: #{tpu_custom_call.1} parent=1 // loop_body
      %s26 = ssub.s32 %s21, 1
      %s27 = ssub.s32 %s21, 2
      %s28 = sadd.s32 %s21, 1
      %s29 = ssub.s32 %s21, %s28
      %p30 = scmp.eq.s32.totalorder %s29, 0
      %s32 = sadd.s32 %s31, 1
      %s33 = scalar_select %p30, %s31, %s32
      %p36 = pneg %p30
      %p37 = scmp.eq.s32.totalorder %s21, 1
      %p38 = por %p36, %p37
      %p39 = scmp.ne.s32.totalorder %s31, %s34
      %p40 = scmp.eq.s32.totalorder %s21, 0
      %p41 = por %p39, %p40
      %p42 = scmp.ne.s32.totalorder %s31, %s34
      %p43 = scmp.eq.s32.totalorder %s26, 1
      %p44 = por %p42, %p43
      %p45 = scmp.ne.s32.totalorder %s34, %s35
      %p46 = scmp.eq.s32.totalorder %s26, 0
      %p47 = por %p45, %p46
      %p48 = scmp.ne.s32.totalorder %s34, %s35
      %p49 = scmp.eq.s32.totalorder %s27, 1
      %p50 = por %p48, %p49
      %p52 = scmp.ne.s32.totalorder %s35, %s51
      %p53 = scmp.eq.s32.totalorder %s27, 0
      %p54 = por %p52, %p53
      %s56 = sadd.s32 %s55, 1
      %p59 = scmp.eq.s32.totalorder %s21, 1
      %p60 = scmp.ne.s32.totalorder %s55, %s57
      %p61 = scmp.eq.s32.totalorder %s21, 0
      %p62 = por %p60, %p61
      %p63 = scmp.ne.s32.totalorder %s55, %s57
      %p64 = scmp.eq.s32.totalorder %s26, 1
      %p65 = por %p63, %p64
      %p66 = scmp.ne.s32.totalorder %s57, %s58
      %p67 = scmp.eq.s32.totalorder %s26, 0
      %p68 = por %p66, %p67
      %p69 = scmp.ne.s32.totalorder %s57, %s58
      %p70 = scmp.eq.s32.totalorder %s27, 1
      %p71 = por %p69, %p70
      %p73 = scmp.ne.s32.totalorder %s58, %s72
      %p74 = scmp.eq.s32.totalorder %s27, 0
      %p75 = por %p73, %p74
      %s77 = sadd.s32 %s76, 1
      %p80 = scmp.eq.s32.totalorder %s21, 1
      %p81 = scmp.ne.s32.totalorder %s76, %s78
      %p82 = scmp.eq.s32.totalorder %s21, 0
      %p83 = por %p81, %p82
      %p84 = scmp.ne.s32.totalorder %s76, %s78
      %p85 = scmp.eq.s32.totalorder %s26, 1
      %p86 = por %p84, %p85
      %p87 = scmp.ne.s32.totalorder %s78, %s79
      %p88 = scmp.eq.s32.totalorder %s26, 0
      %p89 = por %p87, %p88
      %p90 = scmp.ne.s32.totalorder %s78, %s79
      %p91 = scmp.eq.s32.totalorder %s27, 1
      %p92 = por %p90, %p91
      %p94 = scmp.ne.s32.totalorder %s79, %s93
      %p95 = scmp.eq.s32.totalorder %s27, 0
      %p96 = por %p94, %p95
      %s98 = sadd.s32 %s97, 1
      %p101 = scmp.eq.s32.totalorder %s21, 1
      %p102 = scmp.ne.s32.totalorder %s97, %s99
      %p103 = scmp.eq.s32.totalorder %s21, 0
      %p104 = por %p102, %p103
      %p105 = scmp.ne.s32.totalorder %s97, %s99
      %p106 = scmp.eq.s32.totalorder %s26, 1
      %p107 = por %p105, %p106
      %p108 = scmp.ne.s32.totalorder %s99, %s100
      %p109 = scmp.eq.s32.totalorder %s26, 0
      %p110 = por %p108, %p109
      %p111 = scmp.ne.s32.totalorder %s99, %s100
      %p112 = scmp.eq.s32.totalorder %s27, 1
      %p113 = por %p111, %p112
      %p115 = scmp.ne.s32.totalorder %s100, %s114
      %p116 = scmp.eq.s32.totalorder %s27, 0
      %p117 = por %p115, %p116
      %s119 = sadd.s32 %s118, 1
      %p122 = scmp.eq.s32.totalorder %s21, 1
      %p123 = scmp.ne.s32.totalorder %s118, %s120
      %p124 = scmp.eq.s32.totalorder %s21, 0
      %p125 = por %p123, %p124
      %p126 = scmp.ne.s32.totalorder %s118, %s120
      %p127 = scmp.eq.s32.totalorder %s26, 1
      %p128 = por %p126, %p127
      %p129 = scmp.ne.s32.totalorder %s120, %s121
      %p130 = scmp.eq.s32.totalorder %s26, 0
      %p131 = por %p129, %p130
      %p132 = scmp.ne.s32.totalorder %s120, %s121
      %p133 = scmp.eq.s32.totalorder %s27, 1
      %p134 = por %p132, %p133
      %p136 = scmp.ne.s32.totalorder %s121, %s135
      %p137 = scmp.eq.s32.totalorder %s27, 0
      %p138 = por %p136, %p137
      %s140 = sadd.s32 %s139, 1
      %p143 = scmp.eq.s32.totalorder %s21, 1
      %p144 = scmp.ne.s32.totalorder %s139, %s141
      %p145 = scmp.eq.s32.totalorder %s21, 0
      %p146 = por %p144, %p145
      %p147 = scmp.ne.s32.totalorder %s139, %s141
      %p148 = scmp.eq.s32.totalorder %s26, 1
      %p149 = por %p147, %p148
      %p150 = scmp.ne.s32.totalorder %s141, %s142
      %p151 = scmp.eq.s32.totalorder %s26, 0
      %p152 = por %p150, %p151
      %p153 = scmp.ne.s32.totalorder %s141, %s142
      %p154 = scmp.eq.s32.totalorder %s27, 1
      %p155 = por %p153, %p154
      %p157 = scmp.ne.s32.totalorder %s142, %s156
      %p158 = scmp.eq.s32.totalorder %s27, 0
      %p159 = por %p157, %p158
      %s161 = sadd.s32 %s160, 1
      %p164 = scmp.eq.s32.totalorder %s21, 1
      %p165 = scmp.ne.s32.totalorder %s160, %s162
      %p166 = scmp.eq.s32.totalorder %s21, 0
      %p167 = por %p165, %p166
      %p168 = scmp.ne.s32.totalorder %s160, %s162
      %p169 = scmp.eq.s32.totalorder %s26, 1
      %p170 = por %p168, %p169
      %p171 = scmp.ne.s32.totalorder %s162, %s163
      %p172 = scmp.eq.s32.totalorder %s26, 0
      %p173 = por %p171, %p172
      %p174 = scmp.ne.s32.totalorder %s162, %s163
      %p175 = scmp.eq.s32.totalorder %s27, 1
      %p176 = por %p174, %p175
      %p178 = scmp.ne.s32.totalorder %s163, %s177
      %p179 = scmp.eq.s32.totalorder %s27, 0
      %p180 = por %p178, %p179
      %s182 = sadd.s32 %s181, 1
      %p185 = scmp.eq.s32.totalorder %s21, 1
      %p186 = scmp.ne.s32.totalorder %s181, %s183
      %p187 = scmp.eq.s32.totalorder %s21, 0
      %p188 = por %p186, %p187
      %p189 = scmp.ne.s32.totalorder %s181, %s183
      %p190 = scmp.eq.s32.totalorder %s26, 1
      %p191 = por %p189, %p190
      %p192 = scmp.ne.s32.totalorder %s183, %s184
      %p193 = scmp.eq.s32.totalorder %s26, 0
      %p194 = por %p192, %p193
      %p195 = scmp.ne.s32.totalorder %s183, %s184
      %p196 = scmp.eq.s32.totalorder %s27, 1
      %p197 = por %p195, %p196
      %p199 = scmp.ne.s32.totalorder %s184, %s198
      %p200 = scmp.eq.s32.totalorder %s27, 0
      %p201 = por %p199, %p200
      %s203 = sadd.s32 %s202, 1
      %p206 = scmp.eq.s32.totalorder %s21, 1
      %p207 = scmp.ne.s32.totalorder %s202, %s204
      %p208 = scmp.eq.s32.totalorder %s21, 0
      %p209 = por %p207, %p208
      %p210 = scmp.ne.s32.totalorder %s202, %s204
      %p211 = scmp.eq.s32.totalorder %s26, 1
      %p212 = por %p210, %p211
      %p213 = scmp.ne.s32.totalorder %s204, %s205
      %p214 = scmp.eq.s32.totalorder %s26, 0
      %p215 = por %p213, %p214
      %p216 = scmp.ne.s32.totalorder %s204, %s205
      %p217 = scmp.eq.s32.totalorder %s27, 1
      %p218 = por %p216, %p217
      %p220 = scmp.ne.s32.totalorder %s205, %s219
      %p221 = scmp.eq.s32.totalorder %s27, 0
      %p222 = por %p220, %p221
      %s224 = sadd.s32 %s223, 1
      %p227 = scmp.eq.s32.totalorder %s21, 1
      %p228 = scmp.ne.s32.totalorder %s223, %s225
      %p229 = scmp.eq.s32.totalorder %s21, 0
      %p230 = por %p228, %p229
      %p231 = scmp.ne.s32.totalorder %s223, %s225
      %p232 = scmp.eq.s32.totalorder %s26, 1
      %p233 = por %p231, %p232
      %p234 = scmp.ne.s32.totalorder %s225, %s226
      %p235 = scmp.eq.s32.totalorder %s26, 0
      %p236 = por %p234, %p235
      %p237 = scmp.ne.s32.totalorder %s225, %s226
      %p238 = scmp.eq.s32.totalorder %s27, 1
      %p239 = por %p237, %p238
      %p241 = scmp.ne.s32.totalorder %s226, %s240
      %p242 = scmp.eq.s32.totalorder %s27, 0
      %p243 = por %p241, %p242
      %s245 = sadd.s32 %s244, 1
      %p248 = scmp.eq.s32.totalorder %s21, 1
      %p249 = scmp.ne.s32.totalorder %s244, %s246
      %p250 = scmp.eq.s32.totalorder %s21, 0
      %p251 = por %p249, %p250
      %p252 = scmp.ne.s32.totalorder %s244, %s246
      %p253 = scmp.eq.s32.totalorder %s26, 1
      %p254 = por %p252, %p253
      %p255 = scmp.ne.s32.totalorder %s246, %s247
      %p256 = scmp.eq.s32.totalorder %s26, 0
      %p257 = por %p255, %p256
      %p258 = scmp.ne.s32.totalorder %s246, %s247
      %p259 = scmp.eq.s32.totalorder %s27, 1
      %p260 = por %p258, %p259
      %p262 = scmp.ne.s32.totalorder %s247, %s261
      %p263 = scmp.eq.s32.totalorder %s27, 0
      %p264 = por %p262, %p263
      %s266 = sadd.s32 %s265, 1
      %p269 = scmp.eq.s32.totalorder %s21, 1
      %p270 = scmp.ne.s32.totalorder %s265, %s267
      %p271 = scmp.eq.s32.totalorder %s21, 0
      %p272 = por %p270, %p271
      %p273 = scmp.ne.s32.totalorder %s265, %s267
      %p274 = scmp.eq.s32.totalorder %s26, 1
      %p275 = por %p273, %p274
      %p276 = scmp.ne.s32.totalorder %s267, %s268
      %p277 = scmp.eq.s32.totalorder %s26, 0
      %p278 = por %p276, %p277
      %p279 = scmp.ne.s32.totalorder %s267, %s268
      %p280 = scmp.eq.s32.totalorder %s27, 1
      %p281 = por %p279, %p280
      %p283 = scmp.ne.s32.totalorder %s268, %s282
      %p284 = scmp.eq.s32.totalorder %s27, 0
      %p285 = por %p283, %p284
      %s286 = ssub.s32 %s21, %s28
      %p287 = scmp.eq.s32.totalorder %s286, 0
      %s289 = sadd.s32 %s288, 1
      %s290 = scalar_select %p287, %s288, %s289
      %p293 = pneg %p287
      %p294 = scmp.eq.s32.totalorder %s21, 1
      %p295 = por %p293, %p294
      %p296 = scmp.ne.s32.totalorder %s288, %s291
      %p297 = scmp.eq.s32.totalorder %s21, 0
      %p298 = por %p296, %p297
      %p299 = scmp.ne.s32.totalorder %s288, %s291
      %p300 = scmp.eq.s32.totalorder %s26, 1
      %p301 = por %p299, %p300
      %p302 = scmp.ne.s32.totalorder %s291, %s292
      %p303 = scmp.eq.s32.totalorder %s26, 0
      %p304 = por %p302, %p303
      %p305 = scmp.ne.s32.totalorder %s291, %s292
      %p306 = scmp.eq.s32.totalorder %s27, 1
      %p307 = por %p305, %p306
      %p309 = scmp.ne.s32.totalorder %s292, %s308
      %p310 = scmp.eq.s32.totalorder %s27, 0
      %p311 = por %p309, %p310
      %p312 = scmp.le.s32.totalorder 1, %s21
      %p313 = scmp.lt.s32.totalorder %s21, 3
      %p314 = pnand %p312, %p313
      %p315 = pneg %p314
      // Predicated region
      $region9: #{tpu_custom_call.1} parent=5 // pred_check
        _
      $region10: #{tpu_custom_call.1} parent=5 // pred_check_branch
        %317 = sbr.rel (%p314) target = $region12
      $region11: #{tpu_custom_call.1} parent=5 // pred_region
        %s318 = ssub.s32 %s21, 1
        // Predicated region
        $region13: #{tpu_custom_call.1} parent=11 // pred_check
          %p319 = pneg %p68
        $region14: #{tpu_custom_call.1} parent=11 // pred_check_branch
          %321 = sbr.rel (%p319) target = $region16
        $region15: #{tpu_custom_call.1} parent=11 // pred_region
          _
        $region16: #{tpu_custom_call.1} parent=11 // pred_fallthru
          _
        // Predicated region
        $region17: #{tpu_custom_call.1} parent=11 // pred_check
          %p322 = pneg %p89
        $region18: #{tpu_custom_call.1} parent=11 // pred_check_branch
          %324 = sbr.rel (%p322) target = $region20
        $region19: #{tpu_custom_call.1} parent=11 // pred_region
          _
        $region20: #{tpu_custom_call.1} parent=11 // pred_fallthru
          _
        // Predicated region
        $region21: #{tpu_custom_call.1} parent=11 // pred_check
          %p325 = pneg %p110
        $region22: #{tpu_custom_call.1} parent=11 // pred_check_branch
          %327 = sbr.rel (%p325) target = $region24
        $region23: #{tpu_custom_call.1} parent=11 // pred_region
          _
        $region24: #{tpu_custom_call.1} parent=11 // pred_fallthru
          _
        // Predicated region
        $region25: #{tpu_custom_call.1} parent=11 // pred_check
          %p328 = pneg %p131
        $region26: #{tpu_custom_call.1} parent=11 // pred_check_branch
          %330 = sbr.rel (%p328) target = $region28
        $region27: #{tpu_custom_call.1} parent=11 // pred_region
          _
        $region28: #{tpu_custom_call.1} parent=11 // pred_fallthru
          _
        // Predicated region
        $region29: #{tpu_custom_call.1} parent=11 // pred_check
          %p331 = pneg %p152
        $region30: #{tpu_custom_call.1} parent=11 // pred_check_branch
          %333 = sbr.rel (%p331) target = $region32
        $region31: #{tpu_custom_call.1} parent=11 // pred_region
          _
        $region32: #{tpu_custom_call.1} parent=11 // pred_fallthru
          _
        // Predicated region
        $region33: #{tpu_custom_call.1} parent=11 // pred_check
          %p334 = pneg %p173
        $region34: #{tpu_custom_call.1} parent=11 // pred_check_branch
          %336 = sbr.rel (%p334) target = $region36
        $region35: #{tpu_custom_call.1} parent=11 // pred_region
          _
        $region36: #{tpu_custom_call.1} parent=11 // pred_fallthru
          _
        // Predicated region
        $region37: #{tpu_custom_call.1} parent=11 // pred_check
          %p337 = pneg %p194
        $region38: #{tpu_custom_call.1} parent=11 // pred_check_branch
          %339 = sbr.rel (%p337) target = $region40
        $region39: #{tpu_custom_call.1} parent=11 // pred_region
          _
        $region40: #{tpu_custom_call.1} parent=11 // pred_fallthru
          _
        // Predicated region
        $region41: #{tpu_custom_call.1} parent=11 // pred_check
          %p340 = pneg %p215
        $region42: #{tpu_custom_call.1} parent=11 // pred_check_branch
          %342 = sbr.rel (%p340) target = $region44
        $region43: #{tpu_custom_call.1} parent=11 // pred_region
          _
        $region44: #{tpu_custom_call.1} parent=11 // pred_fallthru
          _
        // Predicated region
        $region45: #{tpu_custom_call.1} parent=11 // pred_check
          %p343 = pneg %p236
        $region46: #{tpu_custom_call.1} parent=11 // pred_check_branch
          %345 = sbr.rel (%p343) target = $region48
        $region47: #{tpu_custom_call.1} parent=11 // pred_region
          _
        $region48: #{tpu_custom_call.1} parent=11 // pred_fallthru
          _
        // Predicated region
        $region49: #{tpu_custom_call.1} parent=11 // pred_check
          %p346 = pneg %p257
        $region50: #{tpu_custom_call.1} parent=11 // pred_check_branch
          %348 = sbr.rel (%p346) target = $region52
        $region51: #{tpu_custom_call.1} parent=11 // pred_region
          _
        $region52: #{tpu_custom_call.1} parent=11 // pred_fallthru
          _
        // Predicated region
        $region53: #{tpu_custom_call.1} parent=11 // pred_check
          %p349 = pneg %p278
        $region54: #{tpu_custom_call.1} parent=11 // pred_check_branch
          %351 = sbr.rel (%p349) target = $region56
        $region55: #{tpu_custom_call.1} parent=11 // pred_region
          _
        $region56: #{tpu_custom_call.1} parent=11 // pred_fallthru
          _
      $region12: #{tpu_custom_call.1} parent=5 // pred_fallthru
        _
      %p352 = scmp.lt.s32.totalorder %s21, 2
      // Predicated region
      $region57: #{tpu_custom_call.1} parent=5 // pred_check
        %p353 = pneg %p352
      $region58: #{tpu_custom_call.1} parent=5 // pred_check_branch
        %355 = sbr.rel (%p353) target = $region60
      $region59: #{tpu_custom_call.1} parent=5 // pred_region
        // Predicated region
        $region61: #{tpu_custom_call.1} parent=59 // pred_check
          %p356 = pneg %p41
        $region62: #{tpu_custom_call.1} parent=59 // pred_check_branch
          %358 = sbr.rel (%p356) target = $region64
        $region63: #{tpu_custom_call.1} parent=59 // pred_region
          %p359 = scmp.lt.s32.totalorder %s21, 1
          %s360 = scalar_select %p359, %s21, 1
          %s361 = smul.addr %s360, 4
          %s362 = smul.addr %s361, 8
          %s363 = scalar_lea.vmem %s0, %s362
        $region64: #{tpu_custom_call.1} parent=59 // pred_fallthru
          _
      $region60: #{tpu_custom_call.1} parent=5 // pred_fallthru
        _
      %p364 = scmp.le.s32.totalorder 1, %s21
      %p365 = scmp.lt.s32.totalorder %s21, 3
      %p366 = pnand %p364, %p365
      %p367 = pneg %p366
      // Predicated region
      $region65: #{tpu_custom_call.1} parent=5 // pred_check
        _
      $region66: #{tpu_custom_call.1} parent=5 // pred_check_branch
        %369 = sbr.rel (%p366) target = $region68
      $region67: #{tpu_custom_call.1} parent=5 // pred_region
        %s370 = ssub.s32 %s21, 1
        %p371 = scmp.lt.s32.totalorder %s26, 1
        %s372 = scalar_select %p371, %s26, 1
        %s373 = smul.addr %s372, 4
        %s374 = smul.addr %s373, 8
        %s375 = scalar_lea.vmem %s0, %s374
        %p376 = pneg %p47
        %p377 = pneg %p44
        %p378 = pneg %p68
        %p379 = pneg %p65
        %p380 = pneg %p89
        %p381 = pneg %p86
        %p382 = pneg %p110
        %p383 = pneg %p107
        %p384 = pneg %p131
        %p385 = pneg %p128
        %p386 = pneg %p152
        %p387 = pneg %p149
        %p388 = pneg %p173
        %p389 = pneg %p170
        %p390 = pneg %p194
        %p391 = pneg %p191
        %p392 = pneg %p215
        %p393 = pneg %p212
        %p394 = pneg %p236
        %p395 = pneg %p233
        %p396 = pneg %p257
        %p397 = pneg %p254
        %p398 = pneg %p278
        %p399 = pneg %p275
        %p400 = pneg %p304
        %p401 = pneg %p301
        %s402 = sand.u32 %s291, 1
        %s403 = scalar_lea.sflag [#allocation4], %s402
        %s404 = sand.u32 %s291, 1
        %s405 = smul.addr %s404, 32
        %s406 = scalar_lea.vmem [#allocation3], %s405
        %p407 = scmp.lt.s32.totalorder %s26, 1
        %s408 = scalar_select %p407, %s26, 1
        %s409 = smul.addr %s408, 4
        %s410 = smul.addr %s409, 8
        %s411 = scalar_lea.vmem %s0, %s410
        %v412 = vld [vmem:[%s411] sm:$0xff]
        %v413 = vld [vmem:[%s411 + $0x8] sm:$0xff]
        %v414 = vld [vmem:[%s411 + $0x10] sm:$0xff]
        %v415 = vld [vmem:[%s411 + $0x18] sm:$0xff]
        %v416 = vld [vmem:[%s1] sm:$0xff]
        %v417 = vld [vmem:[%s2] sm:$0xff]
        %419 = vset.pattern.permute.xlu0 0
        %420 = vperm.xlu0 %419, %v417
        %v421 = vpop.permute.xlu0 %420
        %vm423 = vcmask 130048
        %v425 = vsel %vm423, %v416, 0
        %427 = vmatprep.subr.mxu0 0.0
        %428 = vmatpush1.msra.mxu0 0.0
        %429 = vmatprep.subr.mxu0 0.0
        %430 = vmatpush1.msra.mxu0 0.0
        %431 = vmatprep.subr.mxu0 0.0
        %432 = vmatpush1.msra.mxu0 0.0
        %433 = vmatprep.subr.mxu0 0.0
        %434 = vmatpush1.msra.mxu0 0.0
        %435 = vmatprep.subr.mxu0 0.0
        %436 = vmatpush1.msra.mxu0 0.0
        %437 = vmatprep.subr.mxu0 0.0
        %438 = vmatpush1.msra.mxu0 0.0
        %439 = vmatprep.subr.mxu0 0.0
        %440 = vmatpush1.msra.mxu0 0.0
        %441 = vmatprep.subr.mxu0 0.0
        %442 = vmatpush1.msra.mxu0 0.0
        %443 = vmatprep.subr.mxu0 0.0
        %444 = vmatpush1.msra.mxu0 0.0
        %445 = vmatprep.subr.mxu0 0.0
        %446 = vmatpush1.msra.mxu0 0.0
        %447 = vmatprep.subr.mxu0 0.0
        %448 = vmatpush1.msra.mxu0 0.0
        %449 = vmatprep.subr.mxu0 0.0
        %450 = vmatpush1.msra.mxu0 0.0
        %451 = vmatprep.subr.mxu0 0.0
        %452 = vmatpush1.msra.mxu0 0.0
        %453 = vmatprep.subr.mxu0 0.0
        %454 = vmatpush1.msra.mxu0 0.0
        %455 = vmatprep.subr.mxu0 %v415
        %456 = vmatpush1.msra.mxu0 %v414
        %457 = vmatprep.subr.mxu0 %v413
        %458 = vmatpush1.msra.mxu0 %v412
        %459 = vmatprep.subr.mxu0 0.0
        %460 = vmatpush2.msra.mxu0 0.0
        %461 = vmatprep.subr.mxu0 0.0
        %462 = vmatpush2.msra.mxu0 0.0
        %463 = vmatprep.subr.mxu0 0.0
        %464 = vmatpush2.msra.mxu0 0.0
        %465 = vmatprep.subr.mxu0 0.0
        %466 = vmatpush2.msra.mxu0 0.0
        %467 = vmatprep.subr.mxu0 0.0
        %468 = vmatpush2.msra.mxu0 0.0
        %469 = vmatprep.subr.mxu0 0.0
        %470 = vmatpush2.msra.mxu0 0.0
        %471 = vmatprep.subr.mxu0 0.0
        %472 = vmatpush2.msra.mxu0 0.0
        %473 = vmatprep.subr.mxu0 0.0
        %474 = vmatpush2.msra.mxu0 0.0
        %475 = vmatprep.subr.mxu0 0.0
        %476 = vmatpush2.msra.mxu0 0.0
        %477 = vmatprep.subr.mxu0 0.0
        %478 = vmatpush2.msra.mxu0 0.0
        %479 = vmatprep.subr.mxu0 0.0
        %480 = vmatpush2.msra.mxu0 0.0
        %481 = vmatprep.subr.mxu0 0.0
        %482 = vmatpush2.msra.mxu0 0.0
        %483 = vmatprep.subr.mxu0 0.0
        %484 = vmatpush2.msra.mxu0 0.0
        %485 = vmatprep.subr.mxu0 0.0
        %486 = vmatpush2.msra.mxu0 0.0
        %487 = vmatprep.subr.mxu0 0.0
        %488 = vmatpush2.msra.mxu0 0.0
        %489 = vmatprep.subr.mxu0 0.0
        %490 = vmatpush2.msra.mxu0 0.0
        %491 = vmatprep.mubr.f32.mxu0 0.0
        %492 = vmatmul.mubr.f32.gmra.mxu0 %v425
        %v493 = vpop.f32.mrf.mxu0
        %v494 = vadd.f32 %v421, %v493
        %v495 = vpop.f32.mrf.mxu0
        %v496 = vadd.f32 %v421, %v495
        %497 = vdwg.mxu0
        %v498 = vxor.u32 %v494, 2147483648
        %v499 = vxor.u32 %v496, 2147483648
        %v500 = vmul.f32 %v498, 1.442695
        %v501 = vpow.pop %v500
        %v502 = vmul.f32 %v499, 1.442695
        %v503 = vpow.pop %v502
        %v504 = vadd.f32 %v501, 1.0
        %v505 = vadd.f32 %v503, 1.0
        %v506 = vrcp.pop %v504
        %v507 = vmul.f32 1.0, %v506
        %v508 = vrcp.pop %v505
        %v509 = vmul.f32 1.0, %v508
        %v510 = vmul.f32 %v494, %v507
        %v511 = vmul.f32 %v496, %v509
        %v512 = vld [vmem:[%s3] sm:$0xff]
        %v513 = vld [vmem:[%s4] sm:$0xff]
        %515 = vset.pattern.permute.xlu0 0
        %516 = vperm.xlu0 %515, %v513
        %v517 = vpop.permute.xlu0 %516
        %v520 = vsel %vm423, %v512, 0
        %522 = vmatprep.subr.mxu0 0.0
        %523 = vmatpush1.msra.mxu0 0.0
        %524 = vmatprep.subr.mxu0 0.0
        %525 = vmatpush1.msra.mxu0 0.0
        %526 = vmatprep.subr.mxu0 0.0
        %527 = vmatpush1.msra.mxu0 0.0
        %528 = vmatprep.subr.mxu0 0.0
        %529 = vmatpush1.msra.mxu0 0.0
        %530 = vmatprep.subr.mxu0 0.0
        %531 = vmatpush1.msra.mxu0 0.0
        %532 = vmatprep.subr.mxu0 0.0
        %533 = vmatpush1.msra.mxu0 0.0
        %534 = vmatprep.subr.mxu0 0.0
        %535 = vmatpush1.msra.mxu0 0.0
        %536 = vmatprep.subr.mxu0 0.0
        %537 = vmatpush1.msra.mxu0 0.0
        %538 = vmatprep.subr.mxu0 0.0
        %539 = vmatpush1.msra.mxu0 0.0
        %540 = vmatprep.subr.mxu0 0.0
        %541 = vmatpush1.msra.mxu0 0.0
        %542 = vmatprep.subr.mxu0 0.0
        %543 = vmatpush1.msra.mxu0 0.0
        %544 = vmatprep.subr.mxu0 0.0
        %545 = vmatpush1.msra.mxu0 0.0
        %546 = vmatprep.subr.mxu0 0.0
        %547 = vmatpush1.msra.mxu0 0.0
        %548 = vmatprep.subr.mxu0 0.0
        %549 = vmatpush1.msra.mxu0 0.0
        %550 = vmatprep.subr.mxu0 %v415
        %551 = vmatpush1.msra.mxu0 %v414
        %552 = vmatprep.subr.mxu0 %v413
        %553 = vmatpush1.msra.mxu0 %v412
        %554 = vmatprep.subr.mxu0 0.0
        %555 = vmatpush2.msra.mxu0 0.0
        %556 = vmatprep.subr.mxu0 0.0
        %557 = vmatpush2.msra.mxu0 0.0
        %558 = vmatprep.subr.mxu0 0.0
        %559 = vmatpush2.msra.mxu0 0.0
        %560 = vmatprep.subr.mxu0 0.0
        %561 = vmatpush2.msra.mxu0 0.0
        %562 = vmatprep.subr.mxu0 0.0
        %563 = vmatpush2.msra.mxu0 0.0
        %564 = vmatprep.subr.mxu0 0.0
        %565 = vmatpush2.msra.mxu0 0.0
        %566 = vmatprep.subr.mxu0 0.0
        %567 = vmatpush2.msra.mxu0 0.0
        %568 = vmatprep.subr.mxu0 0.0
        %569 = vmatpush2.msra.mxu0 0.0
        %570 = vmatprep.subr.mxu0 0.0
        %571 = vmatpush2.msra.mxu0 0.0
        %572 = vmatprep.subr.mxu0 0.0
        %573 = vmatpush2.msra.mxu0 0.0
        %574 = vmatprep.subr.mxu0 0.0
        %575 = vmatpush2.msra.mxu0 0.0
        %576 = vmatprep.subr.mxu0 0.0
        %577 = vmatpush2.msra.mxu0 0.0
        %578 = vmatprep.subr.mxu0 0.0
        %579 = vmatpush2.msra.mxu0 0.0
        %580 = vmatprep.subr.mxu0 0.0
        %581 = vmatpush2.msra.mxu0 0.0
        %582 = vmatprep.subr.mxu0 0.0
        %583 = vmatpush2.msra.mxu0 0.0
        %584 = vmatprep.subr.mxu0 0.0
        %585 = vmatpush2.msra.mxu0 0.0
        %586 = vmatprep.mubr.f32.mxu0 0.0
        %587 = vmatmul.mubr.f32.gmra.mxu0 %v520
        %v588 = vpop.f32.mrf.mxu0
        %v589 = vadd.f32 %v517, %v588
        %v590 = vpop.f32.mrf.mxu0
        %v591 = vadd.f32 %v517, %v590
        %592 = vdwg.mxu0
        %v593 = vxor.u32 %v589, 2147483648
        %v594 = vxor.u32 %v591, 2147483648
        %v595 = vmul.f32 %v593, 1.442695
        %v596 = vpow.pop %v595
        %v597 = vmul.f32 %v594, 1.442695
        %v598 = vpow.pop %v597
        %v599 = vadd.f32 %v596, 1.0
        %v600 = vadd.f32 %v598, 1.0
        %v601 = vrcp.pop %v599
        %v602 = vmul.f32 1.0, %v601
        %v603 = vrcp.pop %v600
        %v604 = vmul.f32 1.0, %v603
        %v605 = vmul.f32 %v589, %v602
        %v606 = vmul.f32 %v591, %v604
        %607 = vxpose.xlu0.b32.start [1/16] %v510, 128
        %608 = vxpose.xlu0.b32.cont [2/16] 0.0, 128
        %609 = vxpose.xlu0.b32.cont [3/16] 0.0, 128
        %610 = vxpose.xlu0.b32.cont [4/16] 0.0, 128
        %611 = vxpose.xlu0.b32.cont [5/16] 0.0, 128
        %612 = vxpose.xlu0.b32.cont [6/16] 0.0, 128
        %613 = vxpose.xlu0.b32.cont [7/16] 0.0, 128
        %614 = vxpose.xlu0.b32.cont [8/16] 0.0, 128
        %615 = vxpose.xlu0.b32.cont [9/16] 0.0, 128
        %616 = vxpose.xlu0.b32.cont [10/16] 0.0, 128
        %617 = vxpose.xlu0.b32.cont [11/16] 0.0, 128
        %618 = vxpose.xlu0.b32.cont [12/16] 0.0, 128
        %619 = vxpose.xlu0.b32.cont [13/16] 0.0, 128
        %620 = vxpose.xlu0.b32.cont [14/16] 0.0, 128
        %621 = vxpose.xlu0.b32.cont [15/16] 0.0, 128
        %622 = vxpose.xlu0.b32.end [16/16] 0.0, 128
        %v623 = vpop.trf.xlu0
        %v624 = vpop.trf.xlu0
        %v625 = vpop.trf.xlu0
        %v626 = vpop.trf.xlu0
        %v627 = vpop.trf.xlu0
        %v628 = vpop.trf.xlu0
        %v629 = vpop.trf.xlu0
        %v630 = vpop.trf.xlu0
        %v631 = vpop.trf.xlu0
        %v632 = vpop.trf.xlu0
        %v633 = vpop.trf.xlu0
        %v634 = vpop.trf.xlu0
        %v635 = vpop.trf.xlu0
        %v636 = vpop.trf.xlu0
        %v637 = vpop.trf.xlu0
        %v638 = vpop.trf.xlu0
        %639 = vxpose.xlu0.b32.start [1/16] %v511, 128
        %640 = vxpose.xlu0.b32.cont [2/16] 0.0, 128
        %641 = vxpose.xlu0.b32.cont [3/16] 0.0, 128
        %642 = vxpose.xlu0.b32.cont [4/16] 0.0, 128
        %643 = vxpose.xlu0.b32.cont [5/16] 0.0, 128
        %644 = vxpose.xlu0.b32.cont [6/16] 0.0, 128
        %645 = vxpose.xlu0.b32.cont [7/16] 0.0, 128
        %646 = vxpose.xlu0.b32.cont [8/16] 0.0, 128
        %647 = vxpose.xlu0.b32.cont [9/16] 0.0, 128
        %648 = vxpose.xlu0.b32.cont [10/16] 0.0, 128
        %649 = vxpose.xlu0.b32.cont [11/16] 0.0, 128
        %650 = vxpose.xlu0.b32.cont [12/16] 0.0, 128
        %651 = vxpose.xlu0.b32.cont [13/16] 0.0, 128
        %652 = vxpose.xlu0.b32.cont [14/16] 0.0, 128
        %653 = vxpose.xlu0.b32.cont [15/16] 0.0, 128
        %654 = vxpose.xlu0.b32.end [16/16] 0.0, 128
        %v655 = vpop.trf.xlu0
        %v656 = vpop.trf.xlu0
        %v657 = vpop.trf.xlu0
        %v658 = vpop.trf.xlu0
        %v659 = vpop.trf.xlu0
        %v660 = vpop.trf.xlu0
        %v661 = vpop.trf.xlu0
        %v662 = vpop.trf.xlu0
        %v663 = vpop.trf.xlu0
        %v664 = vpop.trf.xlu0
        %v665 = vpop.trf.xlu0
        %v666 = vpop.trf.xlu0
        %v667 = vpop.trf.xlu0
        %v668 = vpop.trf.xlu0
        %v669 = vpop.trf.xlu0
        %v670 = vpop.trf.xlu0
        %vm671 = vcmask 64512
        %672 = vst.msk [vmem:[#allocation2] sm:$0xff] %vm671, 0.0
        %673 = vst.msk [vmem:[#allocation2 + $0x8] sm:$0xff] %vm671, 0.0
        %vm674 = vcmask 58368
        %675 = vst.msk [vmem:[#allocation2 + $0x10] sm:$0x3] %vm674, 0.0
        %676 = vst.msk [vmem:[#allocation2 + $0x18] sm:$0xff] %vm671, 0.0
        %677 = vst.msk [vmem:[#allocation2 + $0x20] sm:$0xff] %vm671, 0.0
        %678 = vst.msk [vmem:[#allocation2 + $0x28] sm:$0x3] %vm674, 0.0
        %679 = vst.msk [vmem:[#allocation2 + $0x30] sm:$0xff] %vm671, 0.0
        %680 = vst.msk [vmem:[#allocation2 + $0x38] sm:$0xff] %vm671, 0.0
        %681 = vst.msk [vmem:[#allocation2 + $0x40] sm:$0x3] %vm674, 0.0
        %682 = vst.msk [vmem:[#allocation2 + $0x48] sm:$0xff] %vm671, 0.0
        %683 = vst.msk [vmem:[#allocation2 + $0x50] sm:$0xff] %vm671, 0.0
        %684 = vst.msk [vmem:[#allocation2 + $0x58] sm:$0x3] %vm674, 0.0
        %685 = vst.msk [vmem:[#allocation2 + $0x60] sm:$0xff] %vm671, 0.0
        %686 = vst.msk [vmem:[#allocation2 + $0x68] sm:$0xff] %vm671, 0.0
        %687 = vst.msk [vmem:[#allocation2 + $0x70] sm:$0x3] %vm674, 0.0
        %688 = vst.msk [vmem:[#allocation2 + $0x78] sm:$0xff] %vm671, 0.0
        %689 = vst.msk [vmem:[#allocation2 + $0x80] sm:$0xff] %vm671, 0.0
        %690 = vst.msk [vmem:[#allocation2 + $0x88] sm:$0x3] %vm674, 0.0
        %691 = vst.msk [vmem:[#allocation2 + $0x90] sm:$0xff] %vm671, 0.0
        %692 = vst.msk [vmem:[#allocation2 + $0x98] sm:$0xff] %vm671, 0.0
        %693 = vst.msk [vmem:[#allocation2 + $0xa0] sm:$0x3] %vm674, 0.0
        %694 = vst.msk [vmem:[#allocation2 + $0xa8] sm:$0xff] %vm671, 0.0
        %695 = vst.msk [vmem:[#allocation2 + $0xb0] sm:$0xff] %vm671, 0.0
        %696 = vst.msk [vmem:[#allocation2 + $0xb8] sm:$0x3] %vm674, 0.0
        %697 = vst.msk [vmem:[#allocation2 + $0xc0] sm:$0xff] %vm671, 0.0
        %698 = vst.msk [vmem:[#allocation2 + $0xc8] sm:$0xff] %vm671, 0.0
        %699 = vst.msk [vmem:[#allocation2 + $0xd0] sm:$0x3] %vm674, 0.0
        %700 = vst.msk [vmem:[#allocation2 + $0xd8] sm:$0xff] %vm671, 0.0
        %701 = vst.msk [vmem:[#allocation2 + $0xe0] sm:$0xff] %vm671, 0.0
        %702 = vst.msk [vmem:[#allocation2 + $0xe8] sm:$0x3] %vm674, 0.0
        %703 = vst.msk [vmem:[#allocation2 + $0xf0] sm:$0xff] %vm671, 0.0
        %704 = vst.msk [vmem:[#allocation2 + $0xf8] sm:$0xff] %vm671, 0.0
        %705 = vst.msk [vmem:[#allocation2 + $0x100] sm:$0x3] %vm674, 0.0
        %706 = vst.msk [vmem:[#allocation2 + $0x108] sm:$0xff] %vm671, 0.0
        %707 = vst.msk [vmem:[#allocation2 + $0x110] sm:$0xff] %vm671, 0.0
        %708 = vst.msk [vmem:[#allocation2 + $0x118] sm:$0x3] %vm674, 0.0
        %709 = vst.msk [vmem:[#allocation2 + $0x120] sm:$0xff] %vm671, 0.0
        %710 = vst.msk [vmem:[#allocation2 + $0x128] sm:$0xff] %vm671, 0.0
        %711 = vst.msk [vmem:[#allocation2 + $0x130] sm:$0x3] %vm674, 0.0
        %712 = vst.msk [vmem:[#allocation2 + $0x138] sm:$0xff] %vm671, 0.0
        %713 = vst.msk [vmem:[#allocation2 + $0x140] sm:$0xff] %vm671, 0.0
        %714 = vst.msk [vmem:[#allocation2 + $0x148] sm:$0x3] %vm674, 0.0
        %715 = vst.msk [vmem:[#allocation2 + $0x150] sm:$0xff] %vm671, 0.0
        %716 = vst.msk [vmem:[#allocation2 + $0x158] sm:$0xff] %vm671, 0.0
        %717 = vst.msk [vmem:[#allocation2 + $0x160] sm:$0x3] %vm674, 0.0
        %718 = vst.msk [vmem:[#allocation2 + $0x168] sm:$0xff] %vm671, 0.0
        %719 = vst.msk [vmem:[#allocation2 + $0x170] sm:$0xff] %vm671, 0.0
        %720 = vst.msk [vmem:[#allocation2 + $0x178] sm:$0x3] %vm674, 0.0
        %721 = vst.msk [vmem:[#allocation2 + $0x180] sm:$0xff] %vm671, 0.0
        %722 = vst.msk [vmem:[#allocation2 + $0x188] sm:$0xff] %vm671, 0.0
        %723 = vst.msk [vmem:[#allocation2 + $0x190] sm:$0x3] %vm674, 0.0
        %724 = vst.msk [vmem:[#allocation2 + $0x198] sm:$0xff] %vm671, 0.0
        %725 = vst.msk [vmem:[#allocation2 + $0x1a0] sm:$0xff] %vm671, 0.0
        %726 = vst.msk [vmem:[#allocation2 + $0x1a8] sm:$0x3] %vm674, 0.0
        %v727 = vld [vmem:[%s5] sm:$0xff]
        %v728 = vld [vmem:[%s6] sm:$0x1]
        %v730 = vlaneseq
        %v731 = vshrl.u32 %v730, 7
        %v732 = vsub.s32 0, %v731
        %v733 = vrot.slane %v728, %v732
        %v736 = vsel %vm671, %v623, 0
        %v739 = vsel %vm671, %v624, 0
        %v742 = vsel %vm671, %v625, 0
        %v745 = vsel %vm671, %v626, 0
        %v748 = vsel %vm671, %v627, 0
        %v751 = vsel %vm671, %v628, 0
        %v754 = vsel %vm671, %v629, 0
        %v757 = vsel %vm671, %v630, 0
        %v760 = vsel %vm671, %v631, 0
        %v763 = vsel %vm671, %v632, 0
        %v766 = vsel %vm671, %v633, 0
        %v769 = vsel %vm671, %v634, 0
        %v772 = vsel %vm671, %v635, 0
        %v775 = vsel %vm671, %v636, 0
        %v778 = vsel %vm671, %v637, 0
        %v781 = vsel %vm671, %v638, 0
        %v784 = vsel %vm671, %v655, 0
        %v787 = vsel %vm671, %v656, 0
        %v790 = vsel %vm671, %v657, 0
        %v793 = vsel %vm671, %v658, 0
        %v796 = vsel %vm671, %v659, 0
        %v799 = vsel %vm671, %v660, 0
        %v802 = vsel %vm671, %v661, 0
        %v805 = vsel %vm671, %v662, 0
        %v808 = vsel %vm671, %v663, 0
        %v811 = vsel %vm671, %v664, 0
        %v814 = vsel %vm671, %v665, 0
        %v817 = vsel %vm671, %v666, 0
        %v820 = vsel %vm671, %v667, 0
        %v823 = vsel %vm671, %v668, 0
        %v826 = vsel %vm671, %v669, 0
        %v829 = vsel %vm671, %v670, 0
        %831 = vmatprep.subr.mxu0 0.0
        %832 = vmatpush1.msra.mxu0 0.0
        %833 = vmatprep.subr.mxu0 0.0
        %834 = vmatpush1.msra.mxu0 0.0
        %835 = vmatprep.subr.mxu0 0.0
        %836 = vmatpush1.msra.mxu0 0.0
        %837 = vmatprep.subr.mxu0 0.0
        %838 = vmatpush1.msra.mxu0 0.0
        %839 = vmatprep.subr.mxu0 0.0
        %840 = vmatpush1.msra.mxu0 0.0
        %841 = vmatprep.subr.mxu0 0.0
        %842 = vmatpush1.msra.mxu0 0.0
        %843 = vmatprep.subr.mxu0 0.0
        %844 = vmatpush1.msra.mxu0 0.0
        %845 = vmatprep.subr.mxu0 0.0
        %846 = vmatpush1.msra.mxu0 0.0
        %847 = vmatprep.subr.mxu0 0.0
        %848 = vmatpush1.msra.mxu0 0.0
        %849 = vmatprep.subr.mxu0 0.0
        %850 = vmatpush1.msra.mxu0 0.0
        %851 = vmatprep.subr.mxu0 0.0
        %852 = vmatpush1.msra.mxu0 0.0
        %853 = vmatprep.subr.mxu0 0.0
        %854 = vmatpush1.msra.mxu0 0.0
        %855 = vmatprep.subr.mxu0 0.0
        %856 = vmatpush1.msra.mxu0 0.0
        %857 = vmatprep.subr.mxu0 0.0
        %858 = vmatpush1.msra.mxu0 0.0
        %859 = vmatprep.subr.mxu0 0.0
        %860 = vmatpush1.msra.mxu0 0.0
        %861 = vmatprep.subr.mxu0 0.0
        %862 = vmatpush1.msra.mxu0 %v727
        %863 = vmatprep.subr.mxu0 0.0
        %864 = vmatpush2.msra.mxu0 0.0
        %865 = vmatprep.subr.mxu0 0.0
        %866 = vmatpush2.msra.mxu0 0.0
        %867 = vmatprep.subr.mxu0 0.0
        %868 = vmatpush2.msra.mxu0 0.0
        %869 = vmatprep.subr.mxu0 0.0
        %870 = vmatpush2.msra.mxu0 0.0
        %871 = vmatprep.subr.mxu0 0.0
        %872 = vmatpush2.msra.mxu0 0.0
        %873 = vmatprep.subr.mxu0 0.0
        %874 = vmatpush2.msra.mxu0 0.0
        %875 = vmatprep.subr.mxu0 0.0
        %876 = vmatpush2.msra.mxu0 0.0
        %877 = vmatprep.subr.mxu0 0.0
        %878 = vmatpush2.msra.mxu0 0.0
        %879 = vmatprep.subr.mxu0 0.0
        %880 = vmatpush2.msra.mxu0 0.0
        %881 = vmatprep.subr.mxu0 0.0
        %882 = vmatpush2.msra.mxu0 0.0
        %883 = vmatprep.subr.mxu0 0.0
        %884 = vmatpush2.msra.mxu0 0.0
        %885 = vmatprep.subr.mxu0 0.0
        %886 = vmatpush2.msra.mxu0 0.0
        %887 = vmatprep.subr.mxu0 0.0
        %888 = vmatpush2.msra.mxu0 0.0
        %889 = vmatprep.subr.mxu0 0.0
        %890 = vmatpush2.msra.mxu0 0.0
        %891 = vmatprep.subr.mxu0 0.0
        %892 = vmatpush2.msra.mxu0 0.0
        %893 = vmatprep.subr.mxu0 0.0
        %894 = vmatpush2.msra.mxu0 0.0
        %895 = vmatprep.mubr.f32.mxu0 0.0
        %896 = vmatmul.mubr.f32.gmra.mxu0 %v736
        %v897 = vpop.f32.mrf.mxu0
        %v898 = vadd.f32 %v733, %v897
        %v899 = vpop.f32.mrf.mxu0
        %900 = vmatprep.mubr.f32.mxu0 0.0
        %901 = vmatmul.mubr.f32.gmra.mxu0 %v739
        %v902 = vpop.f32.mrf.mxu0
        %v903 = vadd.f32 %v733, %v902
        %v904 = vpop.f32.mrf.mxu0
        %905 = vmatprep.mubr.f32.mxu0 0.0
        %906 = vmatmul.mubr.f32.gmra.mxu0 %v742
        %v907 = vpop.f32.mrf.mxu0
        %v908 = vadd.f32 %v733, %v907
        %v909 = vpop.f32.mrf.mxu0
        %910 = vmatprep.mubr.f32.mxu0 0.0
        %911 = vmatmul.mubr.f32.gmra.mxu0 %v745
        %v912 = vpop.f32.mrf.mxu0
        %v913 = vadd.f32 %v733, %v912
        %v914 = vpop.f32.mrf.mxu0
        %915 = vmatprep.mubr.f32.mxu0 0.0
        %916 = vmatmul.mubr.f32.gmra.mxu0 %v748
        %v917 = vpop.f32.mrf.mxu0
        %v918 = vadd.f32 %v733, %v917
        %v919 = vpop.f32.mrf.mxu0
        %920 = vmatprep.mubr.f32.mxu0 0.0
        %921 = vmatmul.mubr.f32.gmra.mxu0 %v751
        %v922 = vpop.f32.mrf.mxu0
        %v923 = vadd.f32 %v733, %v922
        %v924 = vpop.f32.mrf.mxu0
        %925 = vmatprep.mubr.f32.mxu0 0.0
        %926 = vmatmul.mubr.f32.gmra.mxu0 %v754
        %v927 = vpop.f32.mrf.mxu0
        %v928 = vadd.f32 %v733, %v927
        %v929 = vpop.f32.mrf.mxu0
        %930 = vmatprep.mubr.f32.mxu0 0.0
        %931 = vmatmul.mubr.f32.gmra.mxu0 %v757
        %v932 = vpop.f32.mrf.mxu0
        %v933 = vadd.f32 %v733, %v932
        %v934 = vpop.f32.mrf.mxu0
        %935 = vmatprep.mubr.f32.mxu0 0.0
        %936 = vmatmul.mubr.f32.gmra.mxu0 %v760
        %v937 = vpop.f32.mrf.mxu0
        %v938 = vadd.f32 %v733, %v937
        %v939 = vpop.f32.mrf.mxu0
        %940 = vmatprep.mubr.f32.mxu0 0.0
        %941 = vmatmul.mubr.f32.gmra.mxu0 %v763
        %v942 = vpop.f32.mrf.mxu0
        %v943 = vadd.f32 %v733, %v942
        %v944 = vpop.f32.mrf.mxu0
        %945 = vmatprep.mubr.f32.mxu0 0.0
        %946 = vmatmul.mubr.f32.gmra.mxu0 %v766
        %v947 = vpop.f32.mrf.mxu0
        %v948 = vadd.f32 %v733, %v947
        %v949 = vpop.f32.mrf.mxu0
        %950 = vmatprep.mubr.f32.mxu0 0.0
        %951 = vmatmul.mubr.f32.gmra.mxu0 %v769
        %v952 = vpop.f32.mrf.mxu0
        %v953 = vadd.f32 %v733, %v952
        %v954 = vpop.f32.mrf.mxu0
        %955 = vmatprep.mubr.f32.mxu0 0.0
        %956 = vmatmul.mubr.f32.gmra.mxu0 %v772
        %v957 = vpop.f32.mrf.mxu0
        %v958 = vadd.f32 %v733, %v957
        %v959 = vpop.f32.mrf.mxu0
        %960 = vmatprep.mubr.f32.mxu0 0.0
        %961 = vmatmul.mubr.f32.gmra.mxu0 %v775
        %v962 = vpop.f32.mrf.mxu0
        %v963 = vadd.f32 %v733, %v962
        %v964 = vpop.f32.mrf.mxu0
        %965 = vmatprep.mubr.f32.mxu0 0.0
        %966 = vmatmul.mubr.f32.gmra.mxu0 %v778
        %v967 = vpop.f32.mrf.mxu0
        %v968 = vadd.f32 %v733, %v967
        %v969 = vpop.f32.mrf.mxu0
        %970 = vmatprep.mubr.f32.mxu0 0.0
        %971 = vmatmul.mubr.f32.gmra.mxu0 %v781
        %v972 = vpop.f32.mrf.mxu0
        %v973 = vadd.f32 %v733, %v972
        %v974 = vpop.f32.mrf.mxu0
        %975 = vmatprep.mubr.f32.mxu0 0.0
        %976 = vmatmul.mubr.f32.gmra.mxu0 %v784
        %v977 = vpop.f32.mrf.mxu0
        %v978 = vadd.f32 %v733, %v977
        %v979 = vpop.f32.mrf.mxu0
        %980 = vmatprep.mubr.f32.mxu0 0.0
        %981 = vmatmul.mubr.f32.gmra.mxu0 %v787
        %v982 = vpop.f32.mrf.mxu0
        %v983 = vadd.f32 %v733, %v982
        %v984 = vpop.f32.mrf.mxu0
        %985 = vmatprep.mubr.f32.mxu0 0.0
        %986 = vmatmul.mubr.f32.gmra.mxu0 %v790
        %v987 = vpop.f32.mrf.mxu0
        %v988 = vadd.f32 %v733, %v987
        %v989 = vpop.f32.mrf.mxu0
        %990 = vmatprep.mubr.f32.mxu0 0.0
        %991 = vmatmul.mubr.f32.gmra.mxu0 %v793
        %v992 = vpop.f32.mrf.mxu0
        %v993 = vadd.f32 %v733, %v992
        %v994 = vpop.f32.mrf.mxu0
        %995 = vmatprep.mubr.f32.mxu0 0.0
        %996 = vmatmul.mubr.f32.gmra.mxu0 %v796
        %v997 = vpop.f32.mrf.mxu0
        %v998 = vadd.f32 %v733, %v997
        %v999 = vpop.f32.mrf.mxu0
        %1000 = vmatprep.mubr.f32.mxu0 0.0
        %1001 = vmatmul.mubr.f32.gmra.mxu0 %v799
        %v1002 = vpop.f32.mrf.mxu0
        %v1003 = vadd.f32 %v733, %v1002
        %v1004 = vpop.f32.mrf.mxu0
        %1005 = vmatprep.mubr.f32.mxu0 0.0
        %1006 = vmatmul.mubr.f32.gmra.mxu0 %v802
        %v1007 = vpop.f32.mrf.mxu0
        %v1008 = vadd.f32 %v733, %v1007
        %v1009 = vpop.f32.mrf.mxu0
        %1010 = vmatprep.mubr.f32.mxu0 0.0
        %1011 = vmatmul.mubr.f32.gmra.mxu0 %v805
        %v1012 = vpop.f32.mrf.mxu0
        %v1013 = vadd.f32 %v733, %v1012
        %v1014 = vpop.f32.mrf.mxu0
        %1015 = vmatprep.mubr.f32.mxu0 0.0
        %1016 = vmatmul.mubr.f32.gmra.mxu0 %v808
        %v1017 = vpop.f32.mrf.mxu0
        %v1018 = vadd.f32 %v733, %v1017
        %v1019 = vpop.f32.mrf.mxu0
        %1020 = vmatprep.mubr.f32.mxu0 0.0
        %1021 = vmatmul.mubr.f32.gmra.mxu0 %v811
        %v1022 = vpop.f32.mrf.mxu0
        %v1023 = vadd.f32 %v733, %v1022
        %v1024 = vpop.f32.mrf.mxu0
        %1025 = vmatprep.mubr.f32.mxu0 0.0
        %1026 = vmatmul.mubr.f32.gmra.mxu0 %v814
        %v1027 = vpop.f32.mrf.mxu0
        %v1028 = vadd.f32 %v733, %v1027
        %v1029 = vpop.f32.mrf.mxu0
        %1030 = vmatprep.mubr.f32.mxu0 0.0
        %1031 = vmatmul.mubr.f32.gmra.mxu0 %v817
        %v1032 = vpop.f32.mrf.mxu0
        %v1033 = vadd.f32 %v733, %v1032
        %v1034 = vpop.f32.mrf.mxu0
        %1035 = vmatprep.mubr.f32.mxu0 0.0
        %1036 = vmatmul.mubr.f32.gmra.mxu0 %v820
        %v1037 = vpop.f32.mrf.mxu0
        %v1038 = vadd.f32 %v733, %v1037
        %v1039 = vpop.f32.mrf.mxu0
        %1040 = vmatprep.mubr.f32.mxu0 0.0
        %1041 = vmatmul.mubr.f32.gmra.mxu0 %v823
        %v1042 = vpop.f32.mrf.mxu0
        %v1043 = vadd.f32 %v733, %v1042
        %v1044 = vpop.f32.mrf.mxu0
        %1045 = vmatprep.mubr.f32.mxu0 0.0
        %1046 = vmatmul.mubr.f32.gmra.mxu0 %v826
        %v1047 = vpop.f32.mrf.mxu0
        %v1048 = vadd.f32 %v733, %v1047
        %v1049 = vpop.f32.mrf.mxu0
        %1050 = vmatprep.mubr.f32.mxu0 0.0
        %1051 = vmatmul.mubr.f32.gmra.mxu0 %v829
        %v1052 = vpop.f32.mrf.mxu0
        %v1053 = vadd.f32 %v733, %v1052
        %v1054 = vpop.f32.mrf.mxu0
        %1055 = vdwg.mxu0
        %v1056 = vxor.u32 %v898, 2147483648
        %v1057 = vxor.u32 %v903, 2147483648
        %v1058 = vxor.u32 %v908, 2147483648
        %v1059 = vxor.u32 %v913, 2147483648
        %v1060 = vxor.u32 %v918, 2147483648
        %v1061 = vxor.u32 %v923, 2147483648
        %v1062 = vxor.u32 %v928, 2147483648
        %v1063 = vxor.u32 %v933, 2147483648
        %v1064 = vxor.u32 %v938, 2147483648
        %v1065 = vxor.u32 %v943, 2147483648
        %v1066 = vxor.u32 %v948, 2147483648
        %v1067 = vxor.u32 %v953, 2147483648
        %v1068 = vxor.u32 %v958, 2147483648
        %v1069 = vxor.u32 %v963, 2147483648
        %v1070 = vxor.u32 %v968, 2147483648
        %v1071 = vxor.u32 %v973, 2147483648
        %v1072 = vxor.u32 %v978, 2147483648
        %v1073 = vxor.u32 %v983, 2147483648
        %v1074 = vxor.u32 %v988, 2147483648
        %v1075 = vxor.u32 %v993, 2147483648
        %v1076 = vxor.u32 %v998, 2147483648
        %v1077 = vxor.u32 %v1003, 2147483648
        %v1078 = vxor.u32 %v1008, 2147483648
        %v1079 = vxor.u32 %v1013, 2147483648
        %v1080 = vxor.u32 %v1018, 2147483648
        %v1081 = vxor.u32 %v1023, 2147483648
        %v1082 = vxor.u32 %v1028, 2147483648
        %v1083 = vxor.u32 %v1033, 2147483648
        %v1084 = vxor.u32 %v1038, 2147483648
        %v1085 = vxor.u32 %v1043, 2147483648
        %v1086 = vxor.u32 %v1048, 2147483648
        %v1087 = vxor.u32 %v1053, 2147483648
        %v1088 = vmul.f32 %v1056, 1.442695
        %v1089 = vpow.pop %v1088
        %v1090 = vmul.f32 %v1057, 1.442695
        %v1091 = vpow.pop %v1090
        %v1092 = vmul.f32 %v1058, 1.442695
        %v1093 = vpow.pop %v1092
        %v1094 = vmul.f32 %v1059, 1.442695
        %v1095 = vpow.pop %v1094
        %v1096 = vmul.f32 %v1060, 1.442695
        %v1097 = vpow.pop %v1096
        %v1098 = vmul.f32 %v1061, 1.442695
        %v1099 = vpow.pop %v1098
        %v1100 = vmul.f32 %v1062, 1.442695
        %v1101 = vpow.pop %v1100
        %v1102 = vmul.f32 %v1063, 1.442695
        %v1103 = vpow.pop %v1102
        %v1104 = vmul.f32 %v1064, 1.442695
        %v1105 = vpow.pop %v1104
        %v1106 = vmul.f32 %v1065, 1.442695
        %v1107 = vpow.pop %v1106
        %v1108 = vmul.f32 %v1066, 1.442695
        %v1109 = vpow.pop %v1108
        %v1110 = vmul.f32 %v1067, 1.442695
        %v1111 = vpow.pop %v1110
        %v1112 = vmul.f32 %v1068, 1.442695
        %v1113 = vpow.pop %v1112
        %v1114 = vmul.f32 %v1069, 1.442695
        %v1115 = vpow.pop %v1114
        %v1116 = vmul.f32 %v1070, 1.442695
        %v1117 = vpow.pop %v1116
        %v1118 = vmul.f32 %v1071, 1.442695
        %v1119 = vpow.pop %v1118
        %v1120 = vmul.f32 %v1072, 1.442695
        %v1121 = vpow.pop %v1120
        %v1122 = vmul.f32 %v1073, 1.442695
        %v1123 = vpow.pop %v1122
        %v1124 = vmul.f32 %v1074, 1.442695
        %v1125 = vpow.pop %v1124
        %v1126 = vmul.f32 %v1075, 1.442695
        %v1127 = vpow.pop %v1126
        %v1128 = vmul.f32 %v1076, 1.442695
        %v1129 = vpow.pop %v1128
        %v1130 = vmul.f32 %v1077, 1.442695
        %v1131 = vpow.pop %v1130
        %v1132 = vmul.f32 %v1078, 1.442695
        %v1133 = vpow.pop %v1132
        %v1134 = vmul.f32 %v1079, 1.442695
        %v1135 = vpow.pop %v1134
        %v1136 = vmul.f32 %v1080, 1.442695
        %v1137 = vpow.pop %v1136
        %v1138 = vmul.f32 %v1081, 1.442695
        %v1139 = vpow.pop %v1138
        %v1140 = vmul.f32 %v1082, 1.442695
        %v1141 = vpow.pop %v1140
        %v1142 = vmul.f32 %v1083, 1.442695
        %v1143 = vpow.pop %v1142
        %v1144 = vmul.f32 %v1084, 1.442695
        %v1145 = vpow.pop %v1144
        %v1146 = vmul.f32 %v1085, 1.442695
        %v1147 = vpow.pop %v1146
        %v1148 = vmul.f32 %v1086, 1.442695
        %v1149 = vpow.pop %v1148
        %v1150 = vmul.f32 %v1087, 1.442695
        %v1151 = vpow.pop %v1150
        %v1152 = vadd.f32 %v1089, 1.0
        %v1153 = vadd.f32 %v1091, 1.0
        %v1154 = vadd.f32 %v1093, 1.0
        %v1155 = vadd.f32 %v1095, 1.0
        %v1156 = vadd.f32 %v1097, 1.0
        %v1157 = vadd.f32 %v1099, 1.0
        %v1158 = vadd.f32 %v1101, 1.0
        %v1159 = vadd.f32 %v1103, 1.0
        %v1160 = vadd.f32 %v1105, 1.0
        %v1161 = vadd.f32 %v1107, 1.0
        %v1162 = vadd.f32 %v1109, 1.0
        %v1163 = vadd.f32 %v1111, 1.0
        %v1164 = vadd.f32 %v1113, 1.0
        %v1165 = vadd.f32 %v1115, 1.0
        %v1166 = vadd.f32 %v1117, 1.0
        %v1167 = vadd.f32 %v1119, 1.0
        %v1168 = vadd.f32 %v1121, 1.0
        %v1169 = vadd.f32 %v1123, 1.0
        %v1170 = vadd.f32 %v1125, 1.0
        %v1171 = vadd.f32 %v1127, 1.0
        %v1172 = vadd.f32 %v1129, 1.0
        %v1173 = vadd.f32 %v1131, 1.0
        %v1174 = vadd.f32 %v1133, 1.0
        %v1175 = vadd.f32 %v1135, 1.0
        %v1176 = vadd.f32 %v1137, 1.0
        %v1177 = vadd.f32 %v1139, 1.0
        %v1178 = vadd.f32 %v1141, 1.0
        %v1179 = vadd.f32 %v1143, 1.0
        %v1180 = vadd.f32 %v1145, 1.0
        %v1181 = vadd.f32 %v1147, 1.0
        %v1182 = vadd.f32 %v1149, 1.0
        %v1183 = vadd.f32 %v1151, 1.0
        %v1184 = vrcp.pop %v1152
        %v1185 = vmul.f32 1.0, %v1184
        %v1186 = vrcp.pop %v1153
        %v1187 = vmul.f32 1.0, %v1186
        %v1188 = vrcp.pop %v1154
        %v1189 = vmul.f32 1.0, %v1188
        %v1190 = vrcp.pop %v1155
        %v1191 = vmul.f32 1.0, %v1190
        %v1192 = vrcp.pop %v1156
        %v1193 = vmul.f32 1.0, %v1192
        %v1194 = vrcp.pop %v1157
        %v1195 = vmul.f32 1.0, %v1194
        %v1196 = vrcp.pop %v1158
        %v1197 = vmul.f32 1.0, %v1196
        %v1198 = vrcp.pop %v1159
        %v1199 = vmul.f32 1.0, %v1198
        %v1200 = vrcp.pop %v1160
        %v1201 = vmul.f32 1.0, %v1200
        %v1202 = vrcp.pop %v1161
        %v1203 = vmul.f32 1.0, %v1202
        %v1204 = vrcp.pop %v1162
        %v1205 = vmul.f32 1.0, %v1204
        %v1206 = vrcp.pop %v1163
        %v1207 = vmul.f32 1.0, %v1206
        %v1208 = vrcp.pop %v1164
        %v1209 = vmul.f32 1.0, %v1208
        %v1210 = vrcp.pop %v1165
        %v1211 = vmul.f32 1.0, %v1210
        %v1212 = vrcp.pop %v1166
        %v1213 = vmul.f32 1.0, %v1212
        %v1214 = vrcp.pop %v1167
        %v1215 = vmul.f32 1.0, %v1214
        %v1216 = vrcp.pop %v1168
        %v1217 = vmul.f32 1.0, %v1216
        %v1218 = vrcp.pop %v1169
        %v1219 = vmul.f32 1.0, %v1218
        %v1220 = vrcp.pop %v1170
        %v1221 = vmul.f32 1.0, %v1220
        %v1222 = vrcp.pop %v1171
        %v1223 = vmul.f32 1.0, %v1222
        %v1224 = vrcp.pop %v1172
        %v1225 = vmul.f32 1.0, %v1224
        %v1226 = vrcp.pop %v1173
        %v1227 = vmul.f32 1.0, %v1226
        %v1228 = vrcp.pop %v1174
        %v1229 = vmul.f32 1.0, %v1228
        %v1230 = vrcp.pop %v1175
        %v1231 = vmul.f32 1.0, %v1230
        %v1232 = vrcp.pop %v1176
        %v1233 = vmul.f32 1.0, %v1232
        %v1234 = vrcp.pop %v1177
        %v1235 = vmul.f32 1.0, %v1234
        %v1236 = vrcp.pop %v1178
        %v1237 = vmul.f32 1.0, %v1236
        %v1238 = vrcp.pop %v1179
        %v1239 = vmul.f32 1.0, %v1238
        %v1240 = vrcp.pop %v1180
        %v1241 = vmul.f32 1.0, %v1240
        %v1242 = vrcp.pop %v1181
        %v1243 = vmul.f32 1.0, %v1242
        %v1244 = vrcp.pop %v1182
        %v1245 = vmul.f32 1.0, %v1244
        %v1246 = vrcp.pop %v1183
        %v1247 = vmul.f32 1.0, %v1246
        %v1248 = vmul.f32 %v898, %v1185
        %v1249 = vmul.f32 %v903, %v1187
        %v1250 = vmul.f32 %v908, %v1189
        %v1251 = vmul.f32 %v913, %v1191
        %v1252 = vmul.f32 %v918, %v1193
        %v1253 = vmul.f32 %v923, %v1195
        %v1254 = vmul.f32 %v928, %v1197
        %v1255 = vmul.f32 %v933, %v1199
        %v1256 = vmul.f32 %v938, %v1201
        %v1257 = vmul.f32 %v943, %v1203
        %v1258 = vmul.f32 %v948, %v1205
        %v1259 = vmul.f32 %v953, %v1207
        %v1260 = vmul.f32 %v958, %v1209
        %v1261 = vmul.f32 %v963, %v1211
        %v1262 = vmul.f32 %v968, %v1213
        %v1263 = vmul.f32 %v973, %v1215
        %v1264 = vmul.f32 %v978, %v1217
        %v1265 = vmul.f32 %v983, %v1219
        %v1266 = vmul.f32 %v988, %v1221
        %v1267 = vmul.f32 %v993, %v1223
        %v1268 = vmul.f32 %v998, %v1225
        %v1269 = vmul.f32 %v1003, %v1227
        %v1270 = vmul.f32 %v1008, %v1229
        %v1271 = vmul.f32 %v1013, %v1231
        %v1272 = vmul.f32 %v1018, %v1233
        %v1273 = vmul.f32 %v1023, %v1235
        %v1274 = vmul.f32 %v1028, %v1237
        %v1275 = vmul.f32 %v1033, %v1239
        %v1276 = vmul.f32 %v1038, %v1241
        %v1277 = vmul.f32 %v1043, %v1243
        %v1278 = vmul.f32 %v1048, %v1245
        %v1279 = vmul.f32 %v1053, %v1247
        %s1280 = scalar_lea.vmem [#allocation2], 24
        %1281 = vst.msk [vmem:[%s1280 + $0x1] sm:$0xff] %vm671, %v1248
        %1282 = vst.msk [vmem:[%s1280 + $0x9] sm:$0xff] %vm671, %v1249
        %1283 = vst.msk [vmem:[%s1280 + $0x19] sm:$0xff] %vm671, %v1250
        %1284 = vst.msk [vmem:[%s1280 + $0x21] sm:$0xff] %vm671, %v1251
        %1285 = vst.msk [vmem:[%s1280 + $0x31] sm:$0xff] %vm671, %v1252
        %1286 = vst.msk [vmem:[%s1280 + $0x39] sm:$0xff] %vm671, %v1253
        %1287 = vst.msk [vmem:[%s1280 + $0x49] sm:$0xff] %vm671, %v1254
        %1288 = vst.msk [vmem:[%s1280 + $0x51] sm:$0xff] %vm671, %v1255
        %1289 = vst.msk [vmem:[%s1280 + $0x61] sm:$0xff] %vm671, %v1256
        %1290 = vst.msk [vmem:[%s1280 + $0x69] sm:$0xff] %vm671, %v1257
        %1291 = vst.msk [vmem:[%s1280 + $0x79] sm:$0xff] %vm671, %v1258
        %1292 = vst.msk [vmem:[%s1280 + $0x81] sm:$0xff] %vm671, %v1259
        %1293 = vst.msk [vmem:[%s1280 + $0x91] sm:$0xff] %vm671, %v1260
        %1294 = vst.msk [vmem:[%s1280 + $0x99] sm:$0xff] %vm671, %v1261
        %1295 = vst.msk [vmem:[%s1280 + $0xa9] sm:$0xff] %vm671, %v1262
        %1296 = vst.msk [vmem:[%s1280 + $0xb1] sm:$0xff] %vm671, %v1263
        %1297 = vst.msk [vmem:[%s1280 + $0xc1] sm:$0xff] %vm671, %v1264
        %1298 = vst.msk [vmem:[%s1280 + $0xc9] sm:$0xff] %vm671, %v1265
        %1299 = vst.msk [vmem:[%s1280 + $0xd9] sm:$0xff] %vm671, %v1266
        %1300 = vst.msk [vmem:[%s1280 + $0xe1] sm:$0xff] %vm671, %v1267
        %1301 = vst.msk [vmem:[%s1280 + $0xf1] sm:$0xff] %vm671, %v1268
        %1302 = vst.msk [vmem:[%s1280 + $0xf9] sm:$0xff] %vm671, %v1269
        %1303 = vst.msk [vmem:[%s1280 + $0x109] sm:$0xff] %vm671, %v1270
        %1304 = vst.msk [vmem:[%s1280 + $0x111] sm:$0xff] %vm671, %v1271
        %1305 = vst.msk [vmem:[%s1280 + $0x121] sm:$0xff] %vm671, %v1272
        %1306 = vst.msk [vmem:[%s1280 + $0x129] sm:$0xff] %vm671, %v1273
        %1307 = vst.msk [vmem:[%s1280 + $0x139] sm:$0xff] %vm671, %v1274
        %1308 = vst.msk [vmem:[%s1280 + $0x141] sm:$0xff] %vm671, %v1275
        %1309 = vst.msk [vmem:[%s1280 + $0x151] sm:$0xff] %vm671, %v1276
        %1310 = vst.msk [vmem:[%s1280 + $0x159] sm:$0xff] %vm671, %v1277
        %1311 = vst.msk [vmem:[%s1280 + $0x169] sm:$0xff] %vm671, %v1278
        %1312 = vst.msk [vmem:[%s1280 + $0x171] sm:$0xff] %vm671, %v1279
        %v1313 = vld [vmem:[#allocation2] sm:$0xff]
        %v1314 = vld [vmem:[#allocation2 + $0x8] sm:$0xff]
        %v1315 = vld [vmem:[#allocation2 + $0x18] sm:$0xff]
        %v1316 = vld [vmem:[#allocation2 + $0x20] sm:$0xff]
        %v1317 = vld [vmem:[#allocation2 + $0x30] sm:$0xff]
        %v1318 = vld [vmem:[#allocation2 + $0x38] sm:$0xff]
        %v1319 = vld [vmem:[#allocation2 + $0x48] sm:$0xff]
        %v1320 = vld [vmem:[#allocation2 + $0x50] sm:$0xff]
        %v1321 = vld [vmem:[#allocation2 + $0x60] sm:$0xff]
        %v1322 = vld [vmem:[#allocation2 + $0x68] sm:$0xff]
        %v1323 = vld [vmem:[#allocation2 + $0x78] sm:$0xff]
        %v1324 = vld [vmem:[#allocation2 + $0x80] sm:$0xff]
        %v1325 = vld [vmem:[#allocation2 + $0x90] sm:$0xff]
        %v1326 = vld [vmem:[#allocation2 + $0x98] sm:$0xff]
        %v1327 = vld [vmem:[#allocation2 + $0xa8] sm:$0xff]
        %v1328 = vld [vmem:[#allocation2 + $0xb0] sm:$0xff]
        %v1329 = vld [vmem:[#allocation2 + $0xc0] sm:$0xff]
        %v1330 = vld [vmem:[#allocation2 + $0xc8] sm:$0xff]
        %v1331 = vld [vmem:[#allocation2 + $0xd8] sm:$0xff]
        %v1332 = vld [vmem:[#allocation2 + $0xe0] sm:$0xff]
        %v1333 = vld [vmem:[#allocation2 + $0xf0] sm:$0xff]
        %v1334 = vld [vmem:[#allocation2 + $0xf8] sm:$0xff]
        %v1335 = vld [vmem:[#allocation2 + $0x108] sm:$0xff]
        %v1336 = vld [vmem:[#allocation2 + $0x110] sm:$0xff]
        %v1337 = vld [vmem:[#allocation2 + $0x120] sm:$0xff]
        %v1338 = vld [vmem:[#allocation2 + $0x128] sm:$0xff]
        %v1339 = vld [vmem:[#allocation2 + $0x138] sm:$0xff]
        %v1340 = vld [vmem:[#allocation2 + $0x140] sm:$0xff]
        %v1341 = vld [vmem:[#allocation2 + $0x150] sm:$0xff]
        %v1342 = vld [vmem:[#allocation2 + $0x158] sm:$0xff]
        %v1343 = vld [vmem:[#allocation2 + $0x168] sm:$0xff]
        %v1344 = vld [vmem:[#allocation2 + $0x170] sm:$0xff]
        %v1345 = vld [vmem:[%s7] sm:$0xff]
        %v1346 = vld [vmem:[#allocation2 + $0x1] sm:$0xff]
        %v1347 = vld [vmem:[#allocation2 + $0x9] sm:$0xff]
        %v1348 = vld [vmem:[#allocation2 + $0x19] sm:$0xff]
        %v1349 = vld [vmem:[#allocation2 + $0x21] sm:$0xff]
        %v1350 = vld [vmem:[#allocation2 + $0x31] sm:$0xff]
        %v1351 = vld [vmem:[#allocation2 + $0x39] sm:$0xff]
        %v1352 = vld [vmem:[#allocation2 + $0x49] sm:$0xff]
        %v1353 = vld [vmem:[#allocation2 + $0x51] sm:$0xff]
        %v1354 = vld [vmem:[#allocation2 + $0x61] sm:$0xff]
        %v1355 = vld [vmem:[#allocation2 + $0x69] sm:$0xff]
        %v1356 = vld [vmem:[#allocation2 + $0x79] sm:$0xff]
        %v1357 = vld [vmem:[#allocation2 + $0x81] sm:$0xff]
        %v1358 = vld [vmem:[#allocation2 + $0x91] sm:$0xff]
        %v1359 = vld [vmem:[#allocation2 + $0x99] sm:$0xff]
        %v1360 = vld [vmem:[#allocation2 + $0xa9] sm:$0xff]
        %v1361 = vld [vmem:[#allocation2 + $0xb1] sm:$0xff]
        %v1362 = vld [vmem:[#allocation2 + $0xc1] sm:$0xff]
        %v1363 = vld [vmem:[#allocation2 + $0xc9] sm:$0xff]
        %v1364 = vld [vmem:[#allocation2 + $0xd9] sm:$0xff]
        %v1365 = vld [vmem:[#allocation2 + $0xe1] sm:$0xff]
        %v1366 = vld [vmem:[#allocation2 + $0xf1] sm:$0xff]
        %v1367 = vld [vmem:[#allocation2 + $0xf9] sm:$0xff]
        %v1368 = vld [vmem:[#allocation2 + $0x109] sm:$0xff]
        %v1369 = vld [vmem:[#allocation2 + $0x111] sm:$0xff]
        %v1370 = vld [vmem:[#allocation2 + $0x121] sm:$0xff]
        %v1371 = vld [vmem:[#allocation2 + $0x129] sm:$0xff]
        %v1372 = vld [vmem:[#allocation2 + $0x139] sm:$0xff]
        %v1373 = vld [vmem:[#allocation2 + $0x141] sm:$0xff]
        %v1374 = vld [vmem:[#allocation2 + $0x151] sm:$0xff]
        %v1375 = vld [vmem:[#allocation2 + $0x159] sm:$0xff]
        %v1376 = vld [vmem:[#allocation2 + $0x169] sm:$0xff]
        %v1377 = vld [vmem:[#allocation2 + $0x171] sm:$0xff]
        %s1378 = scalar_lea.vmem %s7, 8
        %v1379 = vld [vmem:[%s1378] sm:$0xff]
        %v1381 = vsel %vm671, %v1346, 0
        %v1384 = vsel %vm671, %v1347, 0
        %v1387 = vsel %vm671, %v1348, 0
        %v1390 = vsel %vm671, %v1349, 0
        %v1393 = vsel %vm671, %v1350, 0
        %v1396 = vsel %vm671, %v1351, 0
        %v1399 = vsel %vm671, %v1352, 0
        %v1402 = vsel %vm671, %v1353, 0
        %v1405 = vsel %vm671, %v1354, 0
        %v1408 = vsel %vm671, %v1355, 0
        %v1411 = vsel %vm671, %v1356, 0
        %v1414 = vsel %vm671, %v1357, 0
        %v1417 = vsel %vm671, %v1358, 0
        %v1420 = vsel %vm671, %v1359, 0
        %v1423 = vsel %vm671, %v1360, 0
        %v1426 = vsel %vm671, %v1361, 0
        %v1429 = vsel %vm671, %v1362, 0
        %v1432 = vsel %vm671, %v1363, 0
        %v1435 = vsel %vm671, %v1364, 0
        %v1438 = vsel %vm671, %v1365, 0
        %v1441 = vsel %vm671, %v1366, 0
        %v1444 = vsel %vm671, %v1367, 0
        %v1447 = vsel %vm671, %v1368, 0
        %v1450 = vsel %vm671, %v1369, 0
        %v1453 = vsel %vm671, %v1370, 0
        %v1456 = vsel %vm671, %v1371, 0
        %v1459 = vsel %vm671, %v1372, 0
        %v1462 = vsel %vm671, %v1373, 0
        %v1465 = vsel %vm671, %v1374, 0
        %v1468 = vsel %vm671, %v1375, 0
        %v1471 = vsel %vm671, %v1376, 0
        %v1474 = vsel %vm671, %v1377, 0
        %1476 = vmatprep.subr.mxu0 0.0
        %1477 = vmatpush1.msra.mxu0 0.0
        %1478 = vmatprep.subr.mxu0 0.0
        %1479 = vmatpush1.msra.mxu0 0.0
        %1480 = vmatprep.subr.mxu0 0.0
        %1481 = vmatpush1.msra.mxu0 0.0
        %1482 = vmatprep.subr.mxu0 0.0
        %1483 = vmatpush1.msra.mxu0 0.0
        %1484 = vmatprep.subr.mxu0 0.0
        %1485 = vmatpush1.msra.mxu0 0.0
        %1486 = vmatprep.subr.mxu0 0.0
        %1487 = vmatpush1.msra.mxu0 0.0
        %1488 = vmatprep.subr.mxu0 0.0
        %1489 = vmatpush1.msra.mxu0 0.0
        %1490 = vmatprep.subr.mxu0 0.0
        %1491 = vmatpush1.msra.mxu0 0.0
        %1492 = vmatprep.subr.mxu0 0.0
        %1493 = vmatpush1.msra.mxu0 0.0
        %1494 = vmatprep.subr.mxu0 0.0
        %1495 = vmatpush1.msra.mxu0 0.0
        %1496 = vmatprep.subr.mxu0 0.0
        %1497 = vmatpush1.msra.mxu0 0.0
        %1498 = vmatprep.subr.mxu0 0.0
        %1499 = vmatpush1.msra.mxu0 0.0
        %1500 = vmatprep.subr.mxu0 0.0
        %1501 = vmatpush1.msra.mxu0 0.0
        %1502 = vmatprep.subr.mxu0 0.0
        %1503 = vmatpush1.msra.mxu0 0.0
        %1504 = vmatprep.subr.mxu0 0.0
        %1505 = vmatpush1.msra.mxu0 0.0
        %1506 = vmatprep.subr.mxu0 0.0
        %1507 = vmatpush1.msra.mxu0 %v1379
        %1508 = vmatprep.subr.mxu0 0.0
        %1509 = vmatpush2.msra.mxu0 0.0
        %1510 = vmatprep.subr.mxu0 0.0
        %1511 = vmatpush2.msra.mxu0 0.0
        %1512 = vmatprep.subr.mxu0 0.0
        %1513 = vmatpush2.msra.mxu0 0.0
        %1514 = vmatprep.subr.mxu0 0.0
        %1515 = vmatpush2.msra.mxu0 0.0
        %1516 = vmatprep.subr.mxu0 0.0
        %1517 = vmatpush2.msra.mxu0 0.0
        %1518 = vmatprep.subr.mxu0 0.0
        %1519 = vmatpush2.msra.mxu0 0.0
        %1520 = vmatprep.subr.mxu0 0.0
        %1521 = vmatpush2.msra.mxu0 0.0
        %1522 = vmatprep.subr.mxu0 0.0
        %1523 = vmatpush2.msra.mxu0 0.0
        %1524 = vmatprep.subr.mxu0 0.0
        %1525 = vmatpush2.msra.mxu0 0.0
        %1526 = vmatprep.subr.mxu0 0.0
        %1527 = vmatpush2.msra.mxu0 0.0
        %1528 = vmatprep.subr.mxu0 0.0
        %1529 = vmatpush2.msra.mxu0 0.0
        %1530 = vmatprep.subr.mxu0 0.0
        %1531 = vmatpush2.msra.mxu0 0.0
        %1532 = vmatprep.subr.mxu0 0.0
        %1533 = vmatpush2.msra.mxu0 0.0
        %1534 = vmatprep.subr.mxu0 0.0
        %1535 = vmatpush2.msra.mxu0 0.0
        %1536 = vmatprep.subr.mxu0 0.0
        %1537 = vmatpush2.msra.mxu0 0.0
        %1538 = vmatprep.subr.mxu0 0.0
        %1539 = vmatpush2.msra.mxu0 0.0
        %1540 = vmatprep.mubr.f32.mxu0 0.0
        %1541 = vmatmul.mubr.f32.gmra.mxu0 %v1381
        %v1542 = vpop.f32.mrf.mxu0
        %v1543 = vadd.f32 0.0, %v1542
        %v1544 = vpop.f32.mrf.mxu0
        %1545 = vmatprep.mubr.f32.mxu0 0.0
        %1546 = vmatmul.mubr.f32.gmra.mxu0 %v1384
        %v1547 = vpop.f32.mrf.mxu0
        %v1548 = vadd.f32 0.0, %v1547
        %v1549 = vpop.f32.mrf.mxu0
        %1550 = vmatprep.mubr.f32.mxu0 0.0
        %1551 = vmatmul.mubr.f32.gmra.mxu0 %v1387
        %v1552 = vpop.f32.mrf.mxu0
        %v1553 = vadd.f32 0.0, %v1552
        %v1554 = vpop.f32.mrf.mxu0
        %1555 = vmatprep.mubr.f32.mxu0 0.0
        %1556 = vmatmul.mubr.f32.gmra.mxu0 %v1390
        %v1557 = vpop.f32.mrf.mxu0
        %v1558 = vadd.f32 0.0, %v1557
        %v1559 = vpop.f32.mrf.mxu0
        %1560 = vmatprep.mubr.f32.mxu0 0.0
        %1561 = vmatmul.mubr.f32.gmra.mxu0 %v1393
        %v1562 = vpop.f32.mrf.mxu0
        %v1563 = vadd.f32 0.0, %v1562
        %v1564 = vpop.f32.mrf.mxu0
        %1565 = vmatprep.mubr.f32.mxu0 0.0
        %1566 = vmatmul.mubr.f32.gmra.mxu0 %v1396
        %v1567 = vpop.f32.mrf.mxu0
        %v1568 = vadd.f32 0.0, %v1567
        %v1569 = vpop.f32.mrf.mxu0
        %1570 = vmatprep.mubr.f32.mxu0 0.0
        %1571 = vmatmul.mubr.f32.gmra.mxu0 %v1399
        %v1572 = vpop.f32.mrf.mxu0
        %v1573 = vadd.f32 0.0, %v1572
        %v1574 = vpop.f32.mrf.mxu0
        %1575 = vmatprep.mubr.f32.mxu0 0.0
        %1576 = vmatmul.mubr.f32.gmra.mxu0 %v1402
        %v1577 = vpop.f32.mrf.mxu0
        %v1578 = vadd.f32 0.0, %v1577
        %v1579 = vpop.f32.mrf.mxu0
        %1580 = vmatprep.mubr.f32.mxu0 0.0
        %1581 = vmatmul.mubr.f32.gmra.mxu0 %v1405
        %v1582 = vpop.f32.mrf.mxu0
        %v1583 = vadd.f32 0.0, %v1582
        %v1584 = vpop.f32.mrf.mxu0
        %1585 = vmatprep.mubr.f32.mxu0 0.0
        %1586 = vmatmul.mubr.f32.gmra.mxu0 %v1408
        %v1587 = vpop.f32.mrf.mxu0
        %v1588 = vadd.f32 0.0, %v1587
        %v1589 = vpop.f32.mrf.mxu0
        %1590 = vmatprep.mubr.f32.mxu0 0.0
        %1591 = vmatmul.mubr.f32.gmra.mxu0 %v1411
        %v1592 = vpop.f32.mrf.mxu0
        %v1593 = vadd.f32 0.0, %v1592
        %v1594 = vpop.f32.mrf.mxu0
        %1595 = vmatprep.mubr.f32.mxu0 0.0
        %1596 = vmatmul.mubr.f32.gmra.mxu0 %v1414
        %v1597 = vpop.f32.mrf.mxu0
        %v1598 = vadd.f32 0.0, %v1597
        %v1599 = vpop.f32.mrf.mxu0
        %1600 = vmatprep.mubr.f32.mxu0 0.0
        %1601 = vmatmul.mubr.f32.gmra.mxu0 %v1417
        %v1602 = vpop.f32.mrf.mxu0
        %v1603 = vadd.f32 0.0, %v1602
        %v1604 = vpop.f32.mrf.mxu0
        %1605 = vmatprep.mubr.f32.mxu0 0.0
        %1606 = vmatmul.mubr.f32.gmra.mxu0 %v1420
        %v1607 = vpop.f32.mrf.mxu0
        %v1608 = vadd.f32 0.0, %v1607
        %v1609 = vpop.f32.mrf.mxu0
        %1610 = vmatprep.mubr.f32.mxu0 0.0
        %1611 = vmatmul.mubr.f32.gmra.mxu0 %v1423
        %v1612 = vpop.f32.mrf.mxu0
        %v1613 = vadd.f32 0.0, %v1612
        %v1614 = vpop.f32.mrf.mxu0
        %1615 = vmatprep.mubr.f32.mxu0 0.0
        %1616 = vmatmul.mubr.f32.gmra.mxu0 %v1426
        %v1617 = vpop.f32.mrf.mxu0
        %v1618 = vadd.f32 0.0, %v1617
        %v1619 = vpop.f32.mrf.mxu0
        %1620 = vmatprep.mubr.f32.mxu0 0.0
        %1621 = vmatmul.mubr.f32.gmra.mxu0 %v1429
        %v1622 = vpop.f32.mrf.mxu0
        %v1623 = vadd.f32 0.0, %v1622
        %v1624 = vpop.f32.mrf.mxu0
        %1625 = vmatprep.mubr.f32.mxu0 0.0
        %1626 = vmatmul.mubr.f32.gmra.mxu0 %v1432
        %v1627 = vpop.f32.mrf.mxu0
        %v1628 = vadd.f32 0.0, %v1627
        %v1629 = vpop.f32.mrf.mxu0
        %1630 = vmatprep.mubr.f32.mxu0 0.0
        %1631 = vmatmul.mubr.f32.gmra.mxu0 %v1435
        %v1632 = vpop.f32.mrf.mxu0
        %v1633 = vadd.f32 0.0, %v1632
        %v1634 = vpop.f32.mrf.mxu0
        %1635 = vmatprep.mubr.f32.mxu0 0.0
        %1636 = vmatmul.mubr.f32.gmra.mxu0 %v1438
        %v1637 = vpop.f32.mrf.mxu0
        %v1638 = vadd.f32 0.0, %v1637
        %v1639 = vpop.f32.mrf.mxu0
        %1640 = vmatprep.mubr.f32.mxu0 0.0
        %1641 = vmatmul.mubr.f32.gmra.mxu0 %v1441
        %v1642 = vpop.f32.mrf.mxu0
        %v1643 = vadd.f32 0.0, %v1642
        %v1644 = vpop.f32.mrf.mxu0
        %1645 = vmatprep.mubr.f32.mxu0 0.0
        %1646 = vmatmul.mubr.f32.gmra.mxu0 %v1444
        %v1647 = vpop.f32.mrf.mxu0
        %v1648 = vadd.f32 0.0, %v1647
        %v1649 = vpop.f32.mrf.mxu0
        %1650 = vmatprep.mubr.f32.mxu0 0.0
        %1651 = vmatmul.mubr.f32.gmra.mxu0 %v1447
        %v1652 = vpop.f32.mrf.mxu0
        %v1653 = vadd.f32 0.0, %v1652
        %v1654 = vpop.f32.mrf.mxu0
        %1655 = vmatprep.mubr.f32.mxu0 0.0
        %1656 = vmatmul.mubr.f32.gmra.mxu0 %v1450
        %v1657 = vpop.f32.mrf.mxu0
        %v1658 = vadd.f32 0.0, %v1657
        %v1659 = vpop.f32.mrf.mxu0
        %1660 = vmatprep.mubr.f32.mxu0 0.0
        %1661 = vmatmul.mubr.f32.gmra.mxu0 %v1453
        %v1662 = vpop.f32.mrf.mxu0
        %v1663 = vadd.f32 0.0, %v1662
        %v1664 = vpop.f32.mrf.mxu0
        %1665 = vmatprep.mubr.f32.mxu0 0.0
        %1666 = vmatmul.mubr.f32.gmra.mxu0 %v1456
        %v1667 = vpop.f32.mrf.mxu0
        %v1668 = vadd.f32 0.0, %v1667
        %v1669 = vpop.f32.mrf.mxu0
        %1670 = vmatprep.mubr.f32.mxu0 0.0
        %1671 = vmatmul.mubr.f32.gmra.mxu0 %v1459
        %v1672 = vpop.f32.mrf.mxu0
        %v1673 = vadd.f32 0.0, %v1672
        %v1674 = vpop.f32.mrf.mxu0
        %1675 = vmatprep.mubr.f32.mxu0 0.0
        %1676 = vmatmul.mubr.f32.gmra.mxu0 %v1462
        %v1677 = vpop.f32.mrf.mxu0
        %v1678 = vadd.f32 0.0, %v1677
        %v1679 = vpop.f32.mrf.mxu0
        %1680 = vmatprep.mubr.f32.mxu0 0.0
        %1681 = vmatmul.mubr.f32.gmra.mxu0 %v1465
        %v1682 = vpop.f32.mrf.mxu0
        %v1683 = vadd.f32 0.0, %v1682
        %v1684 = vpop.f32.mrf.mxu0
        %1685 = vmatprep.mubr.f32.mxu0 0.0
        %1686 = vmatmul.mubr.f32.gmra.mxu0 %v1468
        %v1687 = vpop.f32.mrf.mxu0
        %v1688 = vadd.f32 0.0, %v1687
        %v1689 = vpop.f32.mrf.mxu0
        %1690 = vmatprep.mubr.f32.mxu0 0.0
        %1691 = vmatmul.mubr.f32.gmra.mxu0 %v1471
        %v1692 = vpop.f32.mrf.mxu0
        %v1693 = vadd.f32 0.0, %v1692
        %v1694 = vpop.f32.mrf.mxu0
        %1695 = vmatprep.mubr.f32.mxu0 0.0
        %1696 = vmatmul.mubr.f32.gmra.mxu0 %v1474
        %v1697 = vpop.f32.mrf.mxu0
        %v1698 = vadd.f32 0.0, %v1697
        %v1699 = vpop.f32.mrf.mxu0
        %1700 = vdwg.mxu0
        %v1702 = vsel %vm671, %v1313, 0
        %v1705 = vsel %vm671, %v1314, 0
        %v1708 = vsel %vm671, %v1315, 0
        %v1711 = vsel %vm671, %v1316, 0
        %v1714 = vsel %vm671, %v1317, 0
        %v1717 = vsel %vm671, %v1318, 0
        %v1720 = vsel %vm671, %v1319, 0
        %v1723 = vsel %vm671, %v1320, 0
        %v1726 = vsel %vm671, %v1321, 0
        %v1729 = vsel %vm671, %v1322, 0
        %v1732 = vsel %vm671, %v1323, 0
        %v1735 = vsel %vm671, %v1324, 0
        %v1738 = vsel %vm671, %v1325, 0
        %v1741 = vsel %vm671, %v1326, 0
        %v1744 = vsel %vm671, %v1327, 0
        %v1747 = vsel %vm671, %v1328, 0
        %v1750 = vsel %vm671, %v1329, 0
        %v1753 = vsel %vm671, %v1330, 0
        %v1756 = vsel %vm671, %v1331, 0
        %v1759 = vsel %vm671, %v1332, 0
        %v1762 = vsel %vm671, %v1333, 0
        %v1765 = vsel %vm671, %v1334, 0
        %v1768 = vsel %vm671, %v1335, 0
        %v1771 = vsel %vm671, %v1336, 0
        %v1774 = vsel %vm671, %v1337, 0
        %v1777 = vsel %vm671, %v1338, 0
        %v1780 = vsel %vm671, %v1339, 0
        %v1783 = vsel %vm671, %v1340, 0
        %v1786 = vsel %vm671, %v1341, 0
        %v1789 = vsel %vm671, %v1342, 0
        %v1792 = vsel %vm671, %v1343, 0
        %v1795 = vsel %vm671, %v1344, 0
        %1797 = vmatprep.subr.mxu0 0.0
        %1798 = vmatpush1.msra.mxu0 0.0
        %1799 = vmatprep.subr.mxu0 0.0
        %1800 = vmatpush1.msra.mxu0 0.0
        %1801 = vmatprep.subr.mxu0 0.0
        %1802 = vmatpush1.msra.mxu0 0.0
        %1803 = vmatprep.subr.mxu0 0.0
        %1804 = vmatpush1.msra.mxu0 0.0
        %1805 = vmatprep.subr.mxu0 0.0
        %1806 = vmatpush1.msra.mxu0 0.0
        %1807 = vmatprep.subr.mxu0 0.0
        %1808 = vmatpush1.msra.mxu0 0.0
        %1809 = vmatprep.subr.mxu0 0.0
        %1810 = vmatpush1.msra.mxu0 0.0
        %1811 = vmatprep.subr.mxu0 0.0
        %1812 = vmatpush1.msra.mxu0 0.0
        %1813 = vmatprep.subr.mxu0 0.0
        %1814 = vmatpush1.msra.mxu0 0.0
        %1815 = vmatprep.subr.mxu0 0.0
        %1816 = vmatpush1.msra.mxu0 0.0
        %1817 = vmatprep.subr.mxu0 0.0
        %1818 = vmatpush1.msra.mxu0 0.0
        %1819 = vmatprep.subr.mxu0 0.0
        %1820 = vmatpush1.msra.mxu0 0.0
        %1821 = vmatprep.subr.mxu0 0.0
        %1822 = vmatpush1.msra.mxu0 0.0
        %1823 = vmatprep.subr.mxu0 0.0
        %1824 = vmatpush1.msra.mxu0 0.0
        %1825 = vmatprep.subr.mxu0 0.0
        %1826 = vmatpush1.msra.mxu0 0.0
        %1827 = vmatprep.subr.mxu0 0.0
        %1828 = vmatpush1.msra.mxu0 %v1345
        %1829 = vmatprep.subr.mxu0 0.0
        %1830 = vmatpush2.msra.mxu0 0.0
        %1831 = vmatprep.subr.mxu0 0.0
        %1832 = vmatpush2.msra.mxu0 0.0
        %1833 = vmatprep.subr.mxu0 0.0
        %1834 = vmatpush2.msra.mxu0 0.0
        %1835 = vmatprep.subr.mxu0 0.0
        %1836 = vmatpush2.msra.mxu0 0.0
        %1837 = vmatprep.subr.mxu0 0.0
        %1838 = vmatpush2.msra.mxu0 0.0
        %1839 = vmatprep.subr.mxu0 0.0
        %1840 = vmatpush2.msra.mxu0 0.0
        %1841 = vmatprep.subr.mxu0 0.0
        %1842 = vmatpush2.msra.mxu0 0.0
        %1843 = vmatprep.subr.mxu0 0.0
        %1844 = vmatpush2.msra.mxu0 0.0
        %1845 = vmatprep.subr.mxu0 0.0
        %1846 = vmatpush2.msra.mxu0 0.0
        %1847 = vmatprep.subr.mxu0 0.0
        %1848 = vmatpush2.msra.mxu0 0.0
        %1849 = vmatprep.subr.mxu0 0.0
        %1850 = vmatpush2.msra.mxu0 0.0
        %1851 = vmatprep.subr.mxu0 0.0
        %1852 = vmatpush2.msra.mxu0 0.0
        %1853 = vmatprep.subr.mxu0 0.0
        %1854 = vmatpush2.msra.mxu0 0.0
        %1855 = vmatprep.subr.mxu0 0.0
        %1856 = vmatpush2.msra.mxu0 0.0
        %1857 = vmatprep.subr.mxu0 0.0
        %1858 = vmatpush2.msra.mxu0 0.0
        %1859 = vmatprep.subr.mxu0 0.0
        %1860 = vmatpush2.msra.mxu0 0.0
        %1861 = vmatprep.mubr.f32.mxu0 0.0
        %1862 = vmatmul.mubr.f32.gmra.mxu0 %v1702
        %v1863 = vpop.f32.mrf.mxu0
        %v1864 = vadd.f32 %v1543, %v1863
        %v1865 = vpop.f32.mrf.mxu0
        %1866 = vmatprep.mubr.f32.mxu0 0.0
        %1867 = vmatmul.mubr.f32.gmra.mxu0 %v1705
        %v1868 = vpop.f32.mrf.mxu0
        %v1869 = vadd.f32 %v1548, %v1868
        %v1870 = vpop.f32.mrf.mxu0
        %1871 = vmatprep.mubr.f32.mxu0 0.0
        %1872 = vmatmul.mubr.f32.gmra.mxu0 %v1708
        %v1873 = vpop.f32.mrf.mxu0
        %v1874 = vadd.f32 %v1553, %v1873
        %v1875 = vpop.f32.mrf.mxu0
        %1876 = vmatprep.mubr.f32.mxu0 0.0
        %1877 = vmatmul.mubr.f32.gmra.mxu0 %v1711
        %v1878 = vpop.f32.mrf.mxu0
        %v1879 = vadd.f32 %v1558, %v1878
        %v1880 = vpop.f32.mrf.mxu0
        %1881 = vmatprep.mubr.f32.mxu0 0.0
        %1882 = vmatmul.mubr.f32.gmra.mxu0 %v1714
        %v1883 = vpop.f32.mrf.mxu0
        %v1884 = vadd.f32 %v1563, %v1883
        %v1885 = vpop.f32.mrf.mxu0
        %1886 = vmatprep.mubr.f32.mxu0 0.0
        %1887 = vmatmul.mubr.f32.gmra.mxu0 %v1717
        %v1888 = vpop.f32.mrf.mxu0
        %v1889 = vadd.f32 %v1568, %v1888
        %v1890 = vpop.f32.mrf.mxu0
        %1891 = vmatprep.mubr.f32.mxu0 0.0
        %1892 = vmatmul.mubr.f32.gmra.mxu0 %v1720
        %v1893 = vpop.f32.mrf.mxu0
        %v1894 = vadd.f32 %v1573, %v1893
        %v1895 = vpop.f32.mrf.mxu0
        %1896 = vmatprep.mubr.f32.mxu0 0.0
        %1897 = vmatmul.mubr.f32.gmra.mxu0 %v1723
        %v1898 = vpop.f32.mrf.mxu0
        %v1899 = vadd.f32 %v1578, %v1898
        %v1900 = vpop.f32.mrf.mxu0
        %1901 = vmatprep.mubr.f32.mxu0 0.0
        %1902 = vmatmul.mubr.f32.gmra.mxu0 %v1726
        %v1903 = vpop.f32.mrf.mxu0
        %v1904 = vadd.f32 %v1583, %v1903
        %v1905 = vpop.f32.mrf.mxu0
        %1906 = vmatprep.mubr.f32.mxu0 0.0
        %1907 = vmatmul.mubr.f32.gmra.mxu0 %v1729
        %v1908 = vpop.f32.mrf.mxu0
        %v1909 = vadd.f32 %v1588, %v1908
        %v1910 = vpop.f32.mrf.mxu0
        %1911 = vmatprep.mubr.f32.mxu0 0.0
        %1912 = vmatmul.mubr.f32.gmra.mxu0 %v1732
        %v1913 = vpop.f32.mrf.mxu0
        %v1914 = vadd.f32 %v1593, %v1913
        %v1915 = vpop.f32.mrf.mxu0
        %1916 = vmatprep.mubr.f32.mxu0 0.0
        %1917 = vmatmul.mubr.f32.gmra.mxu0 %v1735
        %v1918 = vpop.f32.mrf.mxu0
        %v1919 = vadd.f32 %v1598, %v1918
        %v1920 = vpop.f32.mrf.mxu0
        %1921 = vmatprep.mubr.f32.mxu0 0.0
        %1922 = vmatmul.mubr.f32.gmra.mxu0 %v1738
        %v1923 = vpop.f32.mrf.mxu0
        %v1924 = vadd.f32 %v1603, %v1923
        %v1925 = vpop.f32.mrf.mxu0
        %1926 = vmatprep.mubr.f32.mxu0 0.0
        %1927 = vmatmul.mubr.f32.gmra.mxu0 %v1741
        %v1928 = vpop.f32.mrf.mxu0
        %v1929 = vadd.f32 %v1608, %v1928
        %v1930 = vpop.f32.mrf.mxu0
        %1931 = vmatprep.mubr.f32.mxu0 0.0
        %1932 = vmatmul.mubr.f32.gmra.mxu0 %v1744
        %v1933 = vpop.f32.mrf.mxu0
        %v1934 = vadd.f32 %v1613, %v1933
        %v1935 = vpop.f32.mrf.mxu0
        %1936 = vmatprep.mubr.f32.mxu0 0.0
        %1937 = vmatmul.mubr.f32.gmra.mxu0 %v1747
        %v1938 = vpop.f32.mrf.mxu0
        %v1939 = vadd.f32 %v1618, %v1938
        %v1940 = vpop.f32.mrf.mxu0
        %1941 = vmatprep.mubr.f32.mxu0 0.0
        %1942 = vmatmul.mubr.f32.gmra.mxu0 %v1750
        %v1943 = vpop.f32.mrf.mxu0
        %v1944 = vadd.f32 %v1623, %v1943
        %v1945 = vpop.f32.mrf.mxu0
        %1946 = vmatprep.mubr.f32.mxu0 0.0
        %1947 = vmatmul.mubr.f32.gmra.mxu0 %v1753
        %v1948 = vpop.f32.mrf.mxu0
        %v1949 = vadd.f32 %v1628, %v1948
        %v1950 = vpop.f32.mrf.mxu0
        %1951 = vmatprep.mubr.f32.mxu0 0.0
        %1952 = vmatmul.mubr.f32.gmra.mxu0 %v1756
        %v1953 = vpop.f32.mrf.mxu0
        %v1954 = vadd.f32 %v1633, %v1953
        %v1955 = vpop.f32.mrf.mxu0
        %1956 = vmatprep.mubr.f32.mxu0 0.0
        %1957 = vmatmul.mubr.f32.gmra.mxu0 %v1759
        %v1958 = vpop.f32.mrf.mxu0
        %v1959 = vadd.f32 %v1638, %v1958
        %v1960 = vpop.f32.mrf.mxu0
        %1961 = vmatprep.mubr.f32.mxu0 0.0
        %1962 = vmatmul.mubr.f32.gmra.mxu0 %v1762
        %v1963 = vpop.f32.mrf.mxu0
        %v1964 = vadd.f32 %v1643, %v1963
        %v1965 = vpop.f32.mrf.mxu0
        %1966 = vmatprep.mubr.f32.mxu0 0.0
        %1967 = vmatmul.mubr.f32.gmra.mxu0 %v1765
        %v1968 = vpop.f32.mrf.mxu0
        %v1969 = vadd.f32 %v1648, %v1968
        %v1970 = vpop.f32.mrf.mxu0
        %1971 = vmatprep.mubr.f32.mxu0 0.0
        %1972 = vmatmul.mubr.f32.gmra.mxu0 %v1768
        %v1973 = vpop.f32.mrf.mxu0
        %v1974 = vadd.f32 %v1653, %v1973
        %v1975 = vpop.f32.mrf.mxu0
        %1976 = vmatprep.mubr.f32.mxu0 0.0
        %1977 = vmatmul.mubr.f32.gmra.mxu0 %v1771
        %v1978 = vpop.f32.mrf.mxu0
        %v1979 = vadd.f32 %v1658, %v1978
        %v1980 = vpop.f32.mrf.mxu0
        %1981 = vmatprep.mubr.f32.mxu0 0.0
        %1982 = vmatmul.mubr.f32.gmra.mxu0 %v1774
        %v1983 = vpop.f32.mrf.mxu0
        %v1984 = vadd.f32 %v1663, %v1983
        %v1985 = vpop.f32.mrf.mxu0
        %1986 = vmatprep.mubr.f32.mxu0 0.0
        %1987 = vmatmul.mubr.f32.gmra.mxu0 %v1777
        %v1988 = vpop.f32.mrf.mxu0
        %v1989 = vadd.f32 %v1668, %v1988
        %v1990 = vpop.f32.mrf.mxu0
        %1991 = vmatprep.mubr.f32.mxu0 0.0
        %1992 = vmatmul.mubr.f32.gmra.mxu0 %v1780
        %v1993 = vpop.f32.mrf.mxu0
        %v1994 = vadd.f32 %v1673, %v1993
        %v1995 = vpop.f32.mrf.mxu0
        %1996 = vmatprep.mubr.f32.mxu0 0.0
        %1997 = vmatmul.mubr.f32.gmra.mxu0 %v1783
        %v1998 = vpop.f32.mrf.mxu0
        %v1999 = vadd.f32 %v1678, %v1998
        %v2000 = vpop.f32.mrf.mxu0
        %2001 = vmatprep.mubr.f32.mxu0 0.0
        %2002 = vmatmul.mubr.f32.gmra.mxu0 %v1786
        %v2003 = vpop.f32.mrf.mxu0
        %v2004 = vadd.f32 %v1683, %v2003
        %v2005 = vpop.f32.mrf.mxu0
        %2006 = vmatprep.mubr.f32.mxu0 0.0
        %2007 = vmatmul.mubr.f32.gmra.mxu0 %v1789
        %v2008 = vpop.f32.mrf.mxu0
        %v2009 = vadd.f32 %v1688, %v2008
        %v2010 = vpop.f32.mrf.mxu0
        %2011 = vmatprep.mubr.f32.mxu0 0.0
        %2012 = vmatmul.mubr.f32.gmra.mxu0 %v1792
        %v2013 = vpop.f32.mrf.mxu0
        %v2014 = vadd.f32 %v1693, %v2013
        %v2015 = vpop.f32.mrf.mxu0
        %2016 = vmatprep.mubr.f32.mxu0 0.0
        %2017 = vmatmul.mubr.f32.gmra.mxu0 %v1795
        %v2018 = vpop.f32.mrf.mxu0
        %v2019 = vadd.f32 %v1698, %v2018
        %v2020 = vpop.f32.mrf.mxu0
        %2021 = vdwg.mxu0
        %v2022 = vld [vmem:[#allocation2 + $0x2] sm:$0xff]
        %v2023 = vld [vmem:[#allocation2 + $0xa] sm:$0xff]
        %v2024 = vld [vmem:[#allocation2 + $0x1a] sm:$0xff]
        %v2025 = vld [vmem:[#allocation2 + $0x22] sm:$0xff]
        %v2026 = vld [vmem:[#allocation2 + $0x32] sm:$0xff]
        %v2027 = vld [vmem:[#allocation2 + $0x3a] sm:$0xff]
        %v2028 = vld [vmem:[#allocation2 + $0x4a] sm:$0xff]
        %v2029 = vld [vmem:[#allocation2 + $0x52] sm:$0xff]
        %v2030 = vld [vmem:[#allocation2 + $0x62] sm:$0xff]
        %v2031 = vld [vmem:[#allocation2 + $0x6a] sm:$0xff]
        %v2032 = vld [vmem:[#allocation2 + $0x7a] sm:$0xff]
        %v2033 = vld [vmem:[#allocation2 + $0x82] sm:$0xff]
        %v2034 = vld [vmem:[#allocation2 + $0x92] sm:$0xff]
        %v2035 = vld [vmem:[#allocation2 + $0x9a] sm:$0xff]
        %v2036 = vld [vmem:[#allocation2 + $0xaa] sm:$0xff]
        %v2037 = vld [vmem:[#allocation2 + $0xb2] sm:$0xff]
        %v2038 = vld [vmem:[#allocation2 + $0xc2] sm:$0xff]
        %v2039 = vld [vmem:[#allocation2 + $0xca] sm:$0xff]
        %v2040 = vld [vmem:[#allocation2 + $0xda] sm:$0xff]
        %v2041 = vld [vmem:[#allocation2 + $0xe2] sm:$0xff]
        %v2042 = vld [vmem:[#allocation2 + $0xf2] sm:$0xff]
        %v2043 = vld [vmem:[#allocation2 + $0xfa] sm:$0xff]
        %v2044 = vld [vmem:[#allocation2 + $0x10a] sm:$0xff]
        %v2045 = vld [vmem:[#allocation2 + $0x112] sm:$0xff]
        %v2046 = vld [vmem:[#allocation2 + $0x122] sm:$0xff]
        %v2047 = vld [vmem:[#allocation2 + $0x12a] sm:$0xff]
        %v2048 = vld [vmem:[#allocation2 + $0x13a] sm:$0xff]
        %v2049 = vld [vmem:[#allocation2 + $0x142] sm:$0xff]
        %v2050 = vld [vmem:[#allocation2 + $0x152] sm:$0xff]
        %v2051 = vld [vmem:[#allocation2 + $0x15a] sm:$0xff]
        %v2052 = vld [vmem:[#allocation2 + $0x16a] sm:$0xff]
        %v2053 = vld [vmem:[#allocation2 + $0x172] sm:$0xff]
        %s2054 = scalar_lea.vmem %s7, 16
        %v2055 = vld [vmem:[%s2054] sm:$0xff]
        %v2057 = vsel %vm671, %v2022, 0
        %v2060 = vsel %vm671, %v2023, 0
        %v2063 = vsel %vm671, %v2024, 0
        %v2066 = vsel %vm671, %v2025, 0
        %v2069 = vsel %vm671, %v2026, 0
        %v2072 = vsel %vm671, %v2027, 0
        %v2075 = vsel %vm671, %v2028, 0
        %v2078 = vsel %vm671, %v2029, 0
        %v2081 = vsel %vm671, %v2030, 0
        %v2084 = vsel %vm671, %v2031, 0
        %v2087 = vsel %vm671, %v2032, 0
        %v2090 = vsel %vm671, %v2033, 0
        %v2093 = vsel %vm671, %v2034, 0
        %v2096 = vsel %vm671, %v2035, 0
        %v2099 = vsel %vm671, %v2036, 0
        %v2102 = vsel %vm671, %v2037, 0
        %v2105 = vsel %vm671, %v2038, 0
        %v2108 = vsel %vm671, %v2039, 0
        %v2111 = vsel %vm671, %v2040, 0
        %v2114 = vsel %vm671, %v2041, 0
        %v2117 = vsel %vm671, %v2042, 0
        %v2120 = vsel %vm671, %v2043, 0
        %v2123 = vsel %vm671, %v2044, 0
        %v2126 = vsel %vm671, %v2045, 0
        %v2129 = vsel %vm671, %v2046, 0
        %v2132 = vsel %vm671, %v2047, 0
        %v2135 = vsel %vm671, %v2048, 0
        %v2138 = vsel %vm671, %v2049, 0
        %v2141 = vsel %vm671, %v2050, 0
        %v2144 = vsel %vm671, %v2051, 0
        %v2147 = vsel %vm671, %v2052, 0
        %v2150 = vsel %vm671, %v2053, 0
        %2152 = vmatprep.subr.mxu0 0.0
        %2153 = vmatpush1.msra.mxu0 0.0
        %2154 = vmatprep.subr.mxu0 0.0
        %2155 = vmatpush1.msra.mxu0 0.0
        %2156 = vmatprep.subr.mxu0 0.0
        %2157 = vmatpush1.msra.mxu0 0.0
        %2158 = vmatprep.subr.mxu0 0.0
        %2159 = vmatpush1.msra.mxu0 0.0
        %2160 = vmatprep.subr.mxu0 0.0
        %2161 = vmatpush1.msra.mxu0 0.0
        %2162 = vmatprep.subr.mxu0 0.0
        %2163 = vmatpush1.msra.mxu0 0.0
        %2164 = vmatprep.subr.mxu0 0.0
        %2165 = vmatpush1.msra.mxu0 0.0
        %2166 = vmatprep.subr.mxu0 0.0
        %2167 = vmatpush1.msra.mxu0 0.0
        %2168 = vmatprep.subr.mxu0 0.0
        %2169 = vmatpush1.msra.mxu0 0.0
        %2170 = vmatprep.subr.mxu0 0.0
        %2171 = vmatpush1.msra.mxu0 0.0
        %2172 = vmatprep.subr.mxu0 0.0
        %2173 = vmatpush1.msra.mxu0 0.0
        %2174 = vmatprep.subr.mxu0 0.0
        %2175 = vmatpush1.msra.mxu0 0.0
        %2176 = vmatprep.subr.mxu0 0.0
        %2177 = vmatpush1.msra.mxu0 0.0
        %2178 = vmatprep.subr.mxu0 0.0
        %2179 = vmatpush1.msra.mxu0 0.0
        %2180 = vmatprep.subr.mxu0 0.0
        %2181 = vmatpush1.msra.mxu0 0.0
        %2182 = vmatprep.subr.mxu0 0.0
        %2183 = vmatpush1.msra.mxu0 %v2055
        %2184 = vmatprep.subr.mxu0 0.0
        %2185 = vmatpush2.msra.mxu0 0.0
        %2186 = vmatprep.subr.mxu0 0.0
        %2187 = vmatpush2.msra.mxu0 0.0
        %2188 = vmatprep.subr.mxu0 0.0
        %2189 = vmatpush2.msra.mxu0 0.0
        %2190 = vmatprep.subr.mxu0 0.0
        %2191 = vmatpush2.msra.mxu0 0.0
        %2192 = vmatprep.subr.mxu0 0.0
        %2193 = vmatpush2.msra.mxu0 0.0
        %2194 = vmatprep.subr.mxu0 0.0
        %2195 = vmatpush2.msra.mxu0 0.0
        %2196 = vmatprep.subr.mxu0 0.0
        %2197 = vmatpush2.msra.mxu0 0.0
        %2198 = vmatprep.subr.mxu0 0.0
        %2199 = vmatpush2.msra.mxu0 0.0
        %2200 = vmatprep.subr.mxu0 0.0
        %2201 = vmatpush2.msra.mxu0 0.0
        %2202 = vmatprep.subr.mxu0 0.0
        %2203 = vmatpush2.msra.mxu0 0.0
        %2204 = vmatprep.subr.mxu0 0.0
        %2205 = vmatpush2.msra.mxu0 0.0
        %2206 = vmatprep.subr.mxu0 0.0
        %2207 = vmatpush2.msra.mxu0 0.0
        %2208 = vmatprep.subr.mxu0 0.0
        %2209 = vmatpush2.msra.mxu0 0.0
        %2210 = vmatprep.subr.mxu0 0.0
        %2211 = vmatpush2.msra.mxu0 0.0
        %2212 = vmatprep.subr.mxu0 0.0
        %2213 = vmatpush2.msra.mxu0 0.0
        %2214 = vmatprep.subr.mxu0 0.0
        %2215 = vmatpush2.msra.mxu0 0.0
        %2216 = vmatprep.mubr.f32.mxu0 0.0
        %2217 = vmatmul.mubr.f32.gmra.mxu0 %v2057
        %v2218 = vpop.f32.mrf.mxu0
        %v2219 = vadd.f32 0.0, %v2218
        %v2220 = vpop.f32.mrf.mxu0
        %2221 = vmatprep.mubr.f32.mxu0 0.0
        %2222 = vmatmul.mubr.f32.gmra.mxu0 %v2060
        %v2223 = vpop.f32.mrf.mxu0
        %v2224 = vadd.f32 0.0, %v2223
        %v2225 = vpop.f32.mrf.mxu0
        %2226 = vmatprep.mubr.f32.mxu0 0.0
        %2227 = vmatmul.mubr.f32.gmra.mxu0 %v2063
        %v2228 = vpop.f32.mrf.mxu0
        %v2229 = vadd.f32 0.0, %v2228
        %v2230 = vpop.f32.mrf.mxu0
        %2231 = vmatprep.mubr.f32.mxu0 0.0
        %2232 = vmatmul.mubr.f32.gmra.mxu0 %v2066
        %v2233 = vpop.f32.mrf.mxu0
        %v2234 = vadd.f32 0.0, %v2233
        %v2235 = vpop.f32.mrf.mxu0
        %2236 = vmatprep.mubr.f32.mxu0 0.0
        %2237 = vmatmul.mubr.f32.gmra.mxu0 %v2069
        %v2238 = vpop.f32.mrf.mxu0
        %v2239 = vadd.f32 0.0, %v2238
        %v2240 = vpop.f32.mrf.mxu0
        %2241 = vmatprep.mubr.f32.mxu0 0.0
        %2242 = vmatmul.mubr.f32.gmra.mxu0 %v2072
        %v2243 = vpop.f32.mrf.mxu0
        %v2244 = vadd.f32 0.0, %v2243
        %v2245 = vpop.f32.mrf.mxu0
        %2246 = vmatprep.mubr.f32.mxu0 0.0
        %2247 = vmatmul.mubr.f32.gmra.mxu0 %v2075
        %v2248 = vpop.f32.mrf.mxu0
        %v2249 = vadd.f32 0.0, %v2248
        %v2250 = vpop.f32.mrf.mxu0
        %2251 = vmatprep.mubr.f32.mxu0 0.0
        %2252 = vmatmul.mubr.f32.gmra.mxu0 %v2078
        %v2253 = vpop.f32.mrf.mxu0
        %v2254 = vadd.f32 0.0, %v2253
        %v2255 = vpop.f32.mrf.mxu0
        %2256 = vmatprep.mubr.f32.mxu0 0.0
        %2257 = vmatmul.mubr.f32.gmra.mxu0 %v2081
        %v2258 = vpop.f32.mrf.mxu0
        %v2259 = vadd.f32 0.0, %v2258
        %v2260 = vpop.f32.mrf.mxu0
        %2261 = vmatprep.mubr.f32.mxu0 0.0
        %2262 = vmatmul.mubr.f32.gmra.mxu0 %v2084
        %v2263 = vpop.f32.mrf.mxu0
        %v2264 = vadd.f32 0.0, %v2263
        %v2265 = vpop.f32.mrf.mxu0
        %2266 = vmatprep.mubr.f32.mxu0 0.0
        %2267 = vmatmul.mubr.f32.gmra.mxu0 %v2087
        %v2268 = vpop.f32.mrf.mxu0
        %v2269 = vadd.f32 0.0, %v2268
        %v2270 = vpop.f32.mrf.mxu0
        %2271 = vmatprep.mubr.f32.mxu0 0.0
        %2272 = vmatmul.mubr.f32.gmra.mxu0 %v2090
        %v2273 = vpop.f32.mrf.mxu0
        %v2274 = vadd.f32 0.0, %v2273
        %v2275 = vpop.f32.mrf.mxu0
        %2276 = vmatprep.mubr.f32.mxu0 0.0
        %2277 = vmatmul.mubr.f32.gmra.mxu0 %v2093
        %v2278 = vpop.f32.mrf.mxu0
        %v2279 = vadd.f32 0.0, %v2278
        %v2280 = vpop.f32.mrf.mxu0
        %2281 = vmatprep.mubr.f32.mxu0 0.0
        %2282 = vmatmul.mubr.f32.gmra.mxu0 %v2096
        %v2283 = vpop.f32.mrf.mxu0
        %v2284 = vadd.f32 0.0, %v2283
        %v2285 = vpop.f32.mrf.mxu0
        %2286 = vmatprep.mubr.f32.mxu0 0.0
        %2287 = vmatmul.mubr.f32.gmra.mxu0 %v2099
        %v2288 = vpop.f32.mrf.mxu0
        %v2289 = vadd.f32 0.0, %v2288
        %v2290 = vpop.f32.mrf.mxu0
        %2291 = vmatprep.mubr.f32.mxu0 0.0
        %2292 = vmatmul.mubr.f32.gmra.mxu0 %v2102
        %v2293 = vpop.f32.mrf.mxu0
        %v2294 = vadd.f32 0.0, %v2293
        %v2295 = vpop.f32.mrf.mxu0
        %2296 = vmatprep.mubr.f32.mxu0 0.0
        %2297 = vmatmul.mubr.f32.gmra.mxu0 %v2105
        %v2298 = vpop.f32.mrf.mxu0
        %v2299 = vadd.f32 0.0, %v2298
        %v2300 = vpop.f32.mrf.mxu0
        %2301 = vmatprep.mubr.f32.mxu0 0.0
        %2302 = vmatmul.mubr.f32.gmra.mxu0 %v2108
        %v2303 = vpop.f32.mrf.mxu0
        %v2304 = vadd.f32 0.0, %v2303
        %v2305 = vpop.f32.mrf.mxu0
        %2306 = vmatprep.mubr.f32.mxu0 0.0
        %2307 = vmatmul.mubr.f32.gmra.mxu0 %v2111
        %v2308 = vpop.f32.mrf.mxu0
        %v2309 = vadd.f32 0.0, %v2308
        %v2310 = vpop.f32.mrf.mxu0
        %2311 = vmatprep.mubr.f32.mxu0 0.0
        %2312 = vmatmul.mubr.f32.gmra.mxu0 %v2114
        %v2313 = vpop.f32.mrf.mxu0
        %v2314 = vadd.f32 0.0, %v2313
        %v2315 = vpop.f32.mrf.mxu0
        %2316 = vmatprep.mubr.f32.mxu0 0.0
        %2317 = vmatmul.mubr.f32.gmra.mxu0 %v2117
        %v2318 = vpop.f32.mrf.mxu0
        %v2319 = vadd.f32 0.0, %v2318
        %v2320 = vpop.f32.mrf.mxu0
        %2321 = vmatprep.mubr.f32.mxu0 0.0
        %2322 = vmatmul.mubr.f32.gmra.mxu0 %v2120
        %v2323 = vpop.f32.mrf.mxu0
        %v2324 = vadd.f32 0.0, %v2323
        %v2325 = vpop.f32.mrf.mxu0
        %2326 = vmatprep.mubr.f32.mxu0 0.0
        %2327 = vmatmul.mubr.f32.gmra.mxu0 %v2123
        %v2328 = vpop.f32.mrf.mxu0
        %v2329 = vadd.f32 0.0, %v2328
        %v2330 = vpop.f32.mrf.mxu0
        %2331 = vmatprep.mubr.f32.mxu0 0.0
        %2332 = vmatmul.mubr.f32.gmra.mxu0 %v2126
        %v2333 = vpop.f32.mrf.mxu0
        %v2334 = vadd.f32 0.0, %v2333
        %v2335 = vpop.f32.mrf.mxu0
        %2336 = vmatprep.mubr.f32.mxu0 0.0
        %2337 = vmatmul.mubr.f32.gmra.mxu0 %v2129
        %v2338 = vpop.f32.mrf.mxu0
        %v2339 = vadd.f32 0.0, %v2338
        %v2340 = vpop.f32.mrf.mxu0
        %2341 = vmatprep.mubr.f32.mxu0 0.0
        %2342 = vmatmul.mubr.f32.gmra.mxu0 %v2132
        %v2343 = vpop.f32.mrf.mxu0
        %v2344 = vadd.f32 0.0, %v2343
        %v2345 = vpop.f32.mrf.mxu0
        %2346 = vmatprep.mubr.f32.mxu0 0.0
        %2347 = vmatmul.mubr.f32.gmra.mxu0 %v2135
        %v2348 = vpop.f32.mrf.mxu0
        %v2349 = vadd.f32 0.0, %v2348
        %v2350 = vpop.f32.mrf.mxu0
        %2351 = vmatprep.mubr.f32.mxu0 0.0
        %2352 = vmatmul.mubr.f32.gmra.mxu0 %v2138
        %v2353 = vpop.f32.mrf.mxu0
        %v2354 = vadd.f32 0.0, %v2353
        %v2355 = vpop.f32.mrf.mxu0
        %2356 = vmatprep.mubr.f32.mxu0 0.0
        %2357 = vmatmul.mubr.f32.gmra.mxu0 %v2141
        %v2358 = vpop.f32.mrf.mxu0
        %v2359 = vadd.f32 0.0, %v2358
        %v2360 = vpop.f32.mrf.mxu0
        %2361 = vmatprep.mubr.f32.mxu0 0.0
        %2362 = vmatmul.mubr.f32.gmra.mxu0 %v2144
        %v2363 = vpop.f32.mrf.mxu0
        %v2364 = vadd.f32 0.0, %v2363
        %v2365 = vpop.f32.mrf.mxu0
        %2366 = vmatprep.mubr.f32.mxu0 0.0
        %2367 = vmatmul.mubr.f32.gmra.mxu0 %v2147
        %v2368 = vpop.f32.mrf.mxu0
        %v2369 = vadd.f32 0.0, %v2368
        %v2370 = vpop.f32.mrf.mxu0
        %2371 = vmatprep.mubr.f32.mxu0 0.0
        %2372 = vmatmul.mubr.f32.gmra.mxu0 %v2150
        %v2373 = vpop.f32.mrf.mxu0
        %v2374 = vadd.f32 0.0, %v2373
        %v2375 = vpop.f32.mrf.mxu0
        %2376 = vdwg.mxu0
        %v2377 = vadd.f32 %v1864, %v2219
        %v2378 = vadd.f32 %v1869, %v2224
        %v2379 = vadd.f32 %v1874, %v2229
        %v2380 = vadd.f32 %v1879, %v2234
        %v2381 = vadd.f32 %v1884, %v2239
        %v2382 = vadd.f32 %v1889, %v2244
        %v2383 = vadd.f32 %v1894, %v2249
        %v2384 = vadd.f32 %v1899, %v2254
        %v2385 = vadd.f32 %v1904, %v2259
        %v2386 = vadd.f32 %v1909, %v2264
        %v2387 = vadd.f32 %v1914, %v2269
        %v2388 = vadd.f32 %v1919, %v2274
        %v2389 = vadd.f32 %v1924, %v2279
        %v2390 = vadd.f32 %v1929, %v2284
        %v2391 = vadd.f32 %v1934, %v2289
        %v2392 = vadd.f32 %v1939, %v2294
        %v2393 = vadd.f32 %v1944, %v2299
        %v2394 = vadd.f32 %v1949, %v2304
        %v2395 = vadd.f32 %v1954, %v2309
        %v2396 = vadd.f32 %v1959, %v2314
        %v2397 = vadd.f32 %v1964, %v2319
        %v2398 = vadd.f32 %v1969, %v2324
        %v2399 = vadd.f32 %v1974, %v2329
        %v2400 = vadd.f32 %v1979, %v2334
        %v2401 = vadd.f32 %v1984, %v2339
        %v2402 = vadd.f32 %v1989, %v2344
        %v2403 = vadd.f32 %v1994, %v2349
        %v2404 = vadd.f32 %v1999, %v2354
        %v2405 = vadd.f32 %v2004, %v2359
        %v2406 = vadd.f32 %v2009, %v2364
        %v2407 = vadd.f32 %v2014, %v2369
        %v2408 = vadd.f32 %v2019, %v2374
        %v2409 = vld [vmem:[%s1280] sm:$0xff]
        %v2410 = vld [vmem:[%s1280 + $0x8] sm:$0xff]
        %v2411 = vld [vmem:[%s1280 + $0x18] sm:$0xff]
        %v2412 = vld [vmem:[%s1280 + $0x20] sm:$0xff]
        %v2413 = vld [vmem:[%s1280 + $0x30] sm:$0xff]
        %v2414 = vld [vmem:[%s1280 + $0x38] sm:$0xff]
        %v2415 = vld [vmem:[%s1280 + $0x48] sm:$0xff]
        %v2416 = vld [vmem:[%s1280 + $0x50] sm:$0xff]
        %v2417 = vld [vmem:[%s1280 + $0x60] sm:$0xff]
        %v2418 = vld [vmem:[%s1280 + $0x68] sm:$0xff]
        %v2419 = vld [vmem:[%s1280 + $0x78] sm:$0xff]
        %v2420 = vld [vmem:[%s1280 + $0x80] sm:$0xff]
        %v2421 = vld [vmem:[%s1280 + $0x90] sm:$0xff]
        %v2422 = vld [vmem:[%s1280 + $0x98] sm:$0xff]
        %v2423 = vld [vmem:[%s1280 + $0xa8] sm:$0xff]
        %v2424 = vld [vmem:[%s1280 + $0xb0] sm:$0xff]
        %v2425 = vld [vmem:[%s1280 + $0xc0] sm:$0xff]
        %v2426 = vld [vmem:[%s1280 + $0xc8] sm:$0xff]
        %v2427 = vld [vmem:[%s1280 + $0xd8] sm:$0xff]
        %v2428 = vld [vmem:[%s1280 + $0xe0] sm:$0xff]
        %v2429 = vld [vmem:[%s1280 + $0xf0] sm:$0xff]
        %v2430 = vld [vmem:[%s1280 + $0xf8] sm:$0xff]
        %v2431 = vld [vmem:[%s1280 + $0x108] sm:$0xff]
        %v2432 = vld [vmem:[%s1280 + $0x110] sm:$0xff]
        %v2433 = vld [vmem:[%s1280 + $0x120] sm:$0xff]
        %v2434 = vld [vmem:[%s1280 + $0x128] sm:$0xff]
        %v2435 = vld [vmem:[%s1280 + $0x138] sm:$0xff]
        %v2436 = vld [vmem:[%s1280 + $0x140] sm:$0xff]
        %v2437 = vld [vmem:[%s1280 + $0x150] sm:$0xff]
        %v2438 = vld [vmem:[%s1280 + $0x158] sm:$0xff]
        %v2439 = vld [vmem:[%s1280 + $0x168] sm:$0xff]
        %v2440 = vld [vmem:[%s1280 + $0x170] sm:$0xff]
        %s2441 = scalar_lea.vmem %s7, 24
        %v2442 = vld [vmem:[%s2441] sm:$0xff]
        %v2444 = vsel %vm671, %v2409, 0
        %v2447 = vsel %vm671, %v2410, 0
        %v2450 = vsel %vm671, %v2411, 0
        %v2453 = vsel %vm671, %v2412, 0
        %v2456 = vsel %vm671, %v2413, 0
        %v2459 = vsel %vm671, %v2414, 0
        %v2462 = vsel %vm671, %v2415, 0
        %v2465 = vsel %vm671, %v2416, 0
        %v2468 = vsel %vm671, %v2417, 0
        %v2471 = vsel %vm671, %v2418, 0
        %v2474 = vsel %vm671, %v2419, 0
        %v2477 = vsel %vm671, %v2420, 0
        %v2480 = vsel %vm671, %v2421, 0
        %v2483 = vsel %vm671, %v2422, 0
        %v2486 = vsel %vm671, %v2423, 0
        %v2489 = vsel %vm671, %v2424, 0
        %v2492 = vsel %vm671, %v2425, 0
        %v2495 = vsel %vm671, %v2426, 0
        %v2498 = vsel %vm671, %v2427, 0
        %v2501 = vsel %vm671, %v2428, 0
        %v2504 = vsel %vm671, %v2429, 0
        %v2507 = vsel %vm671, %v2430, 0
        %v2510 = vsel %vm671, %v2431, 0
        %v2513 = vsel %vm671, %v2432, 0
        %v2516 = vsel %vm671, %v2433, 0
        %v2519 = vsel %vm671, %v2434, 0
        %v2522 = vsel %vm671, %v2435, 0
        %v2525 = vsel %vm671, %v2436, 0
        %v2528 = vsel %vm671, %v2437, 0
        %v2531 = vsel %vm671, %v2438, 0
        %v2534 = vsel %vm671, %v2439, 0
        %v2537 = vsel %vm671, %v2440, 0
        %2539 = vmatprep.subr.mxu0 0.0
        %2540 = vmatpush1.msra.mxu0 0.0
        %2541 = vmatprep.subr.mxu0 0.0
        %2542 = vmatpush1.msra.mxu0 0.0
        %2543 = vmatprep.subr.mxu0 0.0
        %2544 = vmatpush1.msra.mxu0 0.0
        %2545 = vmatprep.subr.mxu0 0.0
        %2546 = vmatpush1.msra.mxu0 0.0
        %2547 = vmatprep.subr.mxu0 0.0
        %2548 = vmatpush1.msra.mxu0 0.0
        %2549 = vmatprep.subr.mxu0 0.0
        %2550 = vmatpush1.msra.mxu0 0.0
        %2551 = vmatprep.subr.mxu0 0.0
        %2552 = vmatpush1.msra.mxu0 0.0
        %2553 = vmatprep.subr.mxu0 0.0
        %2554 = vmatpush1.msra.mxu0 0.0
        %2555 = vmatprep.subr.mxu0 0.0
        %2556 = vmatpush1.msra.mxu0 0.0
        %2557 = vmatprep.subr.mxu0 0.0
        %2558 = vmatpush1.msra.mxu0 0.0
        %2559 = vmatprep.subr.mxu0 0.0
        %2560 = vmatpush1.msra.mxu0 0.0
        %2561 = vmatprep.subr.mxu0 0.0
        %2562 = vmatpush1.msra.mxu0 0.0
        %2563 = vmatprep.subr.mxu0 0.0
        %2564 = vmatpush1.msra.mxu0 0.0
        %2565 = vmatprep.subr.mxu0 0.0
        %2566 = vmatpush1.msra.mxu0 0.0
        %2567 = vmatprep.subr.mxu0 0.0
        %2568 = vmatpush1.msra.mxu0 0.0
        %2569 = vmatprep.subr.mxu0 0.0
        %2570 = vmatpush1.msra.mxu0 %v2442
        %2571 = vmatprep.subr.mxu0 0.0
        %2572 = vmatpush2.msra.mxu0 0.0
        %2573 = vmatprep.subr.mxu0 0.0
        %2574 = vmatpush2.msra.mxu0 0.0
        %2575 = vmatprep.subr.mxu0 0.0
        %2576 = vmatpush2.msra.mxu0 0.0
        %2577 = vmatprep.subr.mxu0 0.0
        %2578 = vmatpush2.msra.mxu0 0.0
        %2579 = vmatprep.subr.mxu0 0.0
        %2580 = vmatpush2.msra.mxu0 0.0
        %2581 = vmatprep.subr.mxu0 0.0
        %2582 = vmatpush2.msra.mxu0 0.0
        %2583 = vmatprep.subr.mxu0 0.0
        %2584 = vmatpush2.msra.mxu0 0.0
        %2585 = vmatprep.subr.mxu0 0.0
        %2586 = vmatpush2.msra.mxu0 0.0
        %2587 = vmatprep.subr.mxu0 0.0
        %2588 = vmatpush2.msra.mxu0 0.0
        %2589 = vmatprep.subr.mxu0 0.0
        %2590 = vmatpush2.msra.mxu0 0.0
        %2591 = vmatprep.subr.mxu0 0.0
        %2592 = vmatpush2.msra.mxu0 0.0
        %2593 = vmatprep.subr.mxu0 0.0
        %2594 = vmatpush2.msra.mxu0 0.0
        %2595 = vmatprep.subr.mxu0 0.0
        %2596 = vmatpush2.msra.mxu0 0.0
        %2597 = vmatprep.subr.mxu0 0.0
        %2598 = vmatpush2.msra.mxu0 0.0
        %2599 = vmatprep.subr.mxu0 0.0
        %2600 = vmatpush2.msra.mxu0 0.0
        %2601 = vmatprep.subr.mxu0 0.0
        %2602 = vmatpush2.msra.mxu0 0.0
        %2603 = vmatprep.mubr.f32.mxu0 0.0
        %2604 = vmatmul.mubr.f32.gmra.mxu0 %v2444
        %v2605 = vpop.f32.mrf.mxu0
        %v2606 = vadd.f32 0.0, %v2605
        %v2607 = vpop.f32.mrf.mxu0
        %2608 = vmatprep.mubr.f32.mxu0 0.0
        %2609 = vmatmul.mubr.f32.gmra.mxu0 %v2447
        %v2610 = vpop.f32.mrf.mxu0
        %v2611 = vadd.f32 0.0, %v2610
        %v2612 = vpop.f32.mrf.mxu0
        %2613 = vmatprep.mubr.f32.mxu0 0.0
        %2614 = vmatmul.mubr.f32.gmra.mxu0 %v2450
        %v2615 = vpop.f32.mrf.mxu0
        %v2616 = vadd.f32 0.0, %v2615
        %v2617 = vpop.f32.mrf.mxu0
        %2618 = vmatprep.mubr.f32.mxu0 0.0
        %2619 = vmatmul.mubr.f32.gmra.mxu0 %v2453
        %v2620 = vpop.f32.mrf.mxu0
        %v2621 = vadd.f32 0.0, %v2620
        %v2622 = vpop.f32.mrf.mxu0
        %2623 = vmatprep.mubr.f32.mxu0 0.0
        %2624 = vmatmul.mubr.f32.gmra.mxu0 %v2456
        %v2625 = vpop.f32.mrf.mxu0
        %v2626 = vadd.f32 0.0, %v2625
        %v2627 = vpop.f32.mrf.mxu0
        %2628 = vmatprep.mubr.f32.mxu0 0.0
        %2629 = vmatmul.mubr.f32.gmra.mxu0 %v2459
        %v2630 = vpop.f32.mrf.mxu0
        %v2631 = vadd.f32 0.0, %v2630
        %v2632 = vpop.f32.mrf.mxu0
        %2633 = vmatprep.mubr.f32.mxu0 0.0
        %2634 = vmatmul.mubr.f32.gmra.mxu0 %v2462
        %v2635 = vpop.f32.mrf.mxu0
        %v2636 = vadd.f32 0.0, %v2635
        %v2637 = vpop.f32.mrf.mxu0
        %2638 = vmatprep.mubr.f32.mxu0 0.0
        %2639 = vmatmul.mubr.f32.gmra.mxu0 %v2465
        %v2640 = vpop.f32.mrf.mxu0
        %v2641 = vadd.f32 0.0, %v2640
        %v2642 = vpop.f32.mrf.mxu0
        %2643 = vmatprep.mubr.f32.mxu0 0.0
        %2644 = vmatmul.mubr.f32.gmra.mxu0 %v2468
        %v2645 = vpop.f32.mrf.mxu0
        %v2646 = vadd.f32 0.0, %v2645
        %v2647 = vpop.f32.mrf.mxu0
        %2648 = vmatprep.mubr.f32.mxu0 0.0
        %2649 = vmatmul.mubr.f32.gmra.mxu0 %v2471
        %v2650 = vpop.f32.mrf.mxu0
        %v2651 = vadd.f32 0.0, %v2650
        %v2652 = vpop.f32.mrf.mxu0
        %2653 = vmatprep.mubr.f32.mxu0 0.0
        %2654 = vmatmul.mubr.f32.gmra.mxu0 %v2474
        %v2655 = vpop.f32.mrf.mxu0
        %v2656 = vadd.f32 0.0, %v2655
        %v2657 = vpop.f32.mrf.mxu0
        %2658 = vmatprep.mubr.f32.mxu0 0.0
        %2659 = vmatmul.mubr.f32.gmra.mxu0 %v2477
        %v2660 = vpop.f32.mrf.mxu0
        %v2661 = vadd.f32 0.0, %v2660
        %v2662 = vpop.f32.mrf.mxu0
        %2663 = vmatprep.mubr.f32.mxu0 0.0
        %2664 = vmatmul.mubr.f32.gmra.mxu0 %v2480
        %v2665 = vpop.f32.mrf.mxu0
        %v2666 = vadd.f32 0.0, %v2665
        %v2667 = vpop.f32.mrf.mxu0
        %2668 = vmatprep.mubr.f32.mxu0 0.0
        %2669 = vmatmul.mubr.f32.gmra.mxu0 %v2483
        %v2670 = vpop.f32.mrf.mxu0
        %v2671 = vadd.f32 0.0, %v2670
        %v2672 = vpop.f32.mrf.mxu0
        %2673 = vmatprep.mubr.f32.mxu0 0.0
        %2674 = vmatmul.mubr.f32.gmra.mxu0 %v2486
        %v2675 = vpop.f32.mrf.mxu0
        %v2676 = vadd.f32 0.0, %v2675
        %v2677 = vpop.f32.mrf.mxu0
        %2678 = vmatprep.mubr.f32.mxu0 0.0
        %2679 = vmatmul.mubr.f32.gmra.mxu0 %v2489
        %v2680 = vpop.f32.mrf.mxu0
        %v2681 = vadd.f32 0.0, %v2680
        %v2682 = vpop.f32.mrf.mxu0
        %2683 = vmatprep.mubr.f32.mxu0 0.0
        %2684 = vmatmul.mubr.f32.gmra.mxu0 %v2492
        %v2685 = vpop.f32.mrf.mxu0
        %v2686 = vadd.f32 0.0, %v2685
        %v2687 = vpop.f32.mrf.mxu0
        %2688 = vmatprep.mubr.f32.mxu0 0.0
        %2689 = vmatmul.mubr.f32.gmra.mxu0 %v2495
        %v2690 = vpop.f32.mrf.mxu0
        %v2691 = vadd.f32 0.0, %v2690
        %v2692 = vpop.f32.mrf.mxu0
        %2693 = vmatprep.mubr.f32.mxu0 0.0
        %2694 = vmatmul.mubr.f32.gmra.mxu0 %v2498
        %v2695 = vpop.f32.mrf.mxu0
        %v2696 = vadd.f32 0.0, %v2695
        %v2697 = vpop.f32.mrf.mxu0
        %2698 = vmatprep.mubr.f32.mxu0 0.0
        %2699 = vmatmul.mubr.f32.gmra.mxu0 %v2501
        %v2700 = vpop.f32.mrf.mxu0
        %v2701 = vadd.f32 0.0, %v2700
        %v2702 = vpop.f32.mrf.mxu0
        %2703 = vmatprep.mubr.f32.mxu0 0.0
        %2704 = vmatmul.mubr.f32.gmra.mxu0 %v2504
        %v2705 = vpop.f32.mrf.mxu0
        %v2706 = vadd.f32 0.0, %v2705
        %v2707 = vpop.f32.mrf.mxu0
        %2708 = vmatprep.mubr.f32.mxu0 0.0
        %2709 = vmatmul.mubr.f32.gmra.mxu0 %v2507
        %v2710 = vpop.f32.mrf.mxu0
        %v2711 = vadd.f32 0.0, %v2710
        %v2712 = vpop.f32.mrf.mxu0
        %2713 = vmatprep.mubr.f32.mxu0 0.0
        %2714 = vmatmul.mubr.f32.gmra.mxu0 %v2510
        %v2715 = vpop.f32.mrf.mxu0
        %v2716 = vadd.f32 0.0, %v2715
        %v2717 = vpop.f32.mrf.mxu0
        %2718 = vmatprep.mubr.f32.mxu0 0.0
        %2719 = vmatmul.mubr.f32.gmra.mxu0 %v2513
        %v2720 = vpop.f32.mrf.mxu0
        %v2721 = vadd.f32 0.0, %v2720
        %v2722 = vpop.f32.mrf.mxu0
        %2723 = vmatprep.mubr.f32.mxu0 0.0
        %2724 = vmatmul.mubr.f32.gmra.mxu0 %v2516
        %v2725 = vpop.f32.mrf.mxu0
        %v2726 = vadd.f32 0.0, %v2725
        %v2727 = vpop.f32.mrf.mxu0
        %2728 = vmatprep.mubr.f32.mxu0 0.0
        %2729 = vmatmul.mubr.f32.gmra.mxu0 %v2519
        %v2730 = vpop.f32.mrf.mxu0
        %v2731 = vadd.f32 0.0, %v2730
        %v2732 = vpop.f32.mrf.mxu0
        %2733 = vmatprep.mubr.f32.mxu0 0.0
        %2734 = vmatmul.mubr.f32.gmra.mxu0 %v2522
        %v2735 = vpop.f32.mrf.mxu0
        %v2736 = vadd.f32 0.0, %v2735
        %v2737 = vpop.f32.mrf.mxu0
        %2738 = vmatprep.mubr.f32.mxu0 0.0
        %2739 = vmatmul.mubr.f32.gmra.mxu0 %v2525
        %v2740 = vpop.f32.mrf.mxu0
        %v2741 = vadd.f32 0.0, %v2740
        %v2742 = vpop.f32.mrf.mxu0
        %2743 = vmatprep.mubr.f32.mxu0 0.0
        %2744 = vmatmul.mubr.f32.gmra.mxu0 %v2528
        %v2745 = vpop.f32.mrf.mxu0
        %v2746 = vadd.f32 0.0, %v2745
        %v2747 = vpop.f32.mrf.mxu0
        %2748 = vmatprep.mubr.f32.mxu0 0.0
        %2749 = vmatmul.mubr.f32.gmra.mxu0 %v2531
        %v2750 = vpop.f32.mrf.mxu0
        %v2751 = vadd.f32 0.0, %v2750
        %v2752 = vpop.f32.mrf.mxu0
        %2753 = vmatprep.mubr.f32.mxu0 0.0
        %2754 = vmatmul.mubr.f32.gmra.mxu0 %v2534
        %v2755 = vpop.f32.mrf.mxu0
        %v2756 = vadd.f32 0.0, %v2755
        %v2757 = vpop.f32.mrf.mxu0
        %2758 = vmatprep.mubr.f32.mxu0 0.0
        %2759 = vmatmul.mubr.f32.gmra.mxu0 %v2537
        %v2760 = vpop.f32.mrf.mxu0
        %v2761 = vadd.f32 0.0, %v2760
        %v2762 = vpop.f32.mrf.mxu0
        %2763 = vdwg.mxu0
        %v2764 = vadd.f32 %v2377, %v2606
        %v2765 = vadd.f32 %v2378, %v2611
        %v2766 = vadd.f32 %v2379, %v2616
        %v2767 = vadd.f32 %v2380, %v2621
        %v2768 = vadd.f32 %v2381, %v2626
        %v2769 = vadd.f32 %v2382, %v2631
        %v2770 = vadd.f32 %v2383, %v2636
        %v2771 = vadd.f32 %v2384, %v2641
        %v2772 = vadd.f32 %v2385, %v2646
        %v2773 = vadd.f32 %v2386, %v2651
        %v2774 = vadd.f32 %v2387, %v2656
        %v2775 = vadd.f32 %v2388, %v2661
        %v2776 = vadd.f32 %v2389, %v2666
        %v2777 = vadd.f32 %v2390, %v2671
        %v2778 = vadd.f32 %v2391, %v2676
        %v2779 = vadd.f32 %v2392, %v2681
        %v2780 = vadd.f32 %v2393, %v2686
        %v2781 = vadd.f32 %v2394, %v2691
        %v2782 = vadd.f32 %v2395, %v2696
        %v2783 = vadd.f32 %v2396, %v2701
        %v2784 = vadd.f32 %v2397, %v2706
        %v2785 = vadd.f32 %v2398, %v2711
        %v2786 = vadd.f32 %v2399, %v2716
        %v2787 = vadd.f32 %v2400, %v2721
        %v2788 = vadd.f32 %v2401, %v2726
        %v2789 = vadd.f32 %v2402, %v2731
        %v2790 = vadd.f32 %v2403, %v2736
        %v2791 = vadd.f32 %v2404, %v2741
        %v2792 = vadd.f32 %v2405, %v2746
        %v2793 = vadd.f32 %v2406, %v2751
        %v2794 = vadd.f32 %v2407, %v2756
        %v2795 = vadd.f32 %v2408, %v2761
        %v2796 = vld [vmem:[%s1280 + $0x1] sm:$0xff]
        %v2797 = vld [vmem:[%s1280 + $0x9] sm:$0xff]
        %v2798 = vld [vmem:[%s1280 + $0x19] sm:$0xff]
        %v2799 = vld [vmem:[%s1280 + $0x21] sm:$0xff]
        %v2800 = vld [vmem:[%s1280 + $0x31] sm:$0xff]
        %v2801 = vld [vmem:[%s1280 + $0x39] sm:$0xff]
        %v2802 = vld [vmem:[%s1280 + $0x49] sm:$0xff]
        %v2803 = vld [vmem:[%s1280 + $0x51] sm:$0xff]
        %v2804 = vld [vmem:[%s1280 + $0x61] sm:$0xff]
        %v2805 = vld [vmem:[%s1280 + $0x69] sm:$0xff]
        %v2806 = vld [vmem:[%s1280 + $0x79] sm:$0xff]
        %v2807 = vld [vmem:[%s1280 + $0x81] sm:$0xff]
        %v2808 = vld [vmem:[%s1280 + $0x91] sm:$0xff]
        %v2809 = vld [vmem:[%s1280 + $0x99] sm:$0xff]
        %v2810 = vld [vmem:[%s1280 + $0xa9] sm:$0xff]
        %v2811 = vld [vmem:[%s1280 + $0xb1] sm:$0xff]
        %v2812 = vld [vmem:[%s1280 + $0xc1] sm:$0xff]
        %v2813 = vld [vmem:[%s1280 + $0xc9] sm:$0xff]
        %v2814 = vld [vmem:[%s1280 + $0xd9] sm:$0xff]
        %v2815 = vld [vmem:[%s1280 + $0xe1] sm:$0xff]
        %v2816 = vld [vmem:[%s1280 + $0xf1] sm:$0xff]
        %v2817 = vld [vmem:[%s1280 + $0xf9] sm:$0xff]
        %v2818 = vld [vmem:[%s1280 + $0x109] sm:$0xff]
        %v2819 = vld [vmem:[%s1280 + $0x111] sm:$0xff]
        %v2820 = vld [vmem:[%s1280 + $0x121] sm:$0xff]
        %v2821 = vld [vmem:[%s1280 + $0x129] sm:$0xff]
        %v2822 = vld [vmem:[%s1280 + $0x139] sm:$0xff]
        %v2823 = vld [vmem:[%s1280 + $0x141] sm:$0xff]
        %v2824 = vld [vmem:[%s1280 + $0x151] sm:$0xff]
        %v2825 = vld [vmem:[%s1280 + $0x159] sm:$0xff]
        %v2826 = vld [vmem:[%s1280 + $0x169] sm:$0xff]
        %v2827 = vld [vmem:[%s1280 + $0x171] sm:$0xff]
        %s2828 = scalar_lea.vmem %s7, 32
        %v2829 = vld [vmem:[%s2828] sm:$0xff]
        %v2831 = vsel %vm671, %v2796, 0
        %v2834 = vsel %vm671, %v2797, 0
        %v2837 = vsel %vm671, %v2798, 0
        %v2840 = vsel %vm671, %v2799, 0
        %v2843 = vsel %vm671, %v2800, 0
        %v2846 = vsel %vm671, %v2801, 0
        %v2849 = vsel %vm671, %v2802, 0
        %v2852 = vsel %vm671, %v2803, 0
        %v2855 = vsel %vm671, %v2804, 0
        %v2858 = vsel %vm671, %v2805, 0
        %v2861 = vsel %vm671, %v2806, 0
        %v2864 = vsel %vm671, %v2807, 0
        %v2867 = vsel %vm671, %v2808, 0
        %v2870 = vsel %vm671, %v2809, 0
        %v2873 = vsel %vm671, %v2810, 0
        %v2876 = vsel %vm671, %v2811, 0
        %v2879 = vsel %vm671, %v2812, 0
        %v2882 = vsel %vm671, %v2813, 0
        %v2885 = vsel %vm671, %v2814, 0
        %v2888 = vsel %vm671, %v2815, 0
        %v2891 = vsel %vm671, %v2816, 0
        %v2894 = vsel %vm671, %v2817, 0
        %v2897 = vsel %vm671, %v2818, 0
        %v2900 = vsel %vm671, %v2819, 0
        %v2903 = vsel %vm671, %v2820, 0
        %v2906 = vsel %vm671, %v2821, 0
        %v2909 = vsel %vm671, %v2822, 0
        %v2912 = vsel %vm671, %v2823, 0
        %v2915 = vsel %vm671, %v2824, 0
        %v2918 = vsel %vm671, %v2825, 0
        %v2921 = vsel %vm671, %v2826, 0
        %v2924 = vsel %vm671, %v2827, 0
        %2926 = vmatprep.subr.mxu0 0.0
        %2927 = vmatpush1.msra.mxu0 0.0
        %2928 = vmatprep.subr.mxu0 0.0
        %2929 = vmatpush1.msra.mxu0 0.0
        %2930 = vmatprep.subr.mxu0 0.0
        %2931 = vmatpush1.msra.mxu0 0.0
        %2932 = vmatprep.subr.mxu0 0.0
        %2933 = vmatpush1.msra.mxu0 0.0
        %2934 = vmatprep.subr.mxu0 0.0
        %2935 = vmatpush1.msra.mxu0 0.0
        %2936 = vmatprep.subr.mxu0 0.0
        %2937 = vmatpush1.msra.mxu0 0.0
        %2938 = vmatprep.subr.mxu0 0.0
        %2939 = vmatpush1.msra.mxu0 0.0
        %2940 = vmatprep.subr.mxu0 0.0
        %2941 = vmatpush1.msra.mxu0 0.0
        %2942 = vmatprep.subr.mxu0 0.0
        %2943 = vmatpush1.msra.mxu0 0.0
        %2944 = vmatprep.subr.mxu0 0.0
        %2945 = vmatpush1.msra.mxu0 0.0
        %2946 = vmatprep.subr.mxu0 0.0
        %2947 = vmatpush1.msra.mxu0 0.0
        %2948 = vmatprep.subr.mxu0 0.0
        %2949 = vmatpush1.msra.mxu0 0.0
        %2950 = vmatprep.subr.mxu0 0.0
        %2951 = vmatpush1.msra.mxu0 0.0
        %2952 = vmatprep.subr.mxu0 0.0
        %2953 = vmatpush1.msra.mxu0 0.0
        %2954 = vmatprep.subr.mxu0 0.0
        %2955 = vmatpush1.msra.mxu0 0.0
        %2956 = vmatprep.subr.mxu0 0.0
        %2957 = vmatpush1.msra.mxu0 %v2829
        %2958 = vmatprep.subr.mxu0 0.0
        %2959 = vmatpush2.msra.mxu0 0.0
        %2960 = vmatprep.subr.mxu0 0.0
        %2961 = vmatpush2.msra.mxu0 0.0
        %2962 = vmatprep.subr.mxu0 0.0
        %2963 = vmatpush2.msra.mxu0 0.0
        %2964 = vmatprep.subr.mxu0 0.0
        %2965 = vmatpush2.msra.mxu0 0.0
        %2966 = vmatprep.subr.mxu0 0.0
        %2967 = vmatpush2.msra.mxu0 0.0
        %2968 = vmatprep.subr.mxu0 0.0
        %2969 = vmatpush2.msra.mxu0 0.0
        %2970 = vmatprep.subr.mxu0 0.0
        %2971 = vmatpush2.msra.mxu0 0.0
        %2972 = vmatprep.subr.mxu0 0.0
        %2973 = vmatpush2.msra.mxu0 0.0
        %2974 = vmatprep.subr.mxu0 0.0
        %2975 = vmatpush2.msra.mxu0 0.0
        %2976 = vmatprep.subr.mxu0 0.0
        %2977 = vmatpush2.msra.mxu0 0.0
        %2978 = vmatprep.subr.mxu0 0.0
        %2979 = vmatpush2.msra.mxu0 0.0
        %2980 = vmatprep.subr.mxu0 0.0
        %2981 = vmatpush2.msra.mxu0 0.0
        %2982 = vmatprep.subr.mxu0 0.0
        %2983 = vmatpush2.msra.mxu0 0.0
        %2984 = vmatprep.subr.mxu0 0.0
        %2985 = vmatpush2.msra.mxu0 0.0
        %2986 = vmatprep.subr.mxu0 0.0
        %2987 = vmatpush2.msra.mxu0 0.0
        %2988 = vmatprep.subr.mxu0 0.0
        %2989 = vmatpush2.msra.mxu0 0.0
        %2990 = vmatprep.mubr.f32.mxu0 0.0
        %2991 = vmatmul.mubr.f32.gmra.mxu0 %v2831
        %v2992 = vpop.f32.mrf.mxu0
        %v2993 = vadd.f32 0.0, %v2992
        %v2994 = vpop.f32.mrf.mxu0
        %2995 = vmatprep.mubr.f32.mxu0 0.0
        %2996 = vmatmul.mubr.f32.gmra.mxu0 %v2834
        %v2997 = vpop.f32.mrf.mxu0
        %v2998 = vadd.f32 0.0, %v2997
        %v2999 = vpop.f32.mrf.mxu0
        %3000 = vmatprep.mubr.f32.mxu0 0.0
        %3001 = vmatmul.mubr.f32.gmra.mxu0 %v2837
        %v3002 = vpop.f32.mrf.mxu0
        %v3003 = vadd.f32 0.0, %v3002
        %v3004 = vpop.f32.mrf.mxu0
        %3005 = vmatprep.mubr.f32.mxu0 0.0
        %3006 = vmatmul.mubr.f32.gmra.mxu0 %v2840
        %v3007 = vpop.f32.mrf.mxu0
        %v3008 = vadd.f32 0.0, %v3007
        %v3009 = vpop.f32.mrf.mxu0
        %3010 = vmatprep.mubr.f32.mxu0 0.0
        %3011 = vmatmul.mubr.f32.gmra.mxu0 %v2843
        %v3012 = vpop.f32.mrf.mxu0
        %v3013 = vadd.f32 0.0, %v3012
        %v3014 = vpop.f32.mrf.mxu0
        %3015 = vmatprep.mubr.f32.mxu0 0.0
        %3016 = vmatmul.mubr.f32.gmra.mxu0 %v2846
        %v3017 = vpop.f32.mrf.mxu0
        %v3018 = vadd.f32 0.0, %v3017
        %v3019 = vpop.f32.mrf.mxu0
        %3020 = vmatprep.mubr.f32.mxu0 0.0
        %3021 = vmatmul.mubr.f32.gmra.mxu0 %v2849
        %v3022 = vpop.f32.mrf.mxu0
        %v3023 = vadd.f32 0.0, %v3022
        %v3024 = vpop.f32.mrf.mxu0
        %3025 = vmatprep.mubr.f32.mxu0 0.0
        %3026 = vmatmul.mubr.f32.gmra.mxu0 %v2852
        %v3027 = vpop.f32.mrf.mxu0
        %v3028 = vadd.f32 0.0, %v3027
        %v3029 = vpop.f32.mrf.mxu0
        %3030 = vmatprep.mubr.f32.mxu0 0.0
        %3031 = vmatmul.mubr.f32.gmra.mxu0 %v2855
        %v3032 = vpop.f32.mrf.mxu0
        %v3033 = vadd.f32 0.0, %v3032
        %v3034 = vpop.f32.mrf.mxu0
        %3035 = vmatprep.mubr.f32.mxu0 0.0
        %3036 = vmatmul.mubr.f32.gmra.mxu0 %v2858
        %v3037 = vpop.f32.mrf.mxu0
        %v3038 = vadd.f32 0.0, %v3037
        %v3039 = vpop.f32.mrf.mxu0
        %3040 = vmatprep.mubr.f32.mxu0 0.0
        %3041 = vmatmul.mubr.f32.gmra.mxu0 %v2861
        %v3042 = vpop.f32.mrf.mxu0
        %v3043 = vadd.f32 0.0, %v3042
        %v3044 = vpop.f32.mrf.mxu0
        %3045 = vmatprep.mubr.f32.mxu0 0.0
        %3046 = vmatmul.mubr.f32.gmra.mxu0 %v2864
        %v3047 = vpop.f32.mrf.mxu0
        %v3048 = vadd.f32 0.0, %v3047
        %v3049 = vpop.f32.mrf.mxu0
        %3050 = vmatprep.mubr.f32.mxu0 0.0
        %3051 = vmatmul.mubr.f32.gmra.mxu0 %v2867
        %v3052 = vpop.f32.mrf.mxu0
        %v3053 = vadd.f32 0.0, %v3052
        %v3054 = vpop.f32.mrf.mxu0
        %3055 = vmatprep.mubr.f32.mxu0 0.0
        %3056 = vmatmul.mubr.f32.gmra.mxu0 %v2870
        %v3057 = vpop.f32.mrf.mxu0
        %v3058 = vadd.f32 0.0, %v3057
        %v3059 = vpop.f32.mrf.mxu0
        %3060 = vmatprep.mubr.f32.mxu0 0.0
        %3061 = vmatmul.mubr.f32.gmra.mxu0 %v2873
        %v3062 = vpop.f32.mrf.mxu0
        %v3063 = vadd.f32 0.0, %v3062
        %v3064 = vpop.f32.mrf.mxu0
        %3065 = vmatprep.mubr.f32.mxu0 0.0
        %3066 = vmatmul.mubr.f32.gmra.mxu0 %v2876
        %v3067 = vpop.f32.mrf.mxu0
        %v3068 = vadd.f32 0.0, %v3067
        %v3069 = vpop.f32.mrf.mxu0
        %3070 = vmatprep.mubr.f32.mxu0 0.0
        %3071 = vmatmul.mubr.f32.gmra.mxu0 %v2879
        %v3072 = vpop.f32.mrf.mxu0
        %v3073 = vadd.f32 0.0, %v3072
        %v3074 = vpop.f32.mrf.mxu0
        %3075 = vmatprep.mubr.f32.mxu0 0.0
        %3076 = vmatmul.mubr.f32.gmra.mxu0 %v2882
        %v3077 = vpop.f32.mrf.mxu0
        %v3078 = vadd.f32 0.0, %v3077
        %v3079 = vpop.f32.mrf.mxu0
        %3080 = vmatprep.mubr.f32.mxu0 0.0
        %3081 = vmatmul.mubr.f32.gmra.mxu0 %v2885
        %v3082 = vpop.f32.mrf.mxu0
        %v3083 = vadd.f32 0.0, %v3082
        %v3084 = vpop.f32.mrf.mxu0
        %3085 = vmatprep.mubr.f32.mxu0 0.0
        %3086 = vmatmul.mubr.f32.gmra.mxu0 %v2888
        %v3087 = vpop.f32.mrf.mxu0
        %v3088 = vadd.f32 0.0, %v3087
        %v3089 = vpop.f32.mrf.mxu0
        %3090 = vmatprep.mubr.f32.mxu0 0.0
        %3091 = vmatmul.mubr.f32.gmra.mxu0 %v2891
        %v3092 = vpop.f32.mrf.mxu0
        %v3093 = vadd.f32 0.0, %v3092
        %v3094 = vpop.f32.mrf.mxu0
        %3095 = vmatprep.mubr.f32.mxu0 0.0
        %3096 = vmatmul.mubr.f32.gmra.mxu0 %v2894
        %v3097 = vpop.f32.mrf.mxu0
        %v3098 = vadd.f32 0.0, %v3097
        %v3099 = vpop.f32.mrf.mxu0
        %3100 = vmatprep.mubr.f32.mxu0 0.0
        %3101 = vmatmul.mubr.f32.gmra.mxu0 %v2897
        %v3102 = vpop.f32.mrf.mxu0
        %v3103 = vadd.f32 0.0, %v3102
        %v3104 = vpop.f32.mrf.mxu0
        %3105 = vmatprep.mubr.f32.mxu0 0.0
        %3106 = vmatmul.mubr.f32.gmra.mxu0 %v2900
        %v3107 = vpop.f32.mrf.mxu0
        %v3108 = vadd.f32 0.0, %v3107
        %v3109 = vpop.f32.mrf.mxu0
        %3110 = vmatprep.mubr.f32.mxu0 0.0
        %3111 = vmatmul.mubr.f32.gmra.mxu0 %v2903
        %v3112 = vpop.f32.mrf.mxu0
        %v3113 = vadd.f32 0.0, %v3112
        %v3114 = vpop.f32.mrf.mxu0
        %3115 = vmatprep.mubr.f32.mxu0 0.0
        %3116 = vmatmul.mubr.f32.gmra.mxu0 %v2906
        %v3117 = vpop.f32.mrf.mxu0
        %v3118 = vadd.f32 0.0, %v3117
        %v3119 = vpop.f32.mrf.mxu0
        %3120 = vmatprep.mubr.f32.mxu0 0.0
        %3121 = vmatmul.mubr.f32.gmra.mxu0 %v2909
        %v3122 = vpop.f32.mrf.mxu0
        %v3123 = vadd.f32 0.0, %v3122
        %v3124 = vpop.f32.mrf.mxu0
        %3125 = vmatprep.mubr.f32.mxu0 0.0
        %3126 = vmatmul.mubr.f32.gmra.mxu0 %v2912
        %v3127 = vpop.f32.mrf.mxu0
        %v3128 = vadd.f32 0.0, %v3127
        %v3129 = vpop.f32.mrf.mxu0
        %3130 = vmatprep.mubr.f32.mxu0 0.0
        %3131 = vmatmul.mubr.f32.gmra.mxu0 %v2915
        %v3132 = vpop.f32.mrf.mxu0
        %v3133 = vadd.f32 0.0, %v3132
        %v3134 = vpop.f32.mrf.mxu0
        %3135 = vmatprep.mubr.f32.mxu0 0.0
        %3136 = vmatmul.mubr.f32.gmra.mxu0 %v2918
        %v3137 = vpop.f32.mrf.mxu0
        %v3138 = vadd.f32 0.0, %v3137
        %v3139 = vpop.f32.mrf.mxu0
        %3140 = vmatprep.mubr.f32.mxu0 0.0
        %3141 = vmatmul.mubr.f32.gmra.mxu0 %v2921
        %v3142 = vpop.f32.mrf.mxu0
        %v3143 = vadd.f32 0.0, %v3142
        %v3144 = vpop.f32.mrf.mxu0
        %3145 = vmatprep.mubr.f32.mxu0 0.0
        %3146 = vmatmul.mubr.f32.gmra.mxu0 %v2924
        %v3147 = vpop.f32.mrf.mxu0
        %v3148 = vadd.f32 0.0, %v3147
        %v3149 = vpop.f32.mrf.mxu0
        %3150 = vdwg.mxu0
        %v3151 = vadd.f32 %v2764, %v2993
        %v3152 = vadd.f32 %v2765, %v2998
        %v3153 = vadd.f32 %v2766, %v3003
        %v3154 = vadd.f32 %v2767, %v3008
        %v3155 = vadd.f32 %v2768, %v3013
        %v3156 = vadd.f32 %v2769, %v3018
        %v3157 = vadd.f32 %v2770, %v3023
        %v3158 = vadd.f32 %v2771, %v3028
        %v3159 = vadd.f32 %v2772, %v3033
        %v3160 = vadd.f32 %v2773, %v3038
        %v3161 = vadd.f32 %v2774, %v3043
        %v3162 = vadd.f32 %v2775, %v3048
        %v3163 = vadd.f32 %v2776, %v3053
        %v3164 = vadd.f32 %v2777, %v3058
        %v3165 = vadd.f32 %v2778, %v3063
        %v3166 = vadd.f32 %v2779, %v3068
        %v3167 = vadd.f32 %v2780, %v3073
        %v3168 = vadd.f32 %v2781, %v3078
        %v3169 = vadd.f32 %v2782, %v3083
        %v3170 = vadd.f32 %v2783, %v3088
        %v3171 = vadd.f32 %v2784, %v3093
        %v3172 = vadd.f32 %v2785, %v3098
        %v3173 = vadd.f32 %v2786, %v3103
        %v3174 = vadd.f32 %v2787, %v3108
        %v3175 = vadd.f32 %v2788, %v3113
        %v3176 = vadd.f32 %v2789, %v3118
        %v3177 = vadd.f32 %v2790, %v3123
        %v3178 = vadd.f32 %v2791, %v3128
        %v3179 = vadd.f32 %v2792, %v3133
        %v3180 = vadd.f32 %v2793, %v3138
        %v3181 = vadd.f32 %v2794, %v3143
        %v3182 = vadd.f32 %v2795, %v3148
        %v3183 = vld [vmem:[%s1280 + $0x2] sm:$0xff]
        %v3184 = vld [vmem:[%s1280 + $0xa] sm:$0xff]
        %v3185 = vld [vmem:[%s1280 + $0x1a] sm:$0xff]
        %v3186 = vld [vmem:[%s1280 + $0x22] sm:$0xff]
        %v3187 = vld [vmem:[%s1280 + $0x32] sm:$0xff]
        %v3188 = vld [vmem:[%s1280 + $0x3a] sm:$0xff]
        %v3189 = vld [vmem:[%s1280 + $0x4a] sm:$0xff]
        %v3190 = vld [vmem:[%s1280 + $0x52] sm:$0xff]
        %v3191 = vld [vmem:[%s1280 + $0x62] sm:$0xff]
        %v3192 = vld [vmem:[%s1280 + $0x6a] sm:$0xff]
        %v3193 = vld [vmem:[%s1280 + $0x7a] sm:$0xff]
        %v3194 = vld [vmem:[%s1280 + $0x82] sm:$0xff]
        %v3195 = vld [vmem:[%s1280 + $0x92] sm:$0xff]
        %v3196 = vld [vmem:[%s1280 + $0x9a] sm:$0xff]
        %v3197 = vld [vmem:[%s1280 + $0xaa] sm:$0xff]
        %v3198 = vld [vmem:[%s1280 + $0xb2] sm:$0xff]
        %v3199 = vld [vmem:[%s1280 + $0xc2] sm:$0xff]
        %v3200 = vld [vmem:[%s1280 + $0xca] sm:$0xff]
        %v3201 = vld [vmem:[%s1280 + $0xda] sm:$0xff]
        %v3202 = vld [vmem:[%s1280 + $0xe2] sm:$0xff]
        %v3203 = vld [vmem:[%s1280 + $0xf2] sm:$0xff]
        %v3204 = vld [vmem:[%s1280 + $0xfa] sm:$0xff]
        %v3205 = vld [vmem:[%s1280 + $0x10a] sm:$0xff]
        %v3206 = vld [vmem:[%s1280 + $0x112] sm:$0xff]
        %v3207 = vld [vmem:[%s1280 + $0x122] sm:$0xff]
        %v3208 = vld [vmem:[%s1280 + $0x12a] sm:$0xff]
        %v3209 = vld [vmem:[%s1280 + $0x13a] sm:$0xff]
        %v3210 = vld [vmem:[%s1280 + $0x142] sm:$0xff]
        %v3211 = vld [vmem:[%s1280 + $0x152] sm:$0xff]
        %v3212 = vld [vmem:[%s1280 + $0x15a] sm:$0xff]
        %v3213 = vld [vmem:[%s1280 + $0x16a] sm:$0xff]
        %v3214 = vld [vmem:[%s1280 + $0x172] sm:$0xff]
        %s3215 = scalar_lea.vmem %s7, 40
        %v3216 = vld [vmem:[%s3215] sm:$0xff]
        %v3218 = vsel %vm671, %v3183, 0
        %v3221 = vsel %vm671, %v3184, 0
        %v3224 = vsel %vm671, %v3185, 0
        %v3227 = vsel %vm671, %v3186, 0
        %v3230 = vsel %vm671, %v3187, 0
        %v3233 = vsel %vm671, %v3188, 0
        %v3236 = vsel %vm671, %v3189, 0
        %v3239 = vsel %vm671, %v3190, 0
        %v3242 = vsel %vm671, %v3191, 0
        %v3245 = vsel %vm671, %v3192, 0
        %v3248 = vsel %vm671, %v3193, 0
        %v3251 = vsel %vm671, %v3194, 0
        %v3254 = vsel %vm671, %v3195, 0
        %v3257 = vsel %vm671, %v3196, 0
        %v3260 = vsel %vm671, %v3197, 0
        %v3263 = vsel %vm671, %v3198, 0
        %v3266 = vsel %vm671, %v3199, 0
        %v3269 = vsel %vm671, %v3200, 0
        %v3272 = vsel %vm671, %v3201, 0
        %v3275 = vsel %vm671, %v3202, 0
        %v3278 = vsel %vm671, %v3203, 0
        %v3281 = vsel %vm671, %v3204, 0
        %v3284 = vsel %vm671, %v3205, 0
        %v3287 = vsel %vm671, %v3206, 0
        %v3290 = vsel %vm671, %v3207, 0
        %v3293 = vsel %vm671, %v3208, 0
        %v3296 = vsel %vm671, %v3209, 0
        %v3299 = vsel %vm671, %v3210, 0
        %v3302 = vsel %vm671, %v3211, 0
        %v3305 = vsel %vm671, %v3212, 0
        %v3308 = vsel %vm671, %v3213, 0
        %v3311 = vsel %vm671, %v3214, 0
        %3313 = vmatprep.subr.mxu0 0.0
        %3314 = vmatpush1.msra.mxu0 0.0
        %3315 = vmatprep.subr.mxu0 0.0
        %3316 = vmatpush1.msra.mxu0 0.0
        %3317 = vmatprep.subr.mxu0 0.0
        %3318 = vmatpush1.msra.mxu0 0.0
        %3319 = vmatprep.subr.mxu0 0.0
        %3320 = vmatpush1.msra.mxu0 0.0
        %3321 = vmatprep.subr.mxu0 0.0
        %3322 = vmatpush1.msra.mxu0 0.0
        %3323 = vmatprep.subr.mxu0 0.0
        %3324 = vmatpush1.msra.mxu0 0.0
        %3325 = vmatprep.subr.mxu0 0.0
        %3326 = vmatpush1.msra.mxu0 0.0
        %3327 = vmatprep.subr.mxu0 0.0
        %3328 = vmatpush1.msra.mxu0 0.0
        %3329 = vmatprep.subr.mxu0 0.0
        %3330 = vmatpush1.msra.mxu0 0.0
        %3331 = vmatprep.subr.mxu0 0.0
        %3332 = vmatpush1.msra.mxu0 0.0
        %3333 = vmatprep.subr.mxu0 0.0
        %3334 = vmatpush1.msra.mxu0 0.0
        %3335 = vmatprep.subr.mxu0 0.0
        %3336 = vmatpush1.msra.mxu0 0.0
        %3337 = vmatprep.subr.mxu0 0.0
        %3338 = vmatpush1.msra.mxu0 0.0
        %3339 = vmatprep.subr.mxu0 0.0
        %3340 = vmatpush1.msra.mxu0 0.0
        %3341 = vmatprep.subr.mxu0 0.0
        %3342 = vmatpush1.msra.mxu0 0.0
        %3343 = vmatprep.subr.mxu0 0.0
        %3344 = vmatpush1.msra.mxu0 %v3216
        %3345 = vmatprep.subr.mxu0 0.0
        %3346 = vmatpush2.msra.mxu0 0.0
        %3347 = vmatprep.subr.mxu0 0.0
        %3348 = vmatpush2.msra.mxu0 0.0
        %3349 = vmatprep.subr.mxu0 0.0
        %3350 = vmatpush2.msra.mxu0 0.0
        %3351 = vmatprep.subr.mxu0 0.0
        %3352 = vmatpush2.msra.mxu0 0.0
        %3353 = vmatprep.subr.mxu0 0.0
        %3354 = vmatpush2.msra.mxu0 0.0
        %3355 = vmatprep.subr.mxu0 0.0
        %3356 = vmatpush2.msra.mxu0 0.0
        %3357 = vmatprep.subr.mxu0 0.0
        %3358 = vmatpush2.msra.mxu0 0.0
        %3359 = vmatprep.subr.mxu0 0.0
        %3360 = vmatpush2.msra.mxu0 0.0
        %3361 = vmatprep.subr.mxu0 0.0
        %3362 = vmatpush2.msra.mxu0 0.0
        %3363 = vmatprep.subr.mxu0 0.0
        %3364 = vmatpush2.msra.mxu0 0.0
        %3365 = vmatprep.subr.mxu0 0.0
        %3366 = vmatpush2.msra.mxu0 0.0
        %3367 = vmatprep.subr.mxu0 0.0
        %3368 = vmatpush2.msra.mxu0 0.0
        %3369 = vmatprep.subr.mxu0 0.0
        %3370 = vmatpush2.msra.mxu0 0.0
        %3371 = vmatprep.subr.mxu0 0.0
        %3372 = vmatpush2.msra.mxu0 0.0
        %3373 = vmatprep.subr.mxu0 0.0
        %3374 = vmatpush2.msra.mxu0 0.0
        %3375 = vmatprep.subr.mxu0 0.0
        %3376 = vmatpush2.msra.mxu0 0.0
        %3377 = vmatprep.mubr.f32.mxu0 0.0
        %3378 = vmatmul.mubr.f32.gmra.mxu0 %v3218
        %v3379 = vpop.f32.mrf.mxu0
        %v3380 = vadd.f32 0.0, %v3379
        %v3381 = vpop.f32.mrf.mxu0
        %3382 = vmatprep.mubr.f32.mxu0 0.0
        %3383 = vmatmul.mubr.f32.gmra.mxu0 %v3221
        %v3384 = vpop.f32.mrf.mxu0
        %v3385 = vadd.f32 0.0, %v3384
        %v3386 = vpop.f32.mrf.mxu0
        %3387 = vmatprep.mubr.f32.mxu0 0.0
        %3388 = vmatmul.mubr.f32.gmra.mxu0 %v3224
        %v3389 = vpop.f32.mrf.mxu0
        %v3390 = vadd.f32 0.0, %v3389
        %v3391 = vpop.f32.mrf.mxu0
        %3392 = vmatprep.mubr.f32.mxu0 0.0
        %3393 = vmatmul.mubr.f32.gmra.mxu0 %v3227
        %v3394 = vpop.f32.mrf.mxu0
        %v3395 = vadd.f32 0.0, %v3394
        %v3396 = vpop.f32.mrf.mxu0
        %3397 = vmatprep.mubr.f32.mxu0 0.0
        %3398 = vmatmul.mubr.f32.gmra.mxu0 %v3230
        %v3399 = vpop.f32.mrf.mxu0
        %v3400 = vadd.f32 0.0, %v3399
        %v3401 = vpop.f32.mrf.mxu0
        %3402 = vmatprep.mubr.f32.mxu0 0.0
        %3403 = vmatmul.mubr.f32.gmra.mxu0 %v3233
        %v3404 = vpop.f32.mrf.mxu0
        %v3405 = vadd.f32 0.0, %v3404
        %v3406 = vpop.f32.mrf.mxu0
        %3407 = vmatprep.mubr.f32.mxu0 0.0
        %3408 = vmatmul.mubr.f32.gmra.mxu0 %v3236
        %v3409 = vpop.f32.mrf.mxu0
        %v3410 = vadd.f32 0.0, %v3409
        %v3411 = vpop.f32.mrf.mxu0
        %3412 = vmatprep.mubr.f32.mxu0 0.0
        %3413 = vmatmul.mubr.f32.gmra.mxu0 %v3239
        %v3414 = vpop.f32.mrf.mxu0
        %v3415 = vadd.f32 0.0, %v3414
        %v3416 = vpop.f32.mrf.mxu0
        %3417 = vmatprep.mubr.f32.mxu0 0.0
        %3418 = vmatmul.mubr.f32.gmra.mxu0 %v3242
        %v3419 = vpop.f32.mrf.mxu0
        %v3420 = vadd.f32 0.0, %v3419
        %v3421 = vpop.f32.mrf.mxu0
        %3422 = vmatprep.mubr.f32.mxu0 0.0
        %3423 = vmatmul.mubr.f32.gmra.mxu0 %v3245
        %v3424 = vpop.f32.mrf.mxu0
        %v3425 = vadd.f32 0.0, %v3424
        %v3426 = vpop.f32.mrf.mxu0
        %3427 = vmatprep.mubr.f32.mxu0 0.0
        %3428 = vmatmul.mubr.f32.gmra.mxu0 %v3248
        %v3429 = vpop.f32.mrf.mxu0
        %v3430 = vadd.f32 0.0, %v3429
        %v3431 = vpop.f32.mrf.mxu0
        %3432 = vmatprep.mubr.f32.mxu0 0.0
        %3433 = vmatmul.mubr.f32.gmra.mxu0 %v3251
        %v3434 = vpop.f32.mrf.mxu0
        %v3435 = vadd.f32 0.0, %v3434
        %v3436 = vpop.f32.mrf.mxu0
        %3437 = vmatprep.mubr.f32.mxu0 0.0
        %3438 = vmatmul.mubr.f32.gmra.mxu0 %v3254
        %v3439 = vpop.f32.mrf.mxu0
        %v3440 = vadd.f32 0.0, %v3439
        %v3441 = vpop.f32.mrf.mxu0
        %3442 = vmatprep.mubr.f32.mxu0 0.0
        %3443 = vmatmul.mubr.f32.gmra.mxu0 %v3257
        %v3444 = vpop.f32.mrf.mxu0
        %v3445 = vadd.f32 0.0, %v3444
        %v3446 = vpop.f32.mrf.mxu0
        %3447 = vmatprep.mubr.f32.mxu0 0.0
        %3448 = vmatmul.mubr.f32.gmra.mxu0 %v3260
        %v3449 = vpop.f32.mrf.mxu0
        %v3450 = vadd.f32 0.0, %v3449
        %v3451 = vpop.f32.mrf.mxu0
        %3452 = vmatprep.mubr.f32.mxu0 0.0
        %3453 = vmatmul.mubr.f32.gmra.mxu0 %v3263
        %v3454 = vpop.f32.mrf.mxu0
        %v3455 = vadd.f32 0.0, %v3454
        %v3456 = vpop.f32.mrf.mxu0
        %3457 = vmatprep.mubr.f32.mxu0 0.0
        %3458 = vmatmul.mubr.f32.gmra.mxu0 %v3266
        %v3459 = vpop.f32.mrf.mxu0
        %v3460 = vadd.f32 0.0, %v3459
        %v3461 = vpop.f32.mrf.mxu0
        %3462 = vmatprep.mubr.f32.mxu0 0.0
        %3463 = vmatmul.mubr.f32.gmra.mxu0 %v3269
        %v3464 = vpop.f32.mrf.mxu0
        %v3465 = vadd.f32 0.0, %v3464
        %v3466 = vpop.f32.mrf.mxu0
        %3467 = vmatprep.mubr.f32.mxu0 0.0
        %3468 = vmatmul.mubr.f32.gmra.mxu0 %v3272
        %v3469 = vpop.f32.mrf.mxu0
        %v3470 = vadd.f32 0.0, %v3469
        %v3471 = vpop.f32.mrf.mxu0
        %3472 = vmatprep.mubr.f32.mxu0 0.0
        %3473 = vmatmul.mubr.f32.gmra.mxu0 %v3275
        %v3474 = vpop.f32.mrf.mxu0
        %v3475 = vadd.f32 0.0, %v3474
        %v3476 = vpop.f32.mrf.mxu0
        %3477 = vmatprep.mubr.f32.mxu0 0.0
        %3478 = vmatmul.mubr.f32.gmra.mxu0 %v3278
        %v3479 = vpop.f32.mrf.mxu0
        %v3480 = vadd.f32 0.0, %v3479
        %v3481 = vpop.f32.mrf.mxu0
        %3482 = vmatprep.mubr.f32.mxu0 0.0
        %3483 = vmatmul.mubr.f32.gmra.mxu0 %v3281
        %v3484 = vpop.f32.mrf.mxu0
        %v3485 = vadd.f32 0.0, %v3484
        %v3486 = vpop.f32.mrf.mxu0
        %3487 = vmatprep.mubr.f32.mxu0 0.0
        %3488 = vmatmul.mubr.f32.gmra.mxu0 %v3284
        %v3489 = vpop.f32.mrf.mxu0
        %v3490 = vadd.f32 0.0, %v3489
        %v3491 = vpop.f32.mrf.mxu0
        %3492 = vmatprep.mubr.f32.mxu0 0.0
        %3493 = vmatmul.mubr.f32.gmra.mxu0 %v3287
        %v3494 = vpop.f32.mrf.mxu0
        %v3495 = vadd.f32 0.0, %v3494
        %v3496 = vpop.f32.mrf.mxu0
        %3497 = vmatprep.mubr.f32.mxu0 0.0
        %3498 = vmatmul.mubr.f32.gmra.mxu0 %v3290
        %v3499 = vpop.f32.mrf.mxu0
        %v3500 = vadd.f32 0.0, %v3499
        %v3501 = vpop.f32.mrf.mxu0
        %3502 = vmatprep.mubr.f32.mxu0 0.0
        %3503 = vmatmul.mubr.f32.gmra.mxu0 %v3293
        %v3504 = vpop.f32.mrf.mxu0
        %v3505 = vadd.f32 0.0, %v3504
        %v3506 = vpop.f32.mrf.mxu0
        %3507 = vmatprep.mubr.f32.mxu0 0.0
        %3508 = vmatmul.mubr.f32.gmra.mxu0 %v3296
        %v3509 = vpop.f32.mrf.mxu0
        %v3510 = vadd.f32 0.0, %v3509
        %v3511 = vpop.f32.mrf.mxu0
        %3512 = vmatprep.mubr.f32.mxu0 0.0
        %3513 = vmatmul.mubr.f32.gmra.mxu0 %v3299
        %v3514 = vpop.f32.mrf.mxu0
        %v3515 = vadd.f32 0.0, %v3514
        %v3516 = vpop.f32.mrf.mxu0
        %3517 = vmatprep.mubr.f32.mxu0 0.0
        %3518 = vmatmul.mubr.f32.gmra.mxu0 %v3302
        %v3519 = vpop.f32.mrf.mxu0
        %v3520 = vadd.f32 0.0, %v3519
        %v3521 = vpop.f32.mrf.mxu0
        %3522 = vmatprep.mubr.f32.mxu0 0.0
        %3523 = vmatmul.mubr.f32.gmra.mxu0 %v3305
        %v3524 = vpop.f32.mrf.mxu0
        %v3525 = vadd.f32 0.0, %v3524
        %v3526 = vpop.f32.mrf.mxu0
        %3527 = vmatprep.mubr.f32.mxu0 0.0
        %3528 = vmatmul.mubr.f32.gmra.mxu0 %v3308
        %v3529 = vpop.f32.mrf.mxu0
        %v3530 = vadd.f32 0.0, %v3529
        %v3531 = vpop.f32.mrf.mxu0
        %3532 = vmatprep.mubr.f32.mxu0 0.0
        %3533 = vmatmul.mubr.f32.gmra.mxu0 %v3311
        %v3534 = vpop.f32.mrf.mxu0
        %v3535 = vadd.f32 0.0, %v3534
        %v3536 = vpop.f32.mrf.mxu0
        %3537 = vdwg.mxu0
        %v3538 = vadd.f32 %v3151, %v3380
        %v3539 = vadd.f32 %v3152, %v3385
        %v3540 = vadd.f32 %v3153, %v3390
        %v3541 = vadd.f32 %v3154, %v3395
        %v3542 = vadd.f32 %v3155, %v3400
        %v3543 = vadd.f32 %v3156, %v3405
        %v3544 = vadd.f32 %v3157, %v3410
        %v3545 = vadd.f32 %v3158, %v3415
        %v3546 = vadd.f32 %v3159, %v3420
        %v3547 = vadd.f32 %v3160, %v3425
        %v3548 = vadd.f32 %v3161, %v3430
        %v3549 = vadd.f32 %v3162, %v3435
        %v3550 = vadd.f32 %v3163, %v3440
        %v3551 = vadd.f32 %v3164, %v3445
        %v3552 = vadd.f32 %v3165, %v3450
        %v3553 = vadd.f32 %v3166, %v3455
        %v3554 = vadd.f32 %v3167, %v3460
        %v3555 = vadd.f32 %v3168, %v3465
        %v3556 = vadd.f32 %v3169, %v3470
        %v3557 = vadd.f32 %v3170, %v3475
        %v3558 = vadd.f32 %v3171, %v3480
        %v3559 = vadd.f32 %v3172, %v3485
        %v3560 = vadd.f32 %v3173, %v3490
        %v3561 = vadd.f32 %v3174, %v3495
        %v3562 = vadd.f32 %v3175, %v3500
        %v3563 = vadd.f32 %v3176, %v3505
        %v3564 = vadd.f32 %v3177, %v3510
        %v3565 = vadd.f32 %v3178, %v3515
        %v3566 = vadd.f32 %v3179, %v3520
        %v3567 = vadd.f32 %v3180, %v3525
        %v3568 = vadd.f32 %v3181, %v3530
        %v3569 = vadd.f32 %v3182, %v3535
        %s3570 = scalar_lea.vmem [#allocation2], 48
        %v3571 = vld [vmem:[%s3570] sm:$0xff]
        %v3572 = vld [vmem:[%s3570 + $0x8] sm:$0xff]
        %v3573 = vld [vmem:[%s3570 + $0x18] sm:$0xff]
        %v3574 = vld [vmem:[%s3570 + $0x20] sm:$0xff]
        %v3575 = vld [vmem:[%s3570 + $0x30] sm:$0xff]
        %v3576 = vld [vmem:[%s3570 + $0x38] sm:$0xff]
        %v3577 = vld [vmem:[%s3570 + $0x48] sm:$0xff]
        %v3578 = vld [vmem:[%s3570 + $0x50] sm:$0xff]
        %v3579 = vld [vmem:[%s3570 + $0x60] sm:$0xff]
        %v3580 = vld [vmem:[%s3570 + $0x68] sm:$0xff]
        %v3581 = vld [vmem:[%s3570 + $0x78] sm:$0xff]
        %v3582 = vld [vmem:[%s3570 + $0x80] sm:$0xff]
        %v3583 = vld [vmem:[%s3570 + $0x90] sm:$0xff]
        %v3584 = vld [vmem:[%s3570 + $0x98] sm:$0xff]
        %v3585 = vld [vmem:[%s3570 + $0xa8] sm:$0xff]
        %v3586 = vld [vmem:[%s3570 + $0xb0] sm:$0xff]
        %v3587 = vld [vmem:[%s3570 + $0xc0] sm:$0xff]
        %v3588 = vld [vmem:[%s3570 + $0xc8] sm:$0xff]
        %v3589 = vld [vmem:[%s3570 + $0xd8] sm:$0xff]
        %v3590 = vld [vmem:[%s3570 + $0xe0] sm:$0xff]
        %v3591 = vld [vmem:[%s3570 + $0xf0] sm:$0xff]
        %v3592 = vld [vmem:[%s3570 + $0xf8] sm:$0xff]
        %v3593 = vld [vmem:[%s3570 + $0x108] sm:$0xff]
        %v3594 = vld [vmem:[%s3570 + $0x110] sm:$0xff]
        %v3595 = vld [vmem:[%s3570 + $0x120] sm:$0xff]
        %v3596 = vld [vmem:[%s3570 + $0x128] sm:$0xff]
        %v3597 = vld [vmem:[%s3570 + $0x138] sm:$0xff]
        %v3598 = vld [vmem:[%s3570 + $0x140] sm:$0xff]
        %v3599 = vld [vmem:[%s3570 + $0x150] sm:$0xff]
        %v3600 = vld [vmem:[%s3570 + $0x158] sm:$0xff]
        %v3601 = vld [vmem:[%s3570 + $0x168] sm:$0xff]
        %v3602 = vld [vmem:[%s3570 + $0x170] sm:$0xff]
        %s3603 = scalar_lea.vmem %s7, 48
        %v3604 = vld [vmem:[%s3603] sm:$0xff]
        %v3606 = vsel %vm671, %v3571, 0
        %v3609 = vsel %vm671, %v3572, 0
        %v3612 = vsel %vm671, %v3573, 0
        %v3615 = vsel %vm671, %v3574, 0
        %v3618 = vsel %vm671, %v3575, 0
        %v3621 = vsel %vm671, %v3576, 0
        %v3624 = vsel %vm671, %v3577, 0
        %v3627 = vsel %vm671, %v3578, 0
        %v3630 = vsel %vm671, %v3579, 0
        %v3633 = vsel %vm671, %v3580, 0
        %v3636 = vsel %vm671, %v3581, 0
        %v3639 = vsel %vm671, %v3582, 0
        %v3642 = vsel %vm671, %v3583, 0
        %v3645 = vsel %vm671, %v3584, 0
        %v3648 = vsel %vm671, %v3585, 0
        %v3651 = vsel %vm671, %v3586, 0
        %v3654 = vsel %vm671, %v3587, 0
        %v3657 = vsel %vm671, %v3588, 0
        %v3660 = vsel %vm671, %v3589, 0
        %v3663 = vsel %vm671, %v3590, 0
        %v3666 = vsel %vm671, %v3591, 0
        %v3669 = vsel %vm671, %v3592, 0
        %v3672 = vsel %vm671, %v3593, 0
        %v3675 = vsel %vm671, %v3594, 0
        %v3678 = vsel %vm671, %v3595, 0
        %v3681 = vsel %vm671, %v3596, 0
        %v3684 = vsel %vm671, %v3597, 0
        %v3687 = vsel %vm671, %v3598, 0
        %v3690 = vsel %vm671, %v3599, 0
        %v3693 = vsel %vm671, %v3600, 0
        %v3696 = vsel %vm671, %v3601, 0
        %v3699 = vsel %vm671, %v3602, 0
        %3701 = vmatprep.subr.mxu0 0.0
        %3702 = vmatpush1.msra.mxu0 0.0
        %3703 = vmatprep.subr.mxu0 0.0
        %3704 = vmatpush1.msra.mxu0 0.0
        %3705 = vmatprep.subr.mxu0 0.0
        %3706 = vmatpush1.msra.mxu0 0.0
        %3707 = vmatprep.subr.mxu0 0.0
        %3708 = vmatpush1.msra.mxu0 0.0
        %3709 = vmatprep.subr.mxu0 0.0
        %3710 = vmatpush1.msra.mxu0 0.0
        %3711 = vmatprep.subr.mxu0 0.0
        %3712 = vmatpush1.msra.mxu0 0.0
        %3713 = vmatprep.subr.mxu0 0.0
        %3714 = vmatpush1.msra.mxu0 0.0
        %3715 = vmatprep.subr.mxu0 0.0
        %3716 = vmatpush1.msra.mxu0 0.0
        %3717 = vmatprep.subr.mxu0 0.0
        %3718 = vmatpush1.msra.mxu0 0.0
        %3719 = vmatprep.subr.mxu0 0.0
        %3720 = vmatpush1.msra.mxu0 0.0
        %3721 = vmatprep.subr.mxu0 0.0
        %3722 = vmatpush1.msra.mxu0 0.0
        %3723 = vmatprep.subr.mxu0 0.0
        %3724 = vmatpush1.msra.mxu0 0.0
        %3725 = vmatprep.subr.mxu0 0.0
        %3726 = vmatpush1.msra.mxu0 0.0
        %3727 = vmatprep.subr.mxu0 0.0
        %3728 = vmatpush1.msra.mxu0 0.0
        %3729 = vmatprep.subr.mxu0 0.0
        %3730 = vmatpush1.msra.mxu0 0.0
        %3731 = vmatprep.subr.mxu0 0.0
        %3732 = vmatpush1.msra.mxu0 %v3604
        %3733 = vmatprep.subr.mxu0 0.0
        %3734 = vmatpush2.msra.mxu0 0.0
        %3735 = vmatprep.subr.mxu0 0.0
        %3736 = vmatpush2.msra.mxu0 0.0
        %3737 = vmatprep.subr.mxu0 0.0
        %3738 = vmatpush2.msra.mxu0 0.0
        %3739 = vmatprep.subr.mxu0 0.0
        %3740 = vmatpush2.msra.mxu0 0.0
        %3741 = vmatprep.subr.mxu0 0.0
        %3742 = vmatpush2.msra.mxu0 0.0
        %3743 = vmatprep.subr.mxu0 0.0
        %3744 = vmatpush2.msra.mxu0 0.0
        %3745 = vmatprep.subr.mxu0 0.0
        %3746 = vmatpush2.msra.mxu0 0.0
        %3747 = vmatprep.subr.mxu0 0.0
        %3748 = vmatpush2.msra.mxu0 0.0
        %3749 = vmatprep.subr.mxu0 0.0
        %3750 = vmatpush2.msra.mxu0 0.0
        %3751 = vmatprep.subr.mxu0 0.0
        %3752 = vmatpush2.msra.mxu0 0.0
        %3753 = vmatprep.subr.mxu0 0.0
        %3754 = vmatpush2.msra.mxu0 0.0
        %3755 = vmatprep.subr.mxu0 0.0
        %3756 = vmatpush2.msra.mxu0 0.0
        %3757 = vmatprep.subr.mxu0 0.0
        %3758 = vmatpush2.msra.mxu0 0.0
        %3759 = vmatprep.subr.mxu0 0.0
        %3760 = vmatpush2.msra.mxu0 0.0
        %3761 = vmatprep.subr.mxu0 0.0
        %3762 = vmatpush2.msra.mxu0 0.0
        %3763 = vmatprep.subr.mxu0 0.0
        %3764 = vmatpush2.msra.mxu0 0.0
        %3765 = vmatprep.mubr.f32.mxu0 0.0
        %3766 = vmatmul.mubr.f32.gmra.mxu0 %v3606
        %v3767 = vpop.f32.mrf.mxu0
        %v3768 = vadd.f32 0.0, %v3767
        %v3769 = vpop.f32.mrf.mxu0
        %3770 = vmatprep.mubr.f32.mxu0 0.0
        %3771 = vmatmul.mubr.f32.gmra.mxu0 %v3609
        %v3772 = vpop.f32.mrf.mxu0
        %v3773 = vadd.f32 0.0, %v3772
        %v3774 = vpop.f32.mrf.mxu0
        %3775 = vmatprep.mubr.f32.mxu0 0.0
        %3776 = vmatmul.mubr.f32.gmra.mxu0 %v3612
        %v3777 = vpop.f32.mrf.mxu0
        %v3778 = vadd.f32 0.0, %v3777
        %v3779 = vpop.f32.mrf.mxu0
        %3780 = vmatprep.mubr.f32.mxu0 0.0
        %3781 = vmatmul.mubr.f32.gmra.mxu0 %v3615
        %v3782 = vpop.f32.mrf.mxu0
        %v3783 = vadd.f32 0.0, %v3782
        %v3784 = vpop.f32.mrf.mxu0
        %3785 = vmatprep.mubr.f32.mxu0 0.0
        %3786 = vmatmul.mubr.f32.gmra.mxu0 %v3618
        %v3787 = vpop.f32.mrf.mxu0
        %v3788 = vadd.f32 0.0, %v3787
        %v3789 = vpop.f32.mrf.mxu0
        %3790 = vmatprep.mubr.f32.mxu0 0.0
        %3791 = vmatmul.mubr.f32.gmra.mxu0 %v3621
        %v3792 = vpop.f32.mrf.mxu0
        %v3793 = vadd.f32 0.0, %v3792
        %v3794 = vpop.f32.mrf.mxu0
        %3795 = vmatprep.mubr.f32.mxu0 0.0
        %3796 = vmatmul.mubr.f32.gmra.mxu0 %v3624
        %v3797 = vpop.f32.mrf.mxu0
        %v3798 = vadd.f32 0.0, %v3797
        %v3799 = vpop.f32.mrf.mxu0
        %3800 = vmatprep.mubr.f32.mxu0 0.0
        %3801 = vmatmul.mubr.f32.gmra.mxu0 %v3627
        %v3802 = vpop.f32.mrf.mxu0
        %v3803 = vadd.f32 0.0, %v3802
        %v3804 = vpop.f32.mrf.mxu0
        %3805 = vmatprep.mubr.f32.mxu0 0.0
        %3806 = vmatmul.mubr.f32.gmra.mxu0 %v3630
        %v3807 = vpop.f32.mrf.mxu0
        %v3808 = vadd.f32 0.0, %v3807
        %v3809 = vpop.f32.mrf.mxu0
        %3810 = vmatprep.mubr.f32.mxu0 0.0
        %3811 = vmatmul.mubr.f32.gmra.mxu0 %v3633
        %v3812 = vpop.f32.mrf.mxu0
        %v3813 = vadd.f32 0.0, %v3812
        %v3814 = vpop.f32.mrf.mxu0
        %3815 = vmatprep.mubr.f32.mxu0 0.0
        %3816 = vmatmul.mubr.f32.gmra.mxu0 %v3636
        %v3817 = vpop.f32.mrf.mxu0
        %v3818 = vadd.f32 0.0, %v3817
        %v3819 = vpop.f32.mrf.mxu0
        %3820 = vmatprep.mubr.f32.mxu0 0.0
        %3821 = vmatmul.mubr.f32.gmra.mxu0 %v3639
        %v3822 = vpop.f32.mrf.mxu0
        %v3823 = vadd.f32 0.0, %v3822
        %v3824 = vpop.f32.mrf.mxu0
        %3825 = vmatprep.mubr.f32.mxu0 0.0
        %3826 = vmatmul.mubr.f32.gmra.mxu0 %v3642
        %v3827 = vpop.f32.mrf.mxu0
        %v3828 = vadd.f32 0.0, %v3827
        %v3829 = vpop.f32.mrf.mxu0
        %3830 = vmatprep.mubr.f32.mxu0 0.0
        %3831 = vmatmul.mubr.f32.gmra.mxu0 %v3645
        %v3832 = vpop.f32.mrf.mxu0
        %v3833 = vadd.f32 0.0, %v3832
        %v3834 = vpop.f32.mrf.mxu0
        %3835 = vmatprep.mubr.f32.mxu0 0.0
        %3836 = vmatmul.mubr.f32.gmra.mxu0 %v3648
        %v3837 = vpop.f32.mrf.mxu0
        %v3838 = vadd.f32 0.0, %v3837
        %v3839 = vpop.f32.mrf.mxu0
        %3840 = vmatprep.mubr.f32.mxu0 0.0
        %3841 = vmatmul.mubr.f32.gmra.mxu0 %v3651
        %v3842 = vpop.f32.mrf.mxu0
        %v3843 = vadd.f32 0.0, %v3842
        %v3844 = vpop.f32.mrf.mxu0
        %3845 = vmatprep.mubr.f32.mxu0 0.0
        %3846 = vmatmul.mubr.f32.gmra.mxu0 %v3654
        %v3847 = vpop.f32.mrf.mxu0
        %v3848 = vadd.f32 0.0, %v3847
        %v3849 = vpop.f32.mrf.mxu0
        %3850 = vmatprep.mubr.f32.mxu0 0.0
        %3851 = vmatmul.mubr.f32.gmra.mxu0 %v3657
        %v3852 = vpop.f32.mrf.mxu0
        %v3853 = vadd.f32 0.0, %v3852
        %v3854 = vpop.f32.mrf.mxu0
        %3855 = vmatprep.mubr.f32.mxu0 0.0
        %3856 = vmatmul.mubr.f32.gmra.mxu0 %v3660
        %v3857 = vpop.f32.mrf.mxu0
        %v3858 = vadd.f32 0.0, %v3857
        %v3859 = vpop.f32.mrf.mxu0
        %3860 = vmatprep.mubr.f32.mxu0 0.0
        %3861 = vmatmul.mubr.f32.gmra.mxu0 %v3663
        %v3862 = vpop.f32.mrf.mxu0
        %v3863 = vadd.f32 0.0, %v3862
        %v3864 = vpop.f32.mrf.mxu0
        %3865 = vmatprep.mubr.f32.mxu0 0.0
        %3866 = vmatmul.mubr.f32.gmra.mxu0 %v3666
        %v3867 = vpop.f32.mrf.mxu0
        %v3868 = vadd.f32 0.0, %v3867
        %v3869 = vpop.f32.mrf.mxu0
        %3870 = vmatprep.mubr.f32.mxu0 0.0
        %3871 = vmatmul.mubr.f32.gmra.mxu0 %v3669
        %v3872 = vpop.f32.mrf.mxu0
        %v3873 = vadd.f32 0.0, %v3872
        %v3874 = vpop.f32.mrf.mxu0
        %3875 = vmatprep.mubr.f32.mxu0 0.0
        %3876 = vmatmul.mubr.f32.gmra.mxu0 %v3672
        %v3877 = vpop.f32.mrf.mxu0
        %v3878 = vadd.f32 0.0, %v3877
        %v3879 = vpop.f32.mrf.mxu0
        %3880 = vmatprep.mubr.f32.mxu0 0.0
        %3881 = vmatmul.mubr.f32.gmra.mxu0 %v3675
        %v3882 = vpop.f32.mrf.mxu0
        %v3883 = vadd.f32 0.0, %v3882
        %v3884 = vpop.f32.mrf.mxu0
        %3885 = vmatprep.mubr.f32.mxu0 0.0
        %3886 = vmatmul.mubr.f32.gmra.mxu0 %v3678
        %v3887 = vpop.f32.mrf.mxu0
        %v3888 = vadd.f32 0.0, %v3887
        %v3889 = vpop.f32.mrf.mxu0
        %3890 = vmatprep.mubr.f32.mxu0 0.0
        %3891 = vmatmul.mubr.f32.gmra.mxu0 %v3681
        %v3892 = vpop.f32.mrf.mxu0
        %v3893 = vadd.f32 0.0, %v3892
        %v3894 = vpop.f32.mrf.mxu0
        %3895 = vmatprep.mubr.f32.mxu0 0.0
        %3896 = vmatmul.mubr.f32.gmra.mxu0 %v3684
        %v3897 = vpop.f32.mrf.mxu0
        %v3898 = vadd.f32 0.0, %v3897
        %v3899 = vpop.f32.mrf.mxu0
        %3900 = vmatprep.mubr.f32.mxu0 0.0
        %3901 = vmatmul.mubr.f32.gmra.mxu0 %v3687
        %v3902 = vpop.f32.mrf.mxu0
        %v3903 = vadd.f32 0.0, %v3902
        %v3904 = vpop.f32.mrf.mxu0
        %3905 = vmatprep.mubr.f32.mxu0 0.0
        %3906 = vmatmul.mubr.f32.gmra.mxu0 %v3690
        %v3907 = vpop.f32.mrf.mxu0
        %v3908 = vadd.f32 0.0, %v3907
        %v3909 = vpop.f32.mrf.mxu0
        %3910 = vmatprep.mubr.f32.mxu0 0.0
        %3911 = vmatmul.mubr.f32.gmra.mxu0 %v3693
        %v3912 = vpop.f32.mrf.mxu0
        %v3913 = vadd.f32 0.0, %v3912
        %v3914 = vpop.f32.mrf.mxu0
        %3915 = vmatprep.mubr.f32.mxu0 0.0
        %3916 = vmatmul.mubr.f32.gmra.mxu0 %v3696
        %v3917 = vpop.f32.mrf.mxu0
        %v3918 = vadd.f32 0.0, %v3917
        %v3919 = vpop.f32.mrf.mxu0
        %3920 = vmatprep.mubr.f32.mxu0 0.0
        %3921 = vmatmul.mubr.f32.gmra.mxu0 %v3699
        %v3922 = vpop.f32.mrf.mxu0
        %v3923 = vadd.f32 0.0, %v3922
        %v3924 = vpop.f32.mrf.mxu0
        %3925 = vdwg.mxu0
        %v3926 = vadd.f32 %v3538, %v3768
        %v3927 = vadd.f32 %v3539, %v3773
        %v3928 = vadd.f32 %v3540, %v3778
        %v3929 = vadd.f32 %v3541, %v3783
        %v3930 = vadd.f32 %v3542, %v3788
        %v3931 = vadd.f32 %v3543, %v3793
        %v3932 = vadd.f32 %v3544, %v3798
        %v3933 = vadd.f32 %v3545, %v3803
        %v3934 = vadd.f32 %v3546, %v3808
        %v3935 = vadd.f32 %v3547, %v3813
        %v3936 = vadd.f32 %v3548, %v3818
        %v3937 = vadd.f32 %v3549, %v3823
        %v3938 = vadd.f32 %v3550, %v3828
        %v3939 = vadd.f32 %v3551, %v3833
        %v3940 = vadd.f32 %v3552, %v3838
        %v3941 = vadd.f32 %v3553, %v3843
        %v3942 = vadd.f32 %v3554, %v3848
        %v3943 = vadd.f32 %v3555, %v3853
        %v3944 = vadd.f32 %v3556, %v3858
        %v3945 = vadd.f32 %v3557, %v3863
        %v3946 = vadd.f32 %v3558, %v3868
        %v3947 = vadd.f32 %v3559, %v3873
        %v3948 = vadd.f32 %v3560, %v3878
        %v3949 = vadd.f32 %v3561, %v3883
        %v3950 = vadd.f32 %v3562, %v3888
        %v3951 = vadd.f32 %v3563, %v3893
        %v3952 = vadd.f32 %v3564, %v3898
        %v3953 = vadd.f32 %v3565, %v3903
        %v3954 = vadd.f32 %v3566, %v3908
        %v3955 = vadd.f32 %v3567, %v3913
        %v3956 = vadd.f32 %v3568, %v3918
        %v3957 = vadd.f32 %v3569, %v3923
        %v3958 = vld [vmem:[%s3570 + $0x1] sm:$0xff]
        %v3959 = vld [vmem:[%s3570 + $0x9] sm:$0xff]
        %v3960 = vld [vmem:[%s3570 + $0x19] sm:$0xff]
        %v3961 = vld [vmem:[%s3570 + $0x21] sm:$0xff]
        %v3962 = vld [vmem:[%s3570 + $0x31] sm:$0xff]
        %v3963 = vld [vmem:[%s3570 + $0x39] sm:$0xff]
        %v3964 = vld [vmem:[%s3570 + $0x49] sm:$0xff]
        %v3965 = vld [vmem:[%s3570 + $0x51] sm:$0xff]
        %v3966 = vld [vmem:[%s3570 + $0x61] sm:$0xff]
        %v3967 = vld [vmem:[%s3570 + $0x69] sm:$0xff]
        %v3968 = vld [vmem:[%s3570 + $0x79] sm:$0xff]
        %v3969 = vld [vmem:[%s3570 + $0x81] sm:$0xff]
        %v3970 = vld [vmem:[%s3570 + $0x91] sm:$0xff]
        %v3971 = vld [vmem:[%s3570 + $0x99] sm:$0xff]
        %v3972 = vld [vmem:[%s3570 + $0xa9] sm:$0xff]
        %v3973 = vld [vmem:[%s3570 + $0xb1] sm:$0xff]
        %v3974 = vld [vmem:[%s3570 + $0xc1] sm:$0xff]
        %v3975 = vld [vmem:[%s3570 + $0xc9] sm:$0xff]
        %v3976 = vld [vmem:[%s3570 + $0xd9] sm:$0xff]
        %v3977 = vld [vmem:[%s3570 + $0xe1] sm:$0xff]
        %v3978 = vld [vmem:[%s3570 + $0xf1] sm:$0xff]
        %v3979 = vld [vmem:[%s3570 + $0xf9] sm:$0xff]
        %v3980 = vld [vmem:[%s3570 + $0x109] sm:$0xff]
        %v3981 = vld [vmem:[%s3570 + $0x111] sm:$0xff]
        %v3982 = vld [vmem:[%s3570 + $0x121] sm:$0xff]
        %v3983 = vld [vmem:[%s3570 + $0x129] sm:$0xff]
        %v3984 = vld [vmem:[%s3570 + $0x139] sm:$0xff]
        %v3985 = vld [vmem:[%s3570 + $0x141] sm:$0xff]
        %v3986 = vld [vmem:[%s3570 + $0x151] sm:$0xff]
        %v3987 = vld [vmem:[%s3570 + $0x159] sm:$0xff]
        %v3988 = vld [vmem:[%s3570 + $0x169] sm:$0xff]
        %v3989 = vld [vmem:[%s3570 + $0x171] sm:$0xff]
        %s3990 = scalar_lea.vmem %s7, 56
        %v3991 = vld [vmem:[%s3990] sm:$0xff]
        %v3993 = vsel %vm671, %v3958, 0
        %v3996 = vsel %vm671, %v3959, 0
        %v3999 = vsel %vm671, %v3960, 0
        %v4002 = vsel %vm671, %v3961, 0
        %v4005 = vsel %vm671, %v3962, 0
        %v4008 = vsel %vm671, %v3963, 0
        %v4011 = vsel %vm671, %v3964, 0
        %v4014 = vsel %vm671, %v3965, 0
        %v4017 = vsel %vm671, %v3966, 0
        %v4020 = vsel %vm671, %v3967, 0
        %v4023 = vsel %vm671, %v3968, 0
        %v4026 = vsel %vm671, %v3969, 0
        %v4029 = vsel %vm671, %v3970, 0
        %v4032 = vsel %vm671, %v3971, 0
        %v4035 = vsel %vm671, %v3972, 0
        %v4038 = vsel %vm671, %v3973, 0
        %v4041 = vsel %vm671, %v3974, 0
        %v4044 = vsel %vm671, %v3975, 0
        %v4047 = vsel %vm671, %v3976, 0
        %v4050 = vsel %vm671, %v3977, 0
        %v4053 = vsel %vm671, %v3978, 0
        %v4056 = vsel %vm671, %v3979, 0
        %v4059 = vsel %vm671, %v3980, 0
        %v4062 = vsel %vm671, %v3981, 0
        %v4065 = vsel %vm671, %v3982, 0
        %v4068 = vsel %vm671, %v3983, 0
        %v4071 = vsel %vm671, %v3984, 0
        %v4074 = vsel %vm671, %v3985, 0
        %v4077 = vsel %vm671, %v3986, 0
        %v4080 = vsel %vm671, %v3987, 0
        %v4083 = vsel %vm671, %v3988, 0
        %v4086 = vsel %vm671, %v3989, 0
        %4088 = vmatprep.subr.mxu0 0.0
        %4089 = vmatpush1.msra.mxu0 0.0
        %4090 = vmatprep.subr.mxu0 0.0
        %4091 = vmatpush1.msra.mxu0 0.0
        %4092 = vmatprep.subr.mxu0 0.0
        %4093 = vmatpush1.msra.mxu0 0.0
        %4094 = vmatprep.subr.mxu0 0.0
        %4095 = vmatpush1.msra.mxu0 0.0
        %4096 = vmatprep.subr.mxu0 0.0
        %4097 = vmatpush1.msra.mxu0 0.0
        %4098 = vmatprep.subr.mxu0 0.0
        %4099 = vmatpush1.msra.mxu0 0.0
        %4100 = vmatprep.subr.mxu0 0.0
        %4101 = vmatpush1.msra.mxu0 0.0
        %4102 = vmatprep.subr.mxu0 0.0
        %4103 = vmatpush1.msra.mxu0 0.0
        %4104 = vmatprep.subr.mxu0 0.0
        %4105 = vmatpush1.msra.mxu0 0.0
        %4106 = vmatprep.subr.mxu0 0.0
        %4107 = vmatpush1.msra.mxu0 0.0
        %4108 = vmatprep.subr.mxu0 0.0
        %4109 = vmatpush1.msra.mxu0 0.0
        %4110 = vmatprep.subr.mxu0 0.0
        %4111 = vmatpush1.msra.mxu0 0.0
        %4112 = vmatprep.subr.mxu0 0.0
        %4113 = vmatpush1.msra.mxu0 0.0
        %4114 = vmatprep.subr.mxu0 0.0
        %4115 = vmatpush1.msra.mxu0 0.0
        %4116 = vmatprep.subr.mxu0 0.0
        %4117 = vmatpush1.msra.mxu0 0.0
        %4118 = vmatprep.subr.mxu0 0.0
        %4119 = vmatpush1.msra.mxu0 %v3991
        %4120 = vmatprep.subr.mxu0 0.0
        %4121 = vmatpush2.msra.mxu0 0.0
        %4122 = vmatprep.subr.mxu0 0.0
        %4123 = vmatpush2.msra.mxu0 0.0
        %4124 = vmatprep.subr.mxu0 0.0
        %4125 = vmatpush2.msra.mxu0 0.0
        %4126 = vmatprep.subr.mxu0 0.0
        %4127 = vmatpush2.msra.mxu0 0.0
        %4128 = vmatprep.subr.mxu0 0.0
        %4129 = vmatpush2.msra.mxu0 0.0
        %4130 = vmatprep.subr.mxu0 0.0
        %4131 = vmatpush2.msra.mxu0 0.0
        %4132 = vmatprep.subr.mxu0 0.0
        %4133 = vmatpush2.msra.mxu0 0.0
        %4134 = vmatprep.subr.mxu0 0.0
        %4135 = vmatpush2.msra.mxu0 0.0
        %4136 = vmatprep.subr.mxu0 0.0
        %4137 = vmatpush2.msra.mxu0 0.0
        %4138 = vmatprep.subr.mxu0 0.0
        %4139 = vmatpush2.msra.mxu0 0.0
        %4140 = vmatprep.subr.mxu0 0.0
        %4141 = vmatpush2.msra.mxu0 0.0
        %4142 = vmatprep.subr.mxu0 0.0
        %4143 = vmatpush2.msra.mxu0 0.0
        %4144 = vmatprep.subr.mxu0 0.0
        %4145 = vmatpush2.msra.mxu0 0.0
        %4146 = vmatprep.subr.mxu0 0.0
        %4147 = vmatpush2.msra.mxu0 0.0
        %4148 = vmatprep.subr.mxu0 0.0
        %4149 = vmatpush2.msra.mxu0 0.0
        %4150 = vmatprep.subr.mxu0 0.0
        %4151 = vmatpush2.msra.mxu0 0.0
        %4152 = vmatprep.mubr.f32.mxu0 0.0
        %4153 = vmatmul.mubr.f32.gmra.mxu0 %v3993
        %v4154 = vpop.f32.mrf.mxu0
        %v4155 = vadd.f32 0.0, %v4154
        %v4156 = vpop.f32.mrf.mxu0
        %4157 = vmatprep.mubr.f32.mxu0 0.0
        %4158 = vmatmul.mubr.f32.gmra.mxu0 %v3996
        %v4159 = vpop.f32.mrf.mxu0
        %v4160 = vadd.f32 0.0, %v4159
        %v4161 = vpop.f32.mrf.mxu0
        %4162 = vmatprep.mubr.f32.mxu0 0.0
        %4163 = vmatmul.mubr.f32.gmra.mxu0 %v3999
        %v4164 = vpop.f32.mrf.mxu0
        %v4165 = vadd.f32 0.0, %v4164
        %v4166 = vpop.f32.mrf.mxu0
        %4167 = vmatprep.mubr.f32.mxu0 0.0
        %4168 = vmatmul.mubr.f32.gmra.mxu0 %v4002
        %v4169 = vpop.f32.mrf.mxu0
        %v4170 = vadd.f32 0.0, %v4169
        %v4171 = vpop.f32.mrf.mxu0
        %4172 = vmatprep.mubr.f32.mxu0 0.0
        %4173 = vmatmul.mubr.f32.gmra.mxu0 %v4005
        %v4174 = vpop.f32.mrf.mxu0
        %v4175 = vadd.f32 0.0, %v4174
        %v4176 = vpop.f32.mrf.mxu0
        %4177 = vmatprep.mubr.f32.mxu0 0.0
        %4178 = vmatmul.mubr.f32.gmra.mxu0 %v4008
        %v4179 = vpop.f32.mrf.mxu0
        %v4180 = vadd.f32 0.0, %v4179
        %v4181 = vpop.f32.mrf.mxu0
        %4182 = vmatprep.mubr.f32.mxu0 0.0
        %4183 = vmatmul.mubr.f32.gmra.mxu0 %v4011
        %v4184 = vpop.f32.mrf.mxu0
        %v4185 = vadd.f32 0.0, %v4184
        %v4186 = vpop.f32.mrf.mxu0
        %4187 = vmatprep.mubr.f32.mxu0 0.0
        %4188 = vmatmul.mubr.f32.gmra.mxu0 %v4014
        %v4189 = vpop.f32.mrf.mxu0
        %v4190 = vadd.f32 0.0, %v4189
        %v4191 = vpop.f32.mrf.mxu0
        %4192 = vmatprep.mubr.f32.mxu0 0.0
        %4193 = vmatmul.mubr.f32.gmra.mxu0 %v4017
        %v4194 = vpop.f32.mrf.mxu0
        %v4195 = vadd.f32 0.0, %v4194
        %v4196 = vpop.f32.mrf.mxu0
        %4197 = vmatprep.mubr.f32.mxu0 0.0
        %4198 = vmatmul.mubr.f32.gmra.mxu0 %v4020
        %v4199 = vpop.f32.mrf.mxu0
        %v4200 = vadd.f32 0.0, %v4199
        %v4201 = vpop.f32.mrf.mxu0
        %4202 = vmatprep.mubr.f32.mxu0 0.0
        %4203 = vmatmul.mubr.f32.gmra.mxu0 %v4023
        %v4204 = vpop.f32.mrf.mxu0
        %v4205 = vadd.f32 0.0, %v4204
        %v4206 = vpop.f32.mrf.mxu0
        %4207 = vmatprep.mubr.f32.mxu0 0.0
        %4208 = vmatmul.mubr.f32.gmra.mxu0 %v4026
        %v4209 = vpop.f32.mrf.mxu0
        %v4210 = vadd.f32 0.0, %v4209
        %v4211 = vpop.f32.mrf.mxu0
        %4212 = vmatprep.mubr.f32.mxu0 0.0
        %4213 = vmatmul.mubr.f32.gmra.mxu0 %v4029
        %v4214 = vpop.f32.mrf.mxu0
        %v4215 = vadd.f32 0.0, %v4214
        %v4216 = vpop.f32.mrf.mxu0
        %4217 = vmatprep.mubr.f32.mxu0 0.0
        %4218 = vmatmul.mubr.f32.gmra.mxu0 %v4032
        %v4219 = vpop.f32.mrf.mxu0
        %v4220 = vadd.f32 0.0, %v4219
        %v4221 = vpop.f32.mrf.mxu0
        %4222 = vmatprep.mubr.f32.mxu0 0.0
        %4223 = vmatmul.mubr.f32.gmra.mxu0 %v4035
        %v4224 = vpop.f32.mrf.mxu0
        %v4225 = vadd.f32 0.0, %v4224
        %v4226 = vpop.f32.mrf.mxu0
        %4227 = vmatprep.mubr.f32.mxu0 0.0
        %4228 = vmatmul.mubr.f32.gmra.mxu0 %v4038
        %v4229 = vpop.f32.mrf.mxu0
        %v4230 = vadd.f32 0.0, %v4229
        %v4231 = vpop.f32.mrf.mxu0
        %4232 = vmatprep.mubr.f32.mxu0 0.0
        %4233 = vmatmul.mubr.f32.gmra.mxu0 %v4041
        %v4234 = vpop.f32.mrf.mxu0
        %v4235 = vadd.f32 0.0, %v4234
        %v4236 = vpop.f32.mrf.mxu0
        %4237 = vmatprep.mubr.f32.mxu0 0.0
        %4238 = vmatmul.mubr.f32.gmra.mxu0 %v4044
        %v4239 = vpop.f32.mrf.mxu0
        %v4240 = vadd.f32 0.0, %v4239
        %v4241 = vpop.f32.mrf.mxu0
        %4242 = vmatprep.mubr.f32.mxu0 0.0
        %4243 = vmatmul.mubr.f32.gmra.mxu0 %v4047
        %v4244 = vpop.f32.mrf.mxu0
        %v4245 = vadd.f32 0.0, %v4244
        %v4246 = vpop.f32.mrf.mxu0
        %4247 = vmatprep.mubr.f32.mxu0 0.0
        %4248 = vmatmul.mubr.f32.gmra.mxu0 %v4050
        %v4249 = vpop.f32.mrf.mxu0
        %v4250 = vadd.f32 0.0, %v4249
        %v4251 = vpop.f32.mrf.mxu0
        %4252 = vmatprep.mubr.f32.mxu0 0.0
        %4253 = vmatmul.mubr.f32.gmra.mxu0 %v4053
        %v4254 = vpop.f32.mrf.mxu0
        %v4255 = vadd.f32 0.0, %v4254
        %v4256 = vpop.f32.mrf.mxu0
        %4257 = vmatprep.mubr.f32.mxu0 0.0
        %4258 = vmatmul.mubr.f32.gmra.mxu0 %v4056
        %v4259 = vpop.f32.mrf.mxu0
        %v4260 = vadd.f32 0.0, %v4259
        %v4261 = vpop.f32.mrf.mxu0
        %4262 = vmatprep.mubr.f32.mxu0 0.0
        %4263 = vmatmul.mubr.f32.gmra.mxu0 %v4059
        %v4264 = vpop.f32.mrf.mxu0
        %v4265 = vadd.f32 0.0, %v4264
        %v4266 = vpop.f32.mrf.mxu0
        %4267 = vmatprep.mubr.f32.mxu0 0.0
        %4268 = vmatmul.mubr.f32.gmra.mxu0 %v4062
        %v4269 = vpop.f32.mrf.mxu0
        %v4270 = vadd.f32 0.0, %v4269
        %v4271 = vpop.f32.mrf.mxu0
        %4272 = vmatprep.mubr.f32.mxu0 0.0
        %4273 = vmatmul.mubr.f32.gmra.mxu0 %v4065
        %v4274 = vpop.f32.mrf.mxu0
        %v4275 = vadd.f32 0.0, %v4274
        %v4276 = vpop.f32.mrf.mxu0
        %4277 = vmatprep.mubr.f32.mxu0 0.0
        %4278 = vmatmul.mubr.f32.gmra.mxu0 %v4068
        %v4279 = vpop.f32.mrf.mxu0
        %v4280 = vadd.f32 0.0, %v4279
        %v4281 = vpop.f32.mrf.mxu0
        %4282 = vmatprep.mubr.f32.mxu0 0.0
        %4283 = vmatmul.mubr.f32.gmra.mxu0 %v4071
        %v4284 = vpop.f32.mrf.mxu0
        %v4285 = vadd.f32 0.0, %v4284
        %v4286 = vpop.f32.mrf.mxu0
        %4287 = vmatprep.mubr.f32.mxu0 0.0
        %4288 = vmatmul.mubr.f32.gmra.mxu0 %v4074
        %v4289 = vpop.f32.mrf.mxu0
        %v4290 = vadd.f32 0.0, %v4289
        %v4291 = vpop.f32.mrf.mxu0
        %4292 = vmatprep.mubr.f32.mxu0 0.0
        %4293 = vmatmul.mubr.f32.gmra.mxu0 %v4077
        %v4294 = vpop.f32.mrf.mxu0
        %v4295 = vadd.f32 0.0, %v4294
        %v4296 = vpop.f32.mrf.mxu0
        %4297 = vmatprep.mubr.f32.mxu0 0.0
        %4298 = vmatmul.mubr.f32.gmra.mxu0 %v4080
        %v4299 = vpop.f32.mrf.mxu0
        %v4300 = vadd.f32 0.0, %v4299
        %v4301 = vpop.f32.mrf.mxu0
        %4302 = vmatprep.mubr.f32.mxu0 0.0
        %4303 = vmatmul.mubr.f32.gmra.mxu0 %v4083
        %v4304 = vpop.f32.mrf.mxu0
        %v4305 = vadd.f32 0.0, %v4304
        %v4306 = vpop.f32.mrf.mxu0
        %4307 = vmatprep.mubr.f32.mxu0 0.0
        %4308 = vmatmul.mubr.f32.gmra.mxu0 %v4086
        %v4309 = vpop.f32.mrf.mxu0
        %v4310 = vadd.f32 0.0, %v4309
        %v4311 = vpop.f32.mrf.mxu0
        %4312 = vdwg.mxu0
        %v4313 = vadd.f32 %v3926, %v4155
        %v4314 = vadd.f32 %v3927, %v4160
        %v4315 = vadd.f32 %v3928, %v4165
        %v4316 = vadd.f32 %v3929, %v4170
        %v4317 = vadd.f32 %v3930, %v4175
        %v4318 = vadd.f32 %v3931, %v4180
        %v4319 = vadd.f32 %v3932, %v4185
        %v4320 = vadd.f32 %v3933, %v4190
        %v4321 = vadd.f32 %v3934, %v4195
        %v4322 = vadd.f32 %v3935, %v4200
        %v4323 = vadd.f32 %v3936, %v4205
        %v4324 = vadd.f32 %v3937, %v4210
        %v4325 = vadd.f32 %v3938, %v4215
        %v4326 = vadd.f32 %v3939, %v4220
        %v4327 = vadd.f32 %v3940, %v4225
        %v4328 = vadd.f32 %v3941, %v4230
        %v4329 = vadd.f32 %v3942, %v4235
        %v4330 = vadd.f32 %v3943, %v4240
        %v4331 = vadd.f32 %v3944, %v4245
        %v4332 = vadd.f32 %v3945, %v4250
        %v4333 = vadd.f32 %v3946, %v4255
        %v4334 = vadd.f32 %v3947, %v4260
        %v4335 = vadd.f32 %v3948, %v4265
        %v4336 = vadd.f32 %v3949, %v4270
        %v4337 = vadd.f32 %v3950, %v4275
        %v4338 = vadd.f32 %v3951, %v4280
        %v4339 = vadd.f32 %v3952, %v4285
        %v4340 = vadd.f32 %v3953, %v4290
        %v4341 = vadd.f32 %v3954, %v4295
        %v4342 = vadd.f32 %v3955, %v4300
        %v4343 = vadd.f32 %v3956, %v4305
        %v4344 = vadd.f32 %v3957, %v4310
        %v4345 = vld [vmem:[%s3570 + $0x2] sm:$0xff]
        %v4346 = vld [vmem:[%s3570 + $0xa] sm:$0xff]
        %v4347 = vld [vmem:[%s3570 + $0x1a] sm:$0xff]
        %v4348 = vld [vmem:[%s3570 + $0x22] sm:$0xff]
        %v4349 = vld [vmem:[%s3570 + $0x32] sm:$0xff]
        %v4350 = vld [vmem:[%s3570 + $0x3a] sm:$0xff]
        %v4351 = vld [vmem:[%s3570 + $0x4a] sm:$0xff]
        %v4352 = vld [vmem:[%s3570 + $0x52] sm:$0xff]
        %v4353 = vld [vmem:[%s3570 + $0x62] sm:$0xff]
        %v4354 = vld [vmem:[%s3570 + $0x6a] sm:$0xff]
        %v4355 = vld [vmem:[%s3570 + $0x7a] sm:$0xff]
        %v4356 = vld [vmem:[%s3570 + $0x82] sm:$0xff]
        %v4357 = vld [vmem:[%s3570 + $0x92] sm:$0xff]
        %v4358 = vld [vmem:[%s3570 + $0x9a] sm:$0xff]
        %v4359 = vld [vmem:[%s3570 + $0xaa] sm:$0xff]
        %v4360 = vld [vmem:[%s3570 + $0xb2] sm:$0xff]
        %v4361 = vld [vmem:[%s3570 + $0xc2] sm:$0xff]
        %v4362 = vld [vmem:[%s3570 + $0xca] sm:$0xff]
        %v4363 = vld [vmem:[%s3570 + $0xda] sm:$0xff]
        %v4364 = vld [vmem:[%s3570 + $0xe2] sm:$0xff]
        %v4365 = vld [vmem:[%s3570 + $0xf2] sm:$0xff]
        %v4366 = vld [vmem:[%s3570 + $0xfa] sm:$0xff]
        %v4367 = vld [vmem:[%s3570 + $0x10a] sm:$0xff]
        %v4368 = vld [vmem:[%s3570 + $0x112] sm:$0xff]
        %v4369 = vld [vmem:[%s3570 + $0x122] sm:$0xff]
        %v4370 = vld [vmem:[%s3570 + $0x12a] sm:$0xff]
        %v4371 = vld [vmem:[%s3570 + $0x13a] sm:$0xff]
        %v4372 = vld [vmem:[%s3570 + $0x142] sm:$0xff]
        %v4373 = vld [vmem:[%s3570 + $0x152] sm:$0xff]
        %v4374 = vld [vmem:[%s3570 + $0x15a] sm:$0xff]
        %v4375 = vld [vmem:[%s3570 + $0x16a] sm:$0xff]
        %v4376 = vld [vmem:[%s3570 + $0x172] sm:$0xff]
        %s4377 = scalar_lea.vmem %s7, 64
        %v4378 = vld [vmem:[%s4377] sm:$0xff]
        %v4380 = vsel %vm671, %v4345, 0
        %v4383 = vsel %vm671, %v4346, 0
        %v4386 = vsel %vm671, %v4347, 0
        %v4389 = vsel %vm671, %v4348, 0
        %v4392 = vsel %vm671, %v4349, 0
        %v4395 = vsel %vm671, %v4350, 0
        %v4398 = vsel %vm671, %v4351, 0
        %v4401 = vsel %vm671, %v4352, 0
        %v4404 = vsel %vm671, %v4353, 0
        %v4407 = vsel %vm671, %v4354, 0
        %v4410 = vsel %vm671, %v4355, 0
        %v4413 = vsel %vm671, %v4356, 0
        %v4416 = vsel %vm671, %v4357, 0
        %v4419 = vsel %vm671, %v4358, 0
        %v4422 = vsel %vm671, %v4359, 0
        %v4425 = vsel %vm671, %v4360, 0
        %v4428 = vsel %vm671, %v4361, 0
        %v4431 = vsel %vm671, %v4362, 0
        %v4434 = vsel %vm671, %v4363, 0
        %v4437 = vsel %vm671, %v4364, 0
        %v4440 = vsel %vm671, %v4365, 0
        %v4443 = vsel %vm671, %v4366, 0
        %v4446 = vsel %vm671, %v4367, 0
        %v4449 = vsel %vm671, %v4368, 0
        %v4452 = vsel %vm671, %v4369, 0
        %v4455 = vsel %vm671, %v4370, 0
        %v4458 = vsel %vm671, %v4371, 0
        %v4461 = vsel %vm671, %v4372, 0
        %v4464 = vsel %vm671, %v4373, 0
        %v4467 = vsel %vm671, %v4374, 0
        %v4470 = vsel %vm671, %v4375, 0
        %v4473 = vsel %vm671, %v4376, 0
        %4475 = vmatprep.subr.mxu0 0.0
        %4476 = vmatpush1.msra.mxu0 0.0
        %4477 = vmatprep.subr.mxu0 0.0
        %4478 = vmatpush1.msra.mxu0 0.0
        %4479 = vmatprep.subr.mxu0 0.0
        %4480 = vmatpush1.msra.mxu0 0.0
        %4481 = vmatprep.subr.mxu0 0.0
        %4482 = vmatpush1.msra.mxu0 0.0
        %4483 = vmatprep.subr.mxu0 0.0
        %4484 = vmatpush1.msra.mxu0 0.0
        %4485 = vmatprep.subr.mxu0 0.0
        %4486 = vmatpush1.msra.mxu0 0.0
        %4487 = vmatprep.subr.mxu0 0.0
        %4488 = vmatpush1.msra.mxu0 0.0
        %4489 = vmatprep.subr.mxu0 0.0
        %4490 = vmatpush1.msra.mxu0 0.0
        %4491 = vmatprep.subr.mxu0 0.0
        %4492 = vmatpush1.msra.mxu0 0.0
        %4493 = vmatprep.subr.mxu0 0.0
        %4494 = vmatpush1.msra.mxu0 0.0
        %4495 = vmatprep.subr.mxu0 0.0
        %4496 = vmatpush1.msra.mxu0 0.0
        %4497 = vmatprep.subr.mxu0 0.0
        %4498 = vmatpush1.msra.mxu0 0.0
        %4499 = vmatprep.subr.mxu0 0.0
        %4500 = vmatpush1.msra.mxu0 0.0
        %4501 = vmatprep.subr.mxu0 0.0
        %4502 = vmatpush1.msra.mxu0 0.0
        %4503 = vmatprep.subr.mxu0 0.0
        %4504 = vmatpush1.msra.mxu0 0.0
        %4505 = vmatprep.subr.mxu0 0.0
        %4506 = vmatpush1.msra.mxu0 %v4378
        %4507 = vmatprep.subr.mxu0 0.0
        %4508 = vmatpush2.msra.mxu0 0.0
        %4509 = vmatprep.subr.mxu0 0.0
        %4510 = vmatpush2.msra.mxu0 0.0
        %4511 = vmatprep.subr.mxu0 0.0
        %4512 = vmatpush2.msra.mxu0 0.0
        %4513 = vmatprep.subr.mxu0 0.0
        %4514 = vmatpush2.msra.mxu0 0.0
        %4515 = vmatprep.subr.mxu0 0.0
        %4516 = vmatpush2.msra.mxu0 0.0
        %4517 = vmatprep.subr.mxu0 0.0
        %4518 = vmatpush2.msra.mxu0 0.0
        %4519 = vmatprep.subr.mxu0 0.0
        %4520 = vmatpush2.msra.mxu0 0.0
        %4521 = vmatprep.subr.mxu0 0.0
        %4522 = vmatpush2.msra.mxu0 0.0
        %4523 = vmatprep.subr.mxu0 0.0
        %4524 = vmatpush2.msra.mxu0 0.0
        %4525 = vmatprep.subr.mxu0 0.0
        %4526 = vmatpush2.msra.mxu0 0.0
        %4527 = vmatprep.subr.mxu0 0.0
        %4528 = vmatpush2.msra.mxu0 0.0
        %4529 = vmatprep.subr.mxu0 0.0
        %4530 = vmatpush2.msra.mxu0 0.0
        %4531 = vmatprep.subr.mxu0 0.0
        %4532 = vmatpush2.msra.mxu0 0.0
        %4533 = vmatprep.subr.mxu0 0.0
        %4534 = vmatpush2.msra.mxu0 0.0
        %4535 = vmatprep.subr.mxu0 0.0
        %4536 = vmatpush2.msra.mxu0 0.0
        %4537 = vmatprep.subr.mxu0 0.0
        %4538 = vmatpush2.msra.mxu0 0.0
        %4539 = vmatprep.mubr.f32.mxu0 0.0
        %4540 = vmatmul.mubr.f32.gmra.mxu0 %v4380
        %v4541 = vpop.f32.mrf.mxu0
        %v4542 = vadd.f32 0.0, %v4541
        %v4543 = vpop.f32.mrf.mxu0
        %4544 = vmatprep.mubr.f32.mxu0 0.0
        %4545 = vmatmul.mubr.f32.gmra.mxu0 %v4383
        %v4546 = vpop.f32.mrf.mxu0
        %v4547 = vadd.f32 0.0, %v4546
        %v4548 = vpop.f32.mrf.mxu0
        %4549 = vmatprep.mubr.f32.mxu0 0.0
        %4550 = vmatmul.mubr.f32.gmra.mxu0 %v4386
        %v4551 = vpop.f32.mrf.mxu0
        %v4552 = vadd.f32 0.0, %v4551
        %v4553 = vpop.f32.mrf.mxu0
        %4554 = vmatprep.mubr.f32.mxu0 0.0
        %4555 = vmatmul.mubr.f32.gmra.mxu0 %v4389
        %v4556 = vpop.f32.mrf.mxu0
        %v4557 = vadd.f32 0.0, %v4556
        %v4558 = vpop.f32.mrf.mxu0
        %4559 = vmatprep.mubr.f32.mxu0 0.0
        %4560 = vmatmul.mubr.f32.gmra.mxu0 %v4392
        %v4561 = vpop.f32.mrf.mxu0
        %v4562 = vadd.f32 0.0, %v4561
        %v4563 = vpop.f32.mrf.mxu0
        %4564 = vmatprep.mubr.f32.mxu0 0.0
        %4565 = vmatmul.mubr.f32.gmra.mxu0 %v4395
        %v4566 = vpop.f32.mrf.mxu0
        %v4567 = vadd.f32 0.0, %v4566
        %v4568 = vpop.f32.mrf.mxu0
        %4569 = vmatprep.mubr.f32.mxu0 0.0
        %4570 = vmatmul.mubr.f32.gmra.mxu0 %v4398
        %v4571 = vpop.f32.mrf.mxu0
        %v4572 = vadd.f32 0.0, %v4571
        %v4573 = vpop.f32.mrf.mxu0
        %4574 = vmatprep.mubr.f32.mxu0 0.0
        %4575 = vmatmul.mubr.f32.gmra.mxu0 %v4401
        %v4576 = vpop.f32.mrf.mxu0
        %v4577 = vadd.f32 0.0, %v4576
        %v4578 = vpop.f32.mrf.mxu0
        %4579 = vmatprep.mubr.f32.mxu0 0.0
        %4580 = vmatmul.mubr.f32.gmra.mxu0 %v4404
        %v4581 = vpop.f32.mrf.mxu0
        %v4582 = vadd.f32 0.0, %v4581
        %v4583 = vpop.f32.mrf.mxu0
        %4584 = vmatprep.mubr.f32.mxu0 0.0
        %4585 = vmatmul.mubr.f32.gmra.mxu0 %v4407
        %v4586 = vpop.f32.mrf.mxu0
        %v4587 = vadd.f32 0.0, %v4586
        %v4588 = vpop.f32.mrf.mxu0
        %4589 = vmatprep.mubr.f32.mxu0 0.0
        %4590 = vmatmul.mubr.f32.gmra.mxu0 %v4410
        %v4591 = vpop.f32.mrf.mxu0
        %v4592 = vadd.f32 0.0, %v4591
        %v4593 = vpop.f32.mrf.mxu0
        %4594 = vmatprep.mubr.f32.mxu0 0.0
        %4595 = vmatmul.mubr.f32.gmra.mxu0 %v4413
        %v4596 = vpop.f32.mrf.mxu0
        %v4597 = vadd.f32 0.0, %v4596
        %v4598 = vpop.f32.mrf.mxu0
        %4599 = vmatprep.mubr.f32.mxu0 0.0
        %4600 = vmatmul.mubr.f32.gmra.mxu0 %v4416
        %v4601 = vpop.f32.mrf.mxu0
        %v4602 = vadd.f32 0.0, %v4601
        %v4603 = vpop.f32.mrf.mxu0
        %4604 = vmatprep.mubr.f32.mxu0 0.0
        %4605 = vmatmul.mubr.f32.gmra.mxu0 %v4419
        %v4606 = vpop.f32.mrf.mxu0
        %v4607 = vadd.f32 0.0, %v4606
        %v4608 = vpop.f32.mrf.mxu0
        %4609 = vmatprep.mubr.f32.mxu0 0.0
        %4610 = vmatmul.mubr.f32.gmra.mxu0 %v4422
        %v4611 = vpop.f32.mrf.mxu0
        %v4612 = vadd.f32 0.0, %v4611
        %v4613 = vpop.f32.mrf.mxu0
        %4614 = vmatprep.mubr.f32.mxu0 0.0
        %4615 = vmatmul.mubr.f32.gmra.mxu0 %v4425
        %v4616 = vpop.f32.mrf.mxu0
        %v4617 = vadd.f32 0.0, %v4616
        %v4618 = vpop.f32.mrf.mxu0
        %4619 = vmatprep.mubr.f32.mxu0 0.0
        %4620 = vmatmul.mubr.f32.gmra.mxu0 %v4428
        %v4621 = vpop.f32.mrf.mxu0
        %v4622 = vadd.f32 0.0, %v4621
        %v4623 = vpop.f32.mrf.mxu0
        %4624 = vmatprep.mubr.f32.mxu0 0.0
        %4625 = vmatmul.mubr.f32.gmra.mxu0 %v4431
        %v4626 = vpop.f32.mrf.mxu0
        %v4627 = vadd.f32 0.0, %v4626
        %v4628 = vpop.f32.mrf.mxu0
        %4629 = vmatprep.mubr.f32.mxu0 0.0
        %4630 = vmatmul.mubr.f32.gmra.mxu0 %v4434
        %v4631 = vpop.f32.mrf.mxu0
        %v4632 = vadd.f32 0.0, %v4631
        %v4633 = vpop.f32.mrf.mxu0
        %4634 = vmatprep.mubr.f32.mxu0 0.0
        %4635 = vmatmul.mubr.f32.gmra.mxu0 %v4437
        %v4636 = vpop.f32.mrf.mxu0
        %v4637 = vadd.f32 0.0, %v4636
        %v4638 = vpop.f32.mrf.mxu0
        %4639 = vmatprep.mubr.f32.mxu0 0.0
        %4640 = vmatmul.mubr.f32.gmra.mxu0 %v4440
        %v4641 = vpop.f32.mrf.mxu0
        %v4642 = vadd.f32 0.0, %v4641
        %v4643 = vpop.f32.mrf.mxu0
        %4644 = vmatprep.mubr.f32.mxu0 0.0
        %4645 = vmatmul.mubr.f32.gmra.mxu0 %v4443
        %v4646 = vpop.f32.mrf.mxu0
        %v4647 = vadd.f32 0.0, %v4646
        %v4648 = vpop.f32.mrf.mxu0
        %4649 = vmatprep.mubr.f32.mxu0 0.0
        %4650 = vmatmul.mubr.f32.gmra.mxu0 %v4446
        %v4651 = vpop.f32.mrf.mxu0
        %v4652 = vadd.f32 0.0, %v4651
        %v4653 = vpop.f32.mrf.mxu0
        %4654 = vmatprep.mubr.f32.mxu0 0.0
        %4655 = vmatmul.mubr.f32.gmra.mxu0 %v4449
        %v4656 = vpop.f32.mrf.mxu0
        %v4657 = vadd.f32 0.0, %v4656
        %v4658 = vpop.f32.mrf.mxu0
        %4659 = vmatprep.mubr.f32.mxu0 0.0
        %4660 = vmatmul.mubr.f32.gmra.mxu0 %v4452
        %v4661 = vpop.f32.mrf.mxu0
        %v4662 = vadd.f32 0.0, %v4661
        %v4663 = vpop.f32.mrf.mxu0
        %4664 = vmatprep.mubr.f32.mxu0 0.0
        %4665 = vmatmul.mubr.f32.gmra.mxu0 %v4455
        %v4666 = vpop.f32.mrf.mxu0
        %v4667 = vadd.f32 0.0, %v4666
        %v4668 = vpop.f32.mrf.mxu0
        %4669 = vmatprep.mubr.f32.mxu0 0.0
        %4670 = vmatmul.mubr.f32.gmra.mxu0 %v4458
        %v4671 = vpop.f32.mrf.mxu0
        %v4672 = vadd.f32 0.0, %v4671
        %v4673 = vpop.f32.mrf.mxu0
        %4674 = vmatprep.mubr.f32.mxu0 0.0
        %4675 = vmatmul.mubr.f32.gmra.mxu0 %v4461
        %v4676 = vpop.f32.mrf.mxu0
        %v4677 = vadd.f32 0.0, %v4676
        %v4678 = vpop.f32.mrf.mxu0
        %4679 = vmatprep.mubr.f32.mxu0 0.0
        %4680 = vmatmul.mubr.f32.gmra.mxu0 %v4464
        %v4681 = vpop.f32.mrf.mxu0
        %v4682 = vadd.f32 0.0, %v4681
        %v4683 = vpop.f32.mrf.mxu0
        %4684 = vmatprep.mubr.f32.mxu0 0.0
        %4685 = vmatmul.mubr.f32.gmra.mxu0 %v4467
        %v4686 = vpop.f32.mrf.mxu0
        %v4687 = vadd.f32 0.0, %v4686
        %v4688 = vpop.f32.mrf.mxu0
        %4689 = vmatprep.mubr.f32.mxu0 0.0
        %4690 = vmatmul.mubr.f32.gmra.mxu0 %v4470
        %v4691 = vpop.f32.mrf.mxu0
        %v4692 = vadd.f32 0.0, %v4691
        %v4693 = vpop.f32.mrf.mxu0
        %4694 = vmatprep.mubr.f32.mxu0 0.0
        %4695 = vmatmul.mubr.f32.gmra.mxu0 %v4473
        %v4696 = vpop.f32.mrf.mxu0
        %v4697 = vadd.f32 0.0, %v4696
        %v4698 = vpop.f32.mrf.mxu0
        %4699 = vdwg.mxu0
        %v4700 = vadd.f32 %v4313, %v4542
        %v4701 = vadd.f32 %v4314, %v4547
        %v4702 = vadd.f32 %v4315, %v4552
        %v4703 = vadd.f32 %v4316, %v4557
        %v4704 = vadd.f32 %v4317, %v4562
        %v4705 = vadd.f32 %v4318, %v4567
        %v4706 = vadd.f32 %v4319, %v4572
        %v4707 = vadd.f32 %v4320, %v4577
        %v4708 = vadd.f32 %v4321, %v4582
        %v4709 = vadd.f32 %v4322, %v4587
        %v4710 = vadd.f32 %v4323, %v4592
        %v4711 = vadd.f32 %v4324, %v4597
        %v4712 = vadd.f32 %v4325, %v4602
        %v4713 = vadd.f32 %v4326, %v4607
        %v4714 = vadd.f32 %v4327, %v4612
        %v4715 = vadd.f32 %v4328, %v4617
        %v4716 = vadd.f32 %v4329, %v4622
        %v4717 = vadd.f32 %v4330, %v4627
        %v4718 = vadd.f32 %v4331, %v4632
        %v4719 = vadd.f32 %v4332, %v4637
        %v4720 = vadd.f32 %v4333, %v4642
        %v4721 = vadd.f32 %v4334, %v4647
        %v4722 = vadd.f32 %v4335, %v4652
        %v4723 = vadd.f32 %v4336, %v4657
        %v4724 = vadd.f32 %v4337, %v4662
        %v4725 = vadd.f32 %v4338, %v4667
        %v4726 = vadd.f32 %v4339, %v4672
        %v4727 = vadd.f32 %v4340, %v4677
        %v4728 = vadd.f32 %v4341, %v4682
        %v4729 = vadd.f32 %v4342, %v4687
        %v4730 = vadd.f32 %v4343, %v4692
        %v4731 = vadd.f32 %v4344, %v4697
        %v4732 = vld [vmem:[%s8] sm:$0x1]
        %v4734 = vlaneseq
        %v4735 = vshrl.u32 %v4734, 7
        %v4736 = vsub.s32 0, %v4735
        %v4737 = vrot.slane %v4732, %v4736
        %v4739 = vadd.f32 %v4700, %v4737
        %v4740 = vadd.f32 %v4701, %v4737
        %v4741 = vadd.f32 %v4702, %v4737
        %v4742 = vadd.f32 %v4703, %v4737
        %v4743 = vadd.f32 %v4704, %v4737
        %v4744 = vadd.f32 %v4705, %v4737
        %v4745 = vadd.f32 %v4706, %v4737
        %v4746 = vadd.f32 %v4707, %v4737
        %v4747 = vadd.f32 %v4708, %v4737
        %v4748 = vadd.f32 %v4709, %v4737
        %v4749 = vadd.f32 %v4710, %v4737
        %v4750 = vadd.f32 %v4711, %v4737
        %v4751 = vadd.f32 %v4712, %v4737
        %v4752 = vadd.f32 %v4713, %v4737
        %v4753 = vadd.f32 %v4714, %v4737
        %v4754 = vadd.f32 %v4715, %v4737
        %v4755 = vadd.f32 %v4716, %v4737
        %v4756 = vadd.f32 %v4717, %v4737
        %v4757 = vadd.f32 %v4718, %v4737
        %v4758 = vadd.f32 %v4719, %v4737
        %v4759 = vadd.f32 %v4720, %v4737
        %v4760 = vadd.f32 %v4721, %v4737
        %v4761 = vadd.f32 %v4722, %v4737
        %v4762 = vadd.f32 %v4723, %v4737
        %v4763 = vadd.f32 %v4724, %v4737
        %v4764 = vadd.f32 %v4725, %v4737
        %v4765 = vadd.f32 %v4726, %v4737
        %v4766 = vadd.f32 %v4727, %v4737
        %v4767 = vadd.f32 %v4728, %v4737
        %v4768 = vadd.f32 %v4729, %v4737
        %v4769 = vadd.f32 %v4730, %v4737
        %v4770 = vadd.f32 %v4731, %v4737
        %v4771 = vxor.u32 %v4739, 2147483648
        %v4772 = vxor.u32 %v4740, 2147483648
        %v4773 = vxor.u32 %v4741, 2147483648
        %v4774 = vxor.u32 %v4742, 2147483648
        %v4775 = vxor.u32 %v4743, 2147483648
        %v4776 = vxor.u32 %v4744, 2147483648
        %v4777 = vxor.u32 %v4745, 2147483648
        %v4778 = vxor.u32 %v4746, 2147483648
        %v4779 = vxor.u32 %v4747, 2147483648
        %v4780 = vxor.u32 %v4748, 2147483648
        %v4781 = vxor.u32 %v4749, 2147483648
        %v4782 = vxor.u32 %v4750, 2147483648
        %v4783 = vxor.u32 %v4751, 2147483648
        %v4784 = vxor.u32 %v4752, 2147483648
        %v4785 = vxor.u32 %v4753, 2147483648
        %v4786 = vxor.u32 %v4754, 2147483648
        %v4787 = vxor.u32 %v4755, 2147483648
        %v4788 = vxor.u32 %v4756, 2147483648
        %v4789 = vxor.u32 %v4757, 2147483648
        %v4790 = vxor.u32 %v4758, 2147483648
        %v4791 = vxor.u32 %v4759, 2147483648
        %v4792 = vxor.u32 %v4760, 2147483648
        %v4793 = vxor.u32 %v4761, 2147483648
        %v4794 = vxor.u32 %v4762, 2147483648
        %v4795 = vxor.u32 %v4763, 2147483648
        %v4796 = vxor.u32 %v4764, 2147483648
        %v4797 = vxor.u32 %v4765, 2147483648
        %v4798 = vxor.u32 %v4766, 2147483648
        %v4799 = vxor.u32 %v4767, 2147483648
        %v4800 = vxor.u32 %v4768, 2147483648
        %v4801 = vxor.u32 %v4769, 2147483648
        %v4802 = vxor.u32 %v4770, 2147483648
        %v4803 = vmul.f32 %v4771, 1.442695
        %v4804 = vpow.pop %v4803
        %v4805 = vmul.f32 %v4772, 1.442695
        %v4806 = vpow.pop %v4805
        %v4807 = vmul.f32 %v4773, 1.442695
        %v4808 = vpow.pop %v4807
        %v4809 = vmul.f32 %v4774, 1.442695
        %v4810 = vpow.pop %v4809
        %v4811 = vmul.f32 %v4775, 1.442695
        %v4812 = vpow.pop %v4811
        %v4813 = vmul.f32 %v4776, 1.442695
        %v4814 = vpow.pop %v4813
        %v4815 = vmul.f32 %v4777, 1.442695
        %v4816 = vpow.pop %v4815
        %v4817 = vmul.f32 %v4778, 1.442695
        %v4818 = vpow.pop %v4817
        %v4819 = vmul.f32 %v4779, 1.442695
        %v4820 = vpow.pop %v4819
        %v4821 = vmul.f32 %v4780, 1.442695
        %v4822 = vpow.pop %v4821
        %v4823 = vmul.f32 %v4781, 1.442695
        %v4824 = vpow.pop %v4823
        %v4825 = vmul.f32 %v4782, 1.442695
        %v4826 = vpow.pop %v4825
        %v4827 = vmul.f32 %v4783, 1.442695
        %v4828 = vpow.pop %v4827
        %v4829 = vmul.f32 %v4784, 1.442695
        %v4830 = vpow.pop %v4829
        %v4831 = vmul.f32 %v4785, 1.442695
        %v4832 = vpow.pop %v4831
        %v4833 = vmul.f32 %v4786, 1.442695
        %v4834 = vpow.pop %v4833
        %v4835 = vmul.f32 %v4787, 1.442695
        %v4836 = vpow.pop %v4835
        %v4837 = vmul.f32 %v4788, 1.442695
        %v4838 = vpow.pop %v4837
        %v4839 = vmul.f32 %v4789, 1.442695
        %v4840 = vpow.pop %v4839
        %v4841 = vmul.f32 %v4790, 1.442695
        %v4842 = vpow.pop %v4841
        %v4843 = vmul.f32 %v4791, 1.442695
        %v4844 = vpow.pop %v4843
        %v4845 = vmul.f32 %v4792, 1.442695
        %v4846 = vpow.pop %v4845
        %v4847 = vmul.f32 %v4793, 1.442695
        %v4848 = vpow.pop %v4847
        %v4849 = vmul.f32 %v4794, 1.442695
        %v4850 = vpow.pop %v4849
        %v4851 = vmul.f32 %v4795, 1.442695
        %v4852 = vpow.pop %v4851
        %v4853 = vmul.f32 %v4796, 1.442695
        %v4854 = vpow.pop %v4853
        %v4855 = vmul.f32 %v4797, 1.442695
        %v4856 = vpow.pop %v4855
        %v4857 = vmul.f32 %v4798, 1.442695
        %v4858 = vpow.pop %v4857
        %v4859 = vmul.f32 %v4799, 1.442695
        %v4860 = vpow.pop %v4859
        %v4861 = vmul.f32 %v4800, 1.442695
        %v4862 = vpow.pop %v4861
        %v4863 = vmul.f32 %v4801, 1.442695
        %v4864 = vpow.pop %v4863
        %v4865 = vmul.f32 %v4802, 1.442695
        %v4866 = vpow.pop %v4865
        %v4867 = vadd.f32 %v4804, 1.0
        %v4868 = vadd.f32 %v4806, 1.0
        %v4869 = vadd.f32 %v4808, 1.0
        %v4870 = vadd.f32 %v4810, 1.0
        %v4871 = vadd.f32 %v4812, 1.0
        %v4872 = vadd.f32 %v4814, 1.0
        %v4873 = vadd.f32 %v4816, 1.0
        %v4874 = vadd.f32 %v4818, 1.0
        %v4875 = vadd.f32 %v4820, 1.0
        %v4876 = vadd.f32 %v4822, 1.0
        %v4877 = vadd.f32 %v4824, 1.0
        %v4878 = vadd.f32 %v4826, 1.0
        %v4879 = vadd.f32 %v4828, 1.0
        %v4880 = vadd.f32 %v4830, 1.0
        %v4881 = vadd.f32 %v4832, 1.0
        %v4882 = vadd.f32 %v4834, 1.0
        %v4883 = vadd.f32 %v4836, 1.0
        %v4884 = vadd.f32 %v4838, 1.0
        %v4885 = vadd.f32 %v4840, 1.0
        %v4886 = vadd.f32 %v4842, 1.0
        %v4887 = vadd.f32 %v4844, 1.0
        %v4888 = vadd.f32 %v4846, 1.0
        %v4889 = vadd.f32 %v4848, 1.0
        %v4890 = vadd.f32 %v4850, 1.0
        %v4891 = vadd.f32 %v4852, 1.0
        %v4892 = vadd.f32 %v4854, 1.0
        %v4893 = vadd.f32 %v4856, 1.0
        %v4894 = vadd.f32 %v4858, 1.0
        %v4895 = vadd.f32 %v4860, 1.0
        %v4896 = vadd.f32 %v4862, 1.0
        %v4897 = vadd.f32 %v4864, 1.0
        %v4898 = vadd.f32 %v4866, 1.0
        %v4899 = vrcp.pop %v4867
        %v4900 = vmul.f32 1.0, %v4899
        %v4901 = vrcp.pop %v4868
        %v4902 = vmul.f32 1.0, %v4901
        %v4903 = vrcp.pop %v4869
        %v4904 = vmul.f32 1.0, %v4903
        %v4905 = vrcp.pop %v4870
        %v4906 = vmul.f32 1.0, %v4905
        %v4907 = vrcp.pop %v4871
        %v4908 = vmul.f32 1.0, %v4907
        %v4909 = vrcp.pop %v4872
        %v4910 = vmul.f32 1.0, %v4909
        %v4911 = vrcp.pop %v4873
        %v4912 = vmul.f32 1.0, %v4911
        %v4913 = vrcp.pop %v4874
        %v4914 = vmul.f32 1.0, %v4913
        %v4915 = vrcp.pop %v4875
        %v4916 = vmul.f32 1.0, %v4915
        %v4917 = vrcp.pop %v4876
        %v4918 = vmul.f32 1.0, %v4917
        %v4919 = vrcp.pop %v4877
        %v4920 = vmul.f32 1.0, %v4919
        %v4921 = vrcp.pop %v4878
        %v4922 = vmul.f32 1.0, %v4921
        %v4923 = vrcp.pop %v4879
        %v4924 = vmul.f32 1.0, %v4923
        %v4925 = vrcp.pop %v4880
        %v4926 = vmul.f32 1.0, %v4925
        %v4927 = vrcp.pop %v4881
        %v4928 = vmul.f32 1.0, %v4927
        %v4929 = vrcp.pop %v4882
        %v4930 = vmul.f32 1.0, %v4929
        %v4931 = vrcp.pop %v4883
        %v4932 = vmul.f32 1.0, %v4931
        %v4933 = vrcp.pop %v4884
        %v4934 = vmul.f32 1.0, %v4933
        %v4935 = vrcp.pop %v4885
        %v4936 = vmul.f32 1.0, %v4935
        %v4937 = vrcp.pop %v4886
        %v4938 = vmul.f32 1.0, %v4937
        %v4939 = vrcp.pop %v4887
        %v4940 = vmul.f32 1.0, %v4939
        %v4941 = vrcp.pop %v4888
        %v4942 = vmul.f32 1.0, %v4941
        %v4943 = vrcp.pop %v4889
        %v4944 = vmul.f32 1.0, %v4943
        %v4945 = vrcp.pop %v4890
        %v4946 = vmul.f32 1.0, %v4945
        %v4947 = vrcp.pop %v4891
        %v4948 = vmul.f32 1.0, %v4947
        %v4949 = vrcp.pop %v4892
        %v4950 = vmul.f32 1.0, %v4949
        %v4951 = vrcp.pop %v4893
        %v4952 = vmul.f32 1.0, %v4951
        %v4953 = vrcp.pop %v4894
        %v4954 = vmul.f32 1.0, %v4953
        %v4955 = vrcp.pop %v4895
        %v4956 = vmul.f32 1.0, %v4955
        %v4957 = vrcp.pop %v4896
        %v4958 = vmul.f32 1.0, %v4957
        %v4959 = vrcp.pop %v4897
        %v4960 = vmul.f32 1.0, %v4959
        %v4961 = vrcp.pop %v4898
        %v4962 = vmul.f32 1.0, %v4961
        %v4963 = vmul.f32 %v4739, %v4900
        %v4964 = vmul.f32 %v4740, %v4902
        %v4965 = vmul.f32 %v4741, %v4904
        %v4966 = vmul.f32 %v4742, %v4906
        %v4967 = vmul.f32 %v4743, %v4908
        %v4968 = vmul.f32 %v4744, %v4910
        %v4969 = vmul.f32 %v4745, %v4912
        %v4970 = vmul.f32 %v4746, %v4914
        %v4971 = vmul.f32 %v4747, %v4916
        %v4972 = vmul.f32 %v4748, %v4918
        %v4973 = vmul.f32 %v4749, %v4920
        %v4974 = vmul.f32 %v4750, %v4922
        %v4975 = vmul.f32 %v4751, %v4924
        %v4976 = vmul.f32 %v4752, %v4926
        %v4977 = vmul.f32 %v4753, %v4928
        %v4978 = vmul.f32 %v4754, %v4930
        %v4979 = vmul.f32 %v4755, %v4932
        %v4980 = vmul.f32 %v4756, %v4934
        %v4981 = vmul.f32 %v4757, %v4936
        %v4982 = vmul.f32 %v4758, %v4938
        %v4983 = vmul.f32 %v4759, %v4940
        %v4984 = vmul.f32 %v4760, %v4942
        %v4985 = vmul.f32 %v4761, %v4944
        %v4986 = vmul.f32 %v4762, %v4946
        %v4987 = vmul.f32 %v4763, %v4948
        %v4988 = vmul.f32 %v4764, %v4950
        %v4989 = vmul.f32 %v4765, %v4952
        %v4990 = vmul.f32 %v4766, %v4954
        %v4991 = vmul.f32 %v4767, %v4956
        %v4992 = vmul.f32 %v4768, %v4958
        %v4993 = vmul.f32 %v4769, %v4960
        %v4994 = vmul.f32 %v4770, %v4962
        %v4995 = vadd.f32 %v4963, %v623
        %v4996 = vadd.f32 %v4964, %v624
        %v4997 = vadd.f32 %v4965, %v625
        %v4998 = vadd.f32 %v4966, %v626
        %v4999 = vadd.f32 %v4967, %v627
        %v5000 = vadd.f32 %v4968, %v628
        %v5001 = vadd.f32 %v4969, %v629
        %v5002 = vadd.f32 %v4970, %v630
        %v5003 = vadd.f32 %v4971, %v631
        %v5004 = vadd.f32 %v4972, %v632
        %v5005 = vadd.f32 %v4973, %v633
        %v5006 = vadd.f32 %v4974, %v634
        %v5007 = vadd.f32 %v4975, %v635
        %v5008 = vadd.f32 %v4976, %v636
        %v5009 = vadd.f32 %v4977, %v637
        %v5010 = vadd.f32 %v4978, %v638
        %v5011 = vadd.f32 %v4979, %v655
        %v5012 = vadd.f32 %v4980, %v656
        %v5013 = vadd.f32 %v4981, %v657
        %v5014 = vadd.f32 %v4982, %v658
        %v5015 = vadd.f32 %v4983, %v659
        %v5016 = vadd.f32 %v4984, %v660
        %v5017 = vadd.f32 %v4985, %v661
        %v5018 = vadd.f32 %v4986, %v662
        %v5019 = vadd.f32 %v4987, %v663
        %v5020 = vadd.f32 %v4988, %v664
        %v5021 = vadd.f32 %v4989, %v665
        %v5022 = vadd.f32 %v4990, %v666
        %v5023 = vadd.f32 %v4991, %v667
        %v5024 = vadd.f32 %v4992, %v668
        %v5025 = vadd.f32 %v4993, %v669
        %v5026 = vadd.f32 %v4994, %v670
        %v5027 = vld [vmem:[%s9] sm:$0xff]
        %v5028 = vld [vmem:[%s9 + $0x8] sm:$0xff]
        %v5029 = vld [vmem:[%s10] sm:$0xff]
        %v5030 = vld [vmem:[%s10 + $0x8] sm:$0xff]
        %v5032 = vsel %vm671, %v5029, 0
        %v5035 = vsel %vm671, %v5030, 0
        %5037 = vmatprep.subr.mxu0 0.0
        %5038 = vmatpush1.msra.mxu0 0.0
        %5039 = vmatprep.subr.mxu0 0.0
        %5040 = vmatpush1.msra.mxu0 0.0
        %5041 = vmatprep.subr.mxu0 0.0
        %5042 = vmatpush1.msra.mxu0 0.0
        %5043 = vmatprep.subr.mxu0 0.0
        %5044 = vmatpush1.msra.mxu0 0.0
        %5045 = vmatprep.subr.mxu0 0.0
        %5046 = vmatpush1.msra.mxu0 0.0
        %5047 = vmatprep.subr.mxu0 0.0
        %5048 = vmatpush1.msra.mxu0 0.0
        %5049 = vmatprep.subr.mxu0 0.0
        %5050 = vmatpush1.msra.mxu0 0.0
        %5051 = vmatprep.subr.mxu0 0.0
        %5052 = vmatpush1.msra.mxu0 0.0
        %5053 = vmatprep.subr.mxu0 0.0
        %5054 = vmatpush1.msra.mxu0 0.0
        %5055 = vmatprep.subr.mxu0 0.0
        %5056 = vmatpush1.msra.mxu0 0.0
        %5057 = vmatprep.subr.mxu0 0.0
        %5058 = vmatpush1.msra.mxu0 0.0
        %5059 = vmatprep.subr.mxu0 0.0
        %5060 = vmatpush1.msra.mxu0 0.0
        %5061 = vmatprep.subr.mxu0 0.0
        %5062 = vmatpush1.msra.mxu0 0.0
        %5063 = vmatprep.subr.mxu0 0.0
        %5064 = vmatpush1.msra.mxu0 0.0
        %5065 = vmatprep.subr.mxu0 0.0
        %5066 = vmatpush1.msra.mxu0 0.0
        %5067 = vmatprep.subr.mxu0 %v606
        %5068 = vmatpush1.msra.mxu0 %v605
        %5069 = vmatprep.subr.mxu0 0.0
        %5070 = vmatpush2.msra.mxu0 0.0
        %5071 = vmatprep.subr.mxu0 0.0
        %5072 = vmatpush2.msra.mxu0 0.0
        %5073 = vmatprep.subr.mxu0 0.0
        %5074 = vmatpush2.msra.mxu0 0.0
        %5075 = vmatprep.subr.mxu0 0.0
        %5076 = vmatpush2.msra.mxu0 0.0
        %5077 = vmatprep.subr.mxu0 0.0
        %5078 = vmatpush2.msra.mxu0 0.0
        %5079 = vmatprep.subr.mxu0 0.0
        %5080 = vmatpush2.msra.mxu0 0.0
        %5081 = vmatprep.subr.mxu0 0.0
        %5082 = vmatpush2.msra.mxu0 0.0
        %5083 = vmatprep.subr.mxu0 0.0
        %5084 = vmatpush2.msra.mxu0 0.0
        %5085 = vmatprep.subr.mxu0 0.0
        %5086 = vmatpush2.msra.mxu0 0.0
        %5087 = vmatprep.subr.mxu0 0.0
        %5088 = vmatpush2.msra.mxu0 0.0
        %5089 = vmatprep.subr.mxu0 0.0
        %5090 = vmatpush2.msra.mxu0 0.0
        %5091 = vmatprep.subr.mxu0 0.0
        %5092 = vmatpush2.msra.mxu0 0.0
        %5093 = vmatprep.subr.mxu0 0.0
        %5094 = vmatpush2.msra.mxu0 0.0
        %5095 = vmatprep.subr.mxu0 0.0
        %5096 = vmatpush2.msra.mxu0 0.0
        %5097 = vmatprep.subr.mxu0 0.0
        %5098 = vmatpush2.msra.mxu0 0.0
        %5099 = vmatprep.subr.mxu0 0.0
        %5100 = vmatpush2.msra.mxu0 0.0
        %5101 = vmatprep.mubr.f32.mxu0 0.0
        %5102 = vmatmul.mubr.f32.gmra.mxu0 %v5032
        %v5103 = vpop.f32.mrf.mxu0
        %v5104 = vadd.f32 0.0, %v5103
        %v5105 = vpop.f32.mrf.mxu0
        %v5106 = vadd.f32 0.0, %v5105
        %5107 = vmatprep.mubr.f32.mxu0 0.0
        %5108 = vmatmul.mubr.f32.gmra.mxu0 %v5035
        %v5109 = vpop.f32.mrf.mxu0
        %v5110 = vadd.f32 0.0, %v5109
        %v5111 = vpop.f32.mrf.mxu0
        %v5112 = vadd.f32 0.0, %v5111
        %5113 = vdwg.mxu0
        %v5115 = vsel %vm671, %v5027, 0
        %v5118 = vsel %vm671, %v5028, 0
        %v5121 = vsel %vm671, %v4995, 0
        %v5124 = vsel %vm671, %v4996, 0
        %v5127 = vsel %vm671, %v4997, 0
        %v5130 = vsel %vm671, %v4998, 0
        %v5133 = vsel %vm671, %v4999, 0
        %v5136 = vsel %vm671, %v5000, 0
        %v5139 = vsel %vm671, %v5001, 0
        %v5142 = vsel %vm671, %v5002, 0
        %v5145 = vsel %vm671, %v5003, 0
        %v5148 = vsel %vm671, %v5004, 0
        %v5151 = vsel %vm671, %v5005, 0
        %v5154 = vsel %vm671, %v5006, 0
        %v5157 = vsel %vm671, %v5007, 0
        %v5160 = vsel %vm671, %v5008, 0
        %v5163 = vsel %vm671, %v5009, 0
        %v5166 = vsel %vm671, %v5010, 0
        %v5169 = vsel %vm671, %v5011, 0
        %v5172 = vsel %vm671, %v5012, 0
        %v5175 = vsel %vm671, %v5013, 0
        %v5178 = vsel %vm671, %v5014, 0
        %v5181 = vsel %vm671, %v5015, 0
        %v5184 = vsel %vm671, %v5016, 0
        %v5187 = vsel %vm671, %v5017, 0
        %v5190 = vsel %vm671, %v5018, 0
        %v5193 = vsel %vm671, %v5019, 0
        %v5196 = vsel %vm671, %v5020, 0
        %v5199 = vsel %vm671, %v5021, 0
        %v5202 = vsel %vm671, %v5022, 0
        %v5205 = vsel %vm671, %v5023, 0
        %v5208 = vsel %vm671, %v5024, 0
        %v5211 = vsel %vm671, %v5025, 0
        %v5214 = vsel %vm671, %v5026, 0
        %5216 = vmatprep.subr.mxu0 0.0
        %5217 = vmatpush1.xpose.msra.mxu0 %v5166
        %5218 = vmatprep.subr.mxu0 0.0
        %5219 = vmatpush1.xpose.msra.mxu0 %v5163
        %5220 = vmatprep.subr.mxu0 0.0
        %5221 = vmatpush1.xpose.msra.mxu0 %v5160
        %5222 = vmatprep.subr.mxu0 0.0
        %5223 = vmatpush1.xpose.msra.mxu0 %v5157
        %5224 = vmatprep.subr.mxu0 0.0
        %5225 = vmatpush1.xpose.msra.mxu0 %v5154
        %5226 = vmatprep.subr.mxu0 0.0
        %5227 = vmatpush1.xpose.msra.mxu0 %v5151
        %5228 = vmatprep.subr.mxu0 0.0
        %5229 = vmatpush1.xpose.msra.mxu0 %v5148
        %5230 = vmatprep.subr.mxu0 0.0
        %5231 = vmatpush1.xpose.msra.mxu0 %v5145
        %5232 = vmatprep.subr.mxu0 0.0
        %5233 = vmatpush1.xpose.msra.mxu0 %v5142
        %5234 = vmatprep.subr.mxu0 0.0
        %5235 = vmatpush1.xpose.msra.mxu0 %v5139
        %5236 = vmatprep.subr.mxu0 0.0
        %5237 = vmatpush1.xpose.msra.mxu0 %v5136
        %5238 = vmatprep.subr.mxu0 0.0
        %5239 = vmatpush1.xpose.msra.mxu0 %v5133
        %5240 = vmatprep.subr.mxu0 0.0
        %5241 = vmatpush1.xpose.msra.mxu0 %v5130
        %5242 = vmatprep.subr.mxu0 0.0
        %5243 = vmatpush1.xpose.msra.mxu0 %v5127
        %5244 = vmatprep.subr.mxu0 0.0
        %5245 = vmatpush1.xpose.msra.mxu0 %v5124
        %5246 = vmatprep.subr.mxu0 0.0
        %5247 = vmatpush1.xpose.msra.mxu0 %v5121
        %5248 = vmatprep.subr.mxu0 0.0
        %5249 = vmatpush2.xpose.msra.mxu0 %v5214
        %5250 = vmatprep.subr.mxu0 0.0
        %5251 = vmatpush2.xpose.msra.mxu0 %v5211
        %5252 = vmatprep.subr.mxu0 0.0
        %5253 = vmatpush2.xpose.msra.mxu0 %v5208
        %5254 = vmatprep.subr.mxu0 0.0
        %5255 = vmatpush2.xpose.msra.mxu0 %v5205
        %5256 = vmatprep.subr.mxu0 0.0
        %5257 = vmatpush2.xpose.msra.mxu0 %v5202
        %5258 = vmatprep.subr.mxu0 0.0
        %5259 = vmatpush2.xpose.msra.mxu0 %v5199
        %5260 = vmatprep.subr.mxu0 0.0
        %5261 = vmatpush2.xpose.msra.mxu0 %v5196
        %5262 = vmatprep.subr.mxu0 0.0
        %5263 = vmatpush2.xpose.msra.mxu0 %v5193
        %5264 = vmatprep.subr.mxu0 0.0
        %5265 = vmatpush2.xpose.msra.mxu0 %v5190
        %5266 = vmatprep.subr.mxu0 0.0
        %5267 = vmatpush2.xpose.msra.mxu0 %v5187
        %5268 = vmatprep.subr.mxu0 0.0
        %5269 = vmatpush2.xpose.msra.mxu0 %v5184
        %5270 = vmatprep.subr.mxu0 0.0
        %5271 = vmatpush2.xpose.msra.mxu0 %v5181
        %5272 = vmatprep.subr.mxu0 0.0
        %5273 = vmatpush2.xpose.msra.mxu0 %v5178
        %5274 = vmatprep.subr.mxu0 0.0
        %5275 = vmatpush2.xpose.msra.mxu0 %v5175
        %5276 = vmatprep.subr.mxu0 0.0
        %5277 = vmatpush2.xpose.msra.mxu0 %v5172
        %5278 = vmatprep.subr.mxu0 0.0
        %5279 = vmatpush2.xpose.msra.mxu0 %v5169
        %5280 = vmatprep.mubr.f32.mxu0 0.0
        %5281 = vmatmul.mubr.f32.gmra.mxu0 %v5115
        %v5282 = vpop.f32.mrf.mxu0
        %v5283 = vadd.f32 %v5104, %v5282
        %v5284 = vpop.f32.mrf.mxu0
        %v5285 = vadd.f32 %v5106, %v5284
        %5286 = vmatprep.mubr.f32.mxu0 0.0
        %5287 = vmatmul.mubr.f32.gmra.mxu0 %v5118
        %v5288 = vpop.f32.mrf.mxu0
        %v5289 = vadd.f32 %v5110, %v5288
        %v5290 = vpop.f32.mrf.mxu0
        %v5291 = vadd.f32 %v5112, %v5290
        %5292 = vdwg.mxu0
        %v5293 = vld [vmem:[%s11] sm:$0xff]
        %v5294 = vld [vmem:[%s11 + $0x8] sm:$0xff]
        %5296 = vset.pattern.permute.xlu0 0
        %5297 = vperm.xlu0 %5296, %v5293
        %v5298 = vpop.permute.xlu0 %5297
        %5301 = vset.pattern.permute.xlu0 0
        %5302 = vperm.xlu0 %5301, %v5294
        %v5303 = vpop.permute.xlu0 %5302
        %v5305 = vadd.f32 %v5283, %v5298
        %v5306 = vadd.f32 %v5285, %v5298
        %v5307 = vadd.f32 %v5289, %v5303
        %v5308 = vadd.f32 %v5291, %v5303
        %v5309 = vxor.u32 %v5305, 2147483648
        %v5310 = vxor.u32 %v5306, 2147483648
        %v5311 = vxor.u32 %v5307, 2147483648
        %v5312 = vxor.u32 %v5308, 2147483648
        %v5313 = vmul.f32 %v5309, 1.442695
        %v5314 = vpow.pop %v5313
        %v5315 = vmul.f32 %v5310, 1.442695
        %v5316 = vpow.pop %v5315
        %v5317 = vmul.f32 %v5311, 1.442695
        %v5318 = vpow.pop %v5317
        %v5319 = vmul.f32 %v5312, 1.442695
        %v5320 = vpow.pop %v5319
        %v5321 = vadd.f32 %v5314, 1.0
        %v5322 = vadd.f32 %v5316, 1.0
        %v5323 = vadd.f32 %v5318, 1.0
        %v5324 = vadd.f32 %v5320, 1.0
        %v5325 = vrcp.pop %v5321
        %v5326 = vmul.f32 1.0, %v5325
        %v5327 = vrcp.pop %v5322
        %v5328 = vmul.f32 1.0, %v5327
        %v5329 = vrcp.pop %v5323
        %v5330 = vmul.f32 1.0, %v5329
        %v5331 = vrcp.pop %v5324
        %v5332 = vmul.f32 1.0, %v5331
        %v5333 = vmul.f32 %v5305, %v5326
        %v5334 = vmul.f32 %v5306, %v5328
        %v5335 = vmul.f32 %v5307, %v5330
        %v5336 = vmul.f32 %v5308, %v5332
        %5337 = vst [vmem:[%s406] sm:$0xff] %v5333
        %5338 = vst [vmem:[%s406 + $0x8] sm:$0xff] %v5334
        %5339 = vst [vmem:[%s406 + $0x10] sm:$0xff] %v5335
        %5340 = vst [vmem:[%s406 + $0x18] sm:$0xff] %v5336
        %s5341 = sand.u32 %s291, 1
        %s5342 = scalar_lea.sflag [#allocation4], %s5341
        %s5343 = sand.u32 %s291, 1
        %s5344 = smul.addr %s5343, 32
        %s5345 = scalar_lea.vmem [#allocation3], %s5344
        // Predicated region
        $region69: #{tpu_custom_call.1} parent=67 // pred_check
          %p5346 = pneg %p301
        $region70: #{tpu_custom_call.1} parent=67 // pred_check_branch
          %5348 = sbr.rel (%p5346) target = $region72
        $region71: #{tpu_custom_call.1} parent=67 // pred_region
          %s5350 = ssub.s32 512, 512
          %5351 = vsyncadd %s5342, %s5350
          %s5352 = smul.addr %s26, 4
          %s5353 = smul.addr %s5352, 128
          %s5354 = scalar_lea.hbm %s12, %s5353
          %s5355 = sshll.u32 %s5345, 4
          %s5356 = int_to_ptr.vmem [resolvable:$true] %s5355
          %5361 = dma.vmem_to_hbm [thread:$0]  %s5356, 512, %s5354, %s5342, 256, 256, 16
        $region72: #{tpu_custom_call.1} parent=67 // pred_fallthru
          _
      $region68: #{tpu_custom_call.1} parent=5 // pred_fallthru
        _
      %p5362 = scmp.le.s32.totalorder 2, %s21
      // Predicated region
      $region73: #{tpu_custom_call.1} parent=5 // pred_check
        %p5363 = pneg %p5362
      $region74: #{tpu_custom_call.1} parent=5 // pred_check_branch
        %5365 = sbr.rel (%p5363) target = $region76
      $region75: #{tpu_custom_call.1} parent=5 // pred_region
        %s5366 = ssub.s32 %s21, 2
        // Predicated region
        $region77: #{tpu_custom_call.1} parent=75 // pred_check
          %p5367 = pneg %p307
        $region78: #{tpu_custom_call.1} parent=75 // pred_check_branch
          %5369 = sbr.rel (%p5367) target = $region80
        $region79: #{tpu_custom_call.1} parent=75 // pred_region
          %s5370 = sand.u32 %s292, 1
          %s5371 = scalar_lea.sflag [#allocation4], %s5370
          %s5372 = sand.u32 %s292, 1
          %s5373 = smul.addr %s5372, 32
          %s5374 = scalar_lea.vmem [#allocation3], %s5373
          %5375 = dma.done %s5371, 512
        $region80: #{tpu_custom_call.1} parent=75 // pred_fallthru
          _
      $region76: #{tpu_custom_call.1} parent=5 // pred_fallthru
        _
    $region6: #{tpu_custom_call.1} parent=1 // loop_footer
      %s25 = sadd.s32 1, %s21
    $region7: #{tpu_custom_call.1} parent=1 // loop_footer_branch
      %20 = sbr.rel target = $region3
    $region8: #{tpu_custom_call.1} parent=1 // loop_exit
      _
    %5376 = vsyncpa [#allocation4], 1
    %s5377 = scalar_lea.sflag [#allocation4], 1
    %5378 = vsyncpa %s5377, 1

</llo_original>
